<compile_context>
chip_gen: v7x
topology: tpu7x:2x2x1
jax: 0.10.0
libtpu: 0.0.40
codegen_flags: <defaults>
</compile_context>

<pallas_src>
import numpy as np
import jax
import jax.numpy as jnp
from jax import lax
from jax.experimental import pallas as pl
from jax.experimental.pallas import tpu as pltpu

PROMPT_LENGTHS = (60, 15, 15, 60)          # prompt_length_list default
TOK_PIPE, TOK_Q, TOK_DB, TOK_EOS = 1820, 822, 3501, 1

MAX_INFLIGHT = 16                          # outstanding row DMAs per grid step


# ----------------------------- Pallas kernel ------------------------------- #

def _splice_kernel(idx_ref, prompt_ref, emb_hbm, out_ref, sem):
    # idx_ref:    SMEM (B, T) int32 (scalar prefetch). idx < P -> prompt row idx;
    #             idx >= P -> vocab row (idx - P) of the HBM embedding table.
    # prompt_ref: VMEM (P, D)   [head; mid1; mid2; tail], resident (constant map)
    # emb_hbm:    ANY  (V, D)   embedding table left in HBM, row-gathered by DMA
    # out_ref:    VMEM (1, T, D) rows are DMA'd directly into the output block
    # sem:        one DMA semaphore shared by all row copies (equal byte counts)
    b = pl.program_id(0)
    P = prompt_ref.shape[0]
    T = out_ref.shape[1]

    def row_copies(t):
        idx = idx_ref[b, t]
        dst = out_ref.at[0, pl.ds(t, 1)]                               # (1, D)
        p_cp = pltpu.make_async_copy(prompt_ref.at[pl.ds(idx, 1)], dst, sem)
        v_cp = pltpu.make_async_copy(emb_hbm.at[pl.ds(idx - P, 1)], dst, sem)
        return idx < P, p_cp, v_cp

    def start_row(t):
        is_prompt, p_cp, v_cp = row_copies(t)

        @pl.when(is_prompt)
        def _():
            p_cp.start()

        @pl.when(jnp.logical_not(is_prompt))
        def _():
            v_cp.start()

    def wait_row(t):
        is_prompt, p_cp, v_cp = row_copies(t)

        @pl.when(is_prompt)
        def _():
            p_cp.wait()

        @pl.when(jnp.logical_not(is_prompt))
        def _():
            v_cp.wait()

    # Prime MAX_INFLIGHT copies (static unroll), then steady state:
    # wait row t, issue row t + MAX_INFLIGHT.
    for t in range(min(MAX_INFLIGHT, T)):
        start_row(t)

    def body(t, carry):
        wait_row(t)

        @pl.when(t + MAX_INFLIGHT < T)
        def _():
            start_row(t + MAX_INFLIGHT)

        return carry

    lax.fori_loop(0, T, body, 0)


def splice_embeds(gather_idx, prompt_table, emb_table):
    """gather_idx[b,t] < P -> prompt_table row; else emb_table row (idx - P).

    Returns [B, T, D] spliced inputs_embeds."""
    B, T = gather_idx.shape
    P, D = prompt_table.shape
    assert prompt_table.dtype == emb_table.dtype
    return pl.pallas_call(
        _splice_kernel,
        out_shape=jax.ShapeDtypeStruct((B, T, D), emb_table.dtype),
        grid_spec=pltpu.PrefetchScalarGridSpec(
            num_scalar_prefetch=1,
            grid=(B,),
            in_specs=[
                pl.BlockSpec((P, D), lambda b, idx: (0, 0)),   # prompt rows in VMEM
                pl.BlockSpec(memory_space=pl.ANY),             # vocab table stays in HBM
            ],
            out_specs=pl.BlockSpec((1, T, D), lambda b, idx: (b, 0, 0)),
            scratch_shapes=[pltpu.SemaphoreType.DMA],
        ),
        compiler_params=pltpu.CompilerParams(
            dimension_semantics=("parallel",)),
    )(gather_idx.astype(jnp.int32), prompt_table, emb_table)


# --------------------- index bookkeeping (glue, plain JAX) ------------------ #

def _find_markers(ids_row, S):
    nxt = jnp.concatenate([ids_row[1:], jnp.full((1,), -1, ids_row.dtype)])
    m1_mask = (ids_row == TOK_PIPE) & (nxt == TOK_Q)
    m2_mask = (ids_row == TOK_PIPE) & (nxt == TOK_DB)
    eos_mask = ids_row == TOK_EOS
    pos = jnp.arange(S)
    mid1 = jnp.argmax(m1_mask).astype(jnp.int32)                     # first "| question"
    end = jnp.max(jnp.where(eos_mask, pos, -1)).astype(jnp.int32)    # last </s>
    mid2 = jnp.where(jnp.any(m2_mask),
                     jnp.argmax(m2_mask).astype(jnp.int32), end)     # first "| database"
    # TODO(synk): degenerate cases where mid1 / end markers are absent follow the
    # PyTorch None-slicing semantics and are not reproduced here.
    return mid1, mid2, end


def _build_gather_indices(input_ids, prompt_lengths, vocab_offset):
    B, S = input_ids.shape
    Lh, Lm1, Lm2, Lt = prompt_lengths
    P = Lh + Lm1 + Lm2 + Lt
    T = P + S
    t = jnp.arange(T)

    def per_row(ids_row):
        mid1, mid2, end = _find_markers(ids_row, S)

        def tokrow(j):
            return vocab_offset + jnp.take(ids_row, jnp.clip(j, 0, S - 1))

        b1 = Lh
        b2 = Lh + mid1
        b3 = b2 + Lm1
        b4 = Lh + Lm1 + mid2
        b5 = b4 + Lm2
        b6 = Lh + Lm1 + Lm2 + end
        b7 = b6 + Lt
        row = jnp.where(t < b1, t,
              jnp.where(t < b2, tokrow(t - Lh),
              jnp.where(t < b3, Lh + (t - b2),
              jnp.where(t < b4, tokrow(t - (Lh + Lm1)),
              jnp.where(t < b5, Lh + Lm1 + (t - b4),
              jnp.where(t < b6, tokrow(t - (Lh + Lm1 + Lm2)),
              jnp.where(t < b7, Lh + Lm1 + Lm2 + (t - b6),
                        tokrow(t - P))))))))
        return row.astype(jnp.int32)

    return jax.vmap(per_row)(input_ids)


def build_inputs(input_ids, attention_mask, emb_table, prompts):
    """JAX equivalent of PromptWrapper.build_inputs (embeds + spliced prompts)."""
    Ls = tuple(int(p.shape[0]) for p in prompts)
    P = sum(Ls)
    B = input_ids.shape[0]
    # Only the 150 prompt rows are concatenated (tiny); the vocab table is NOT
    # copied/concatenated -- it is gathered in place from HBM by the kernel.
    prompt_table = jnp.concatenate(list(prompts), axis=0)            # [P, D]
    gather_idx = _build_gather_indices(input_ids, Ls, vocab_offset=P)
    inputs_embeds = splice_embeds(gather_idx, prompt_table, emb_table)
    padding = jnp.ones((B, P), attention_mask.dtype)
    attention_mask = jnp.concatenate([padding, attention_mask], axis=1)
    return inputs_embeds, attention_mask
    # TODO(synk): the wrapped PreTrainedModel call (self.model(inputs_embeds=...))
    # is an arbitrary pretrained transformer and is out of scope.


# ------------------------------ reference ---------------------------------- #

def _numpy_reference(input_ids, emb_table_np, prompts_np):
    """Direct emulation of the PyTorch build_inputs splice loop."""
    head, mid1p, mid2p, tailp = prompts_np
    outs = []
    for row in np.asarray(input_ids):
        S = len(row)
        embeds = emb_table_np[row]
        mid1 = mid2 = end = None
        for i in range(S):
            if i + 1 < S and row[i] == TOK_PIPE and row[i + 1] == TOK_Q and mid1 is None:
                mid1 = i
            elif i + 1 < S and row[i] == TOK_PIPE and row[i + 1] == TOK_DB and mid2 is None:
                mid2 = i
            elif row[i] == TOK_EOS:
                end = i
        if mid2 is None:
            mid2 = end
        outs.append(np.concatenate(
            [head, embeds[:mid1], mid1p, embeds[mid1:mid2],
             mid2p, embeds[mid2:end], tailp, embeds[end:]], axis=0))
    return np.stack(outs, axis=0)


# --------------------------------- main ------------------------------------ #

if __name__ == "__main__":
    B, S, D, V = 2, 16, 128, 5000          # batch, seq, hidden, vocab

    key = jax.random.PRNGKey(0)
    k_emb, k_h, k_m1, k_m2, k_t = jax.random.split(key, 5)

    # "model.get_input_embeddings().weight"
    emb_table = jax.random.normal(k_emb, (V, D), jnp.float32) * 0.02

    # initialize_embedding(..., initialize_from_vocab=True): rows of the table
    def init_prompt(k, plen):
        ids = jax.random.randint(k, (plen,), 0, 5000)
        return emb_table[ids]

    prompts = (init_prompt(k_h, PROMPT_LENGTHS[0]),
               init_prompt(k_m1, PROMPT_LENGTHS[1]),
               init_prompt(k_m2, PROMPT_LENGTHS[2]),
               init_prompt(k_t, PROMPT_LENGTHS[3]))

    # Deterministic input_ids following the documented prompt format:
    # ... [1820, 822] question ... [1820, 3501] database ... [1] <pad>...
    input_ids = np.zeros((B, S), dtype=np.int32)
    input_ids[0] = [5, 6, 7, TOK_PIPE, TOK_Q, 10, 11, TOK_PIPE,
                    TOK_DB, 13, 14, TOK_EOS, 0, 0, 0, 0]
    input_ids[1] = [8, 9, TOK_PIPE, TOK_Q, 21, 22, 23, TOK_PIPE,
                    TOK_DB, 25, TOK_EOS, 0, 0, 0, 0, 0]
    attention_mask = (input_ids != 0).astype(np.int32)
    attention_mask[input_ids == TOK_EOS] = 1

    input_ids_j = jnp.asarray(input_ids)
    attention_mask_j = jnp.asarray(attention_mask)

    inputs_embeds, attn = build_inputs(input_ids_j, attention_mask_j,
                                       emb_table, prompts)
    inputs_embeds = jax.block_until_ready(inputs_embeds)
    attn = jax.block_until_ready(attn)

    # Verify against a direct emulation of the PyTorch splice logic.
    ref = _numpy_reference(input_ids, np.asarray(emb_table),
                           tuple(np.asarray(p) for p in prompts))
    P = sum(PROMPT_LENGTHS)
    assert inputs_embeds.shape == (B, P + S, D)
    assert attn.shape == (B, P + S)
    np.testing.assert_allclose(np.asarray(inputs_embeds), ref, rtol=0, atol=1e-6)
    ref_attn = np.concatenate([np.ones((B, P), np.int32), attention_mask], axis=1)
    np.testing.assert_array_equal(np.asarray(attn), ref_attn)

    print("KERNEL_OK")
</pallas_src>

<mosaic_0001>
module attributes {stable_mosaic.version = 11 : i64} {
  func.func @_splice_kernel(%arg0: i32, %arg1: memref<2x166xi32, #tpu.memory_space<smem>>, %arg2: memref<150x128xf32, #tpu.memory_space<vmem>>, %arg3: memref<5000x128xf32, #tpu.memory_space<any>>, %arg4: memref<1x166x128xf32, #tpu.memory_space<vmem>>, %arg5: memref<!tpu.dma_semaphore, #tpu.memory_space<semaphore_mem>>) attributes {dimension_semantics = [#tpu.dimension_semantics<parallel>], iteration_bounds = array<i64: 2>, scalar_prefetch = 1 : i64, scratch_operands = 1 : i64, tpu.core_type = #tpu.core_type<tc>, window_params = [{pipeline_mode = #tpu.pipeline_mode<synchronous>, transform_indices = @transform_0, window_bounds = array<i64: 150, 128>}, {}, {transform_indices = @transform_2, window_bounds = array<i64: 1, 166, 128>}]} {
    %0 = arith.index_cast %arg0 : i32 to index
    %c0 = arith.constant 0 : index
    %1 = memref.load %arg1[%0, %c0] : memref<2x166xi32, #tpu.memory_space<smem>>
    %c150_i32 = arith.constant 150 : i32
    %2 = arith.subi %1, %c150_i32 : i32
    %c150_i32_0 = arith.constant 150 : i32
    %3 = arith.cmpi slt, %1, %c150_i32_0 : i32
    %4 = arith.extui %3 : i1 to i32
    %c0_i32 = arith.constant 0 : i32
    %c0_i32_1 = arith.constant 0 : i32
    %5 = arith.cmpi ne, %4, %c0_i32_1 : i32
    scf.if %5 {
      %c0_i32_111 = arith.constant 0 : i32
      %145 = tpu.memref_slice %arg2[%1, %c0_i32_111] : memref<150x128xf32, #tpu.memory_space<vmem>> -> memref<1x128xf32, #tpu.memory_space<vmem>>
      %c0_i32_112 = arith.constant 0 : i32
      %c0_i32_113 = arith.constant 0 : i32
      %146 = tpu.memref_slice %arg4[%c0_i32, %c0_i32_112, %c0_i32_113] : memref<1x166x128xf32, #tpu.memory_space<vmem>> -> memref<1x1x128xf32, #tpu.memory_space<vmem>>
      %147 = tpu.memref_squeeze %146 : memref<1x1x128xf32, #tpu.memory_space<vmem>> -> memref<1x128xf32, #tpu.memory_space<vmem>>
      tpu.enqueue_dma source(%145 : memref<1x128xf32, #tpu.memory_space<vmem>>) target(%147 : memref<1x128xf32, #tpu.memory_space<vmem>>) target_semaphore(%arg5 : memref<!tpu.dma_semaphore, #tpu.memory_space<semaphore_mem>>)
    } else {
    }
    %true = arith.constant true
    %6 = arith.xori %3, %true : i1
    %7 = arith.extui %6 : i1 to i32
    %c0_i32_2 = arith.constant 0 : i32
    %c0_i32_3 = arith.constant 0 : i32
    %8 = arith.cmpi ne, %7, %c0_i32_3 : i32
    scf.if %8 {
      %c0_i32_111 = arith.constant 0 : i32
      %145 = tpu.memref_slice %arg3[%2, %c0_i32_111] : memref<5000x128xf32, #tpu.memory_space<any>> -> memref<1x128xf32, #tpu.memory_space<any>>
      %c0_i32_112 = arith.constant 0 : i32
      %c0_i32_113 = arith.constant 0 : i32
      %146 = tpu.memref_slice %arg4[%c0_i32_2, %c0_i32_112, %c0_i32_113] : memref<1x166x128xf32, #tpu.memory_space<vmem>> -> memref<1x1x128xf32, #tpu.memory_space<vmem>>
      %147 = tpu.memref_squeeze %146 : memref<1x1x128xf32, #tpu.memory_space<vmem>> -> memref<1x128xf32, #tpu.memory_space<vmem>>
      tpu.enqueue_dma source(%145 : memref<1x128xf32, #tpu.memory_space<any>>) target(%147 : memref<1x128xf32, #tpu.memory_space<vmem>>) target_semaphore(%arg5 : memref<!tpu.dma_semaphore, #tpu.memory_space<semaphore_mem>>)
    } else {
    }
    %9 = arith.index_cast %arg0 : i32 to index
    %c1 = arith.constant 1 : index
    %10 = memref.load %arg1[%9, %c1] : memref<2x166xi32, #tpu.memory_space<smem>>
    %c150_i32_4 = arith.constant 150 : i32
    %11 = arith.subi %10, %c150_i32_4 : i32
    %c150_i32_5 = arith.constant 150 : i32
    %12 = arith.cmpi slt, %10, %c150_i32_5 : i32
    %13 = arith.extui %12 : i1 to i32
    %c0_i32_6 = arith.constant 0 : i32
    %c0_i32_7 = arith.constant 0 : i32
    %14 = arith.cmpi ne, %13, %c0_i32_7 : i32
    scf.if %14 {
      %c0_i32_111 = arith.constant 0 : i32
      %145 = tpu.memref_slice %arg2[%10, %c0_i32_111] : memref<150x128xf32, #tpu.memory_space<vmem>> -> memref<1x128xf32, #tpu.memory_space<vmem>>
      %c1_i32_112 = arith.constant 1 : i32
      %c0_i32_113 = arith.constant 0 : i32
      %146 = tpu.memref_slice %arg4[%c0_i32_6, %c1_i32_112, %c0_i32_113] : memref<1x166x128xf32, #tpu.memory_space<vmem>> -> memref<1x1x128xf32, #tpu.memory_space<vmem>>
      %147 = tpu.memref_squeeze %146 : memref<1x1x128xf32, #tpu.memory_space<vmem>> -> memref<1x128xf32, #tpu.memory_space<vmem>>
      tpu.enqueue_dma source(%145 : memref<1x128xf32, #tpu.memory_space<vmem>>) target(%147 : memref<1x128xf32, #tpu.memory_space<vmem>>) target_semaphore(%arg5 : memref<!tpu.dma_semaphore, #tpu.memory_space<semaphore_mem>>)
    } else {
    }
    %true_8 = arith.constant true
    %15 = arith.xori %12, %true_8 : i1
    %16 = arith.extui %15 : i1 to i32
    %c0_i32_9 = arith.constant 0 : i32
    %c0_i32_10 = arith.constant 0 : i32
    %17 = arith.cmpi ne, %16, %c0_i32_10 : i32
    scf.if %17 {
      %c0_i32_111 = arith.constant 0 : i32
      %145 = tpu.memref_slice %arg3[%11, %c0_i32_111] : memref<5000x128xf32, #tpu.memory_space<any>> -> memref<1x128xf32, #tpu.memory_space<any>>
      %c1_i32_112 = arith.constant 1 : i32
      %c0_i32_113 = arith.constant 0 : i32
      %146 = tpu.memref_slice %arg4[%c0_i32_9, %c1_i32_112, %c0_i32_113] : memref<1x166x128xf32, #tpu.memory_space<vmem>> -> memref<1x1x128xf32, #tpu.memory_space<vmem>>
      %147 = tpu.memref_squeeze %146 : memref<1x1x128xf32, #tpu.memory_space<vmem>> -> memref<1x128xf32, #tpu.memory_space<vmem>>
      tpu.enqueue_dma source(%145 : memref<1x128xf32, #tpu.memory_space<any>>) target(%147 : memref<1x128xf32, #tpu.memory_space<vmem>>) target_semaphore(%arg5 : memref<!tpu.dma_semaphore, #tpu.memory_space<semaphore_mem>>)
    } else {
    }
    %18 = arith.index_cast %arg0 : i32 to index
    %c2 = arith.constant 2 : index
    %19 = memref.load %arg1[%18, %c2] : memref<2x166xi32, #tpu.memory_space<smem>>
    %c150_i32_11 = arith.constant 150 : i32
    %20 = arith.subi %19, %c150_i32_11 : i32
    %c150_i32_12 = arith.constant 150 : i32
    %21 = arith.cmpi slt, %19, %c150_i32_12 : i32
    %22 = arith.extui %21 : i1 to i32
    %c0_i32_13 = arith.constant 0 : i32
    %c0_i32_14 = arith.constant 0 : i32
    %23 = arith.cmpi ne, %22, %c0_i32_14 : i32
    scf.if %23 {
      %c0_i32_111 = arith.constant 0 : i32
      %145 = tpu.memref_slice %arg2[%19, %c0_i32_111] : memref<150x128xf32, #tpu.memory_space<vmem>> -> memref<1x128xf32, #tpu.memory_space<vmem>>
      %c2_i32 = arith.constant 2 : i32
      %c0_i32_112 = arith.constant 0 : i32
      %146 = tpu.memref_slice %arg4[%c0_i32_13, %c2_i32, %c0_i32_112] : memref<1x166x128xf32, #tpu.memory_space<vmem>> -> memref<1x1x128xf32, #tpu.memory_space<vmem>>
      %147 = tpu.memref_squeeze %146 : memref<1x1x128xf32, #tpu.memory_space<vmem>> -> memref<1x128xf32, #tpu.memory_space<vmem>>
      tpu.enqueue_dma source(%145 : memref<1x128xf32, #tpu.memory_space<vmem>>) target(%147 : memref<1x128xf32, #tpu.memory_space<vmem>>) target_semaphore(%arg5 : memref<!tpu.dma_semaphore, #tpu.memory_space<semaphore_mem>>)
    } else {
    }
    %true_15 = arith.constant true
    %24 = arith.xori %21, %true_15 : i1
    %25 = arith.extui %24 : i1 to i32
    %c0_i32_16 = arith.constant 0 : i32
    %c0_i32_17 = arith.constant 0 : i32
    %26 = arith.cmpi ne, %25, %c0_i32_17 : i32
    scf.if %26 {
      %c0_i32_111 = arith.constant 0 : i32
      %145 = tpu.memref_slice %arg3[%20, %c0_i32_111] : memref<5000x128xf32, #tpu.memory_space<any>> -> memref<1x128xf32, #tpu.memory_space<any>>
      %c2_i32 = arith.constant 2 : i32
      %c0_i32_112 = arith.constant 0 : i32
      %146 = tpu.memref_slice %arg4[%c0_i32_16, %c2_i32, %c0_i32_112] : memref<1x166x128xf32, #tpu.memory_space<vmem>> -> memref<1x1x128xf32, #tpu.memory_space<vmem>>
      %147 = tpu.memref_squeeze %146 : memref<1x1x128xf32, #tpu.memory_space<vmem>> -> memref<1x128xf32, #tpu.memory_space<vmem>>
      tpu.enqueue_dma source(%145 : memref<1x128xf32, #tpu.memory_space<any>>) target(%147 : memref<1x128xf32, #tpu.memory_space<vmem>>) target_semaphore(%arg5 : memref<!tpu.dma_semaphore, #tpu.memory_space<semaphore_mem>>)
    } else {
    }
    %27 = arith.index_cast %arg0 : i32 to index
    %c3 = arith.constant 3 : index
    %28 = memref.load %arg1[%27, %c3] : memref<2x166xi32, #tpu.memory_space<smem>>
    %c150_i32_18 = arith.constant 150 : i32
    %29 = arith.subi %28, %c150_i32_18 : i32
    %c150_i32_19 = arith.constant 150 : i32
    %30 = arith.cmpi slt, %28, %c150_i32_19 : i32
    %31 = arith.extui %30 : i1 to i32
    %c0_i32_20 = arith.constant 0 : i32
    %c0_i32_21 = arith.constant 0 : i32
    %32 = arith.cmpi ne, %31, %c0_i32_21 : i32
    scf.if %32 {
      %c0_i32_111 = arith.constant 0 : i32
      %145 = tpu.memref_slice %arg2[%28, %c0_i32_111] : memref<150x128xf32, #tpu.memory_space<vmem>> -> memref<1x128xf32, #tpu.memory_space<vmem>>
      %c3_i32 = arith.constant 3 : i32
      %c0_i32_112 = arith.constant 0 : i32
      %146 = tpu.memref_slice %arg4[%c0_i32_20, %c3_i32, %c0_i32_112] : memref<1x166x128xf32, #tpu.memory_space<vmem>> -> memref<1x1x128xf32, #tpu.memory_space<vmem>>
      %147 = tpu.memref_squeeze %146 : memref<1x1x128xf32, #tpu.memory_space<vmem>> -> memref<1x128xf32, #tpu.memory_space<vmem>>
      tpu.enqueue_dma source(%145 : memref<1x128xf32, #tpu.memory_space<vmem>>) target(%147 : memref<1x128xf32, #tpu.memory_space<vmem>>) target_semaphore(%arg5 : memref<!tpu.dma_semaphore, #tpu.memory_space<semaphore_mem>>)
    } else {
    }
    %true_22 = arith.constant true
    %33 = arith.xori %30, %true_22 : i1
    %34 = arith.extui %33 : i1 to i32
    %c0_i32_23 = arith.constant 0 : i32
    %c0_i32_24 = arith.constant 0 : i32
    %35 = arith.cmpi ne, %34, %c0_i32_24 : i32
    scf.if %35 {
      %c0_i32_111 = arith.constant 0 : i32
      %145 = tpu.memref_slice %arg3[%29, %c0_i32_111] : memref<5000x128xf32, #tpu.memory_space<any>> -> memref<1x128xf32, #tpu.memory_space<any>>
      %c3_i32 = arith.constant 3 : i32
      %c0_i32_112 = arith.constant 0 : i32
      %146 = tpu.memref_slice %arg4[%c0_i32_23, %c3_i32, %c0_i32_112] : memref<1x166x128xf32, #tpu.memory_space<vmem>> -> memref<1x1x128xf32, #tpu.memory_space<vmem>>
      %147 = tpu.memref_squeeze %146 : memref<1x1x128xf32, #tpu.memory_space<vmem>> -> memref<1x128xf32, #tpu.memory_space<vmem>>
      tpu.enqueue_dma source(%145 : memref<1x128xf32, #tpu.memory_space<any>>) target(%147 : memref<1x128xf32, #tpu.memory_space<vmem>>) target_semaphore(%arg5 : memref<!tpu.dma_semaphore, #tpu.memory_space<semaphore_mem>>)
    } else {
    }
    %36 = arith.index_cast %arg0 : i32 to index
    %c4 = arith.constant 4 : index
    %37 = memref.load %arg1[%36, %c4] : memref<2x166xi32, #tpu.memory_space<smem>>
    %c150_i32_25 = arith.constant 150 : i32
    %38 = arith.subi %37, %c150_i32_25 : i32
    %c150_i32_26 = arith.constant 150 : i32
    %39 = arith.cmpi slt, %37, %c150_i32_26 : i32
    %40 = arith.extui %39 : i1 to i32
    %c0_i32_27 = arith.constant 0 : i32
    %c0_i32_28 = arith.constant 0 : i32
    %41 = arith.cmpi ne, %40, %c0_i32_28 : i32
    scf.if %41 {
      %c0_i32_111 = arith.constant 0 : i32
      %145 = tpu.memref_slice %arg2[%37, %c0_i32_111] : memref<150x128xf32, #tpu.memory_space<vmem>> -> memref<1x128xf32, #tpu.memory_space<vmem>>
      %c4_i32 = arith.constant 4 : i32
      %c0_i32_112 = arith.constant 0 : i32
      %146 = tpu.memref_slice %arg4[%c0_i32_27, %c4_i32, %c0_i32_112] : memref<1x166x128xf32, #tpu.memory_space<vmem>> -> memref<1x1x128xf32, #tpu.memory_space<vmem>>
      %147 = tpu.memref_squeeze %146 : memref<1x1x128xf32, #tpu.memory_space<vmem>> -> memref<1x128xf32, #tpu.memory_space<vmem>>
      tpu.enqueue_dma source(%145 : memref<1x128xf32, #tpu.memory_space<vmem>>) target(%147 : memref<1x128xf32, #tpu.memory_space<vmem>>) target_semaphore(%arg5 : memref<!tpu.dma_semaphore, #tpu.memory_space<semaphore_mem>>)
    } else {
    }
    %true_29 = arith.constant true
    %42 = arith.xori %39, %true_29 : i1
    %43 = arith.extui %42 : i1 to i32
    %c0_i32_30 = arith.constant 0 : i32
    %c0_i32_31 = arith.constant 0 : i32
    %44 = arith.cmpi ne, %43, %c0_i32_31 : i32
    scf.if %44 {
      %c0_i32_111 = arith.constant 0 : i32
      %145 = tpu.memref_slice %arg3[%38, %c0_i32_111] : memref<5000x128xf32, #tpu.memory_space<any>> -> memref<1x128xf32, #tpu.memory_space<any>>
      %c4_i32 = arith.constant 4 : i32
      %c0_i32_112 = arith.constant 0 : i32
      %146 = tpu.memref_slice %arg4[%c0_i32_30, %c4_i32, %c0_i32_112] : memref<1x166x128xf32, #tpu.memory_space<vmem>> -> memref<1x1x128xf32, #tpu.memory_space<vmem>>
      %147 = tpu.memref_squeeze %146 : memref<1x1x128xf32, #tpu.memory_space<vmem>> -> memref<1x128xf32, #tpu.memory_space<vmem>>
      tpu.enqueue_dma source(%145 : memref<1x128xf32, #tpu.memory_space<any>>) target(%147 : memref<1x128xf32, #tpu.memory_space<vmem>>) target_semaphore(%arg5 : memref<!tpu.dma_semaphore, #tpu.memory_space<semaphore_mem>>)
    } else {
    }
    %45 = arith.index_cast %arg0 : i32 to index
    %c5 = arith.constant 5 : index
    %46 = memref.load %arg1[%45, %c5] : memref<2x166xi32, #tpu.memory_space<smem>>
    %c150_i32_32 = arith.constant 150 : i32
    %47 = arith.subi %46, %c150_i32_32 : i32
    %c150_i32_33 = arith.constant 150 : i32
    %48 = arith.cmpi slt, %46, %c150_i32_33 : i32
    %49 = arith.extui %48 : i1 to i32
    %c0_i32_34 = arith.constant 0 : i32
    %c0_i32_35 = arith.constant 0 : i32
    %50 = arith.cmpi ne, %49, %c0_i32_35 : i32
    scf.if %50 {
      %c0_i32_111 = arith.constant 0 : i32
      %145 = tpu.memref_slice %arg2[%46, %c0_i32_111] : memref<150x128xf32, #tpu.memory_space<vmem>> -> memref<1x128xf32, #tpu.memory_space<vmem>>
      %c5_i32 = arith.constant 5 : i32
      %c0_i32_112 = arith.constant 0 : i32
      %146 = tpu.memref_slice %arg4[%c0_i32_34, %c5_i32, %c0_i32_112] : memref<1x166x128xf32, #tpu.memory_space<vmem>> -> memref<1x1x128xf32, #tpu.memory_space<vmem>>
      %147 = tpu.memref_squeeze %146 : memref<1x1x128xf32, #tpu.memory_space<vmem>> -> memref<1x128xf32, #tpu.memory_space<vmem>>
      tpu.enqueue_dma source(%145 : memref<1x128xf32, #tpu.memory_space<vmem>>) target(%147 : memref<1x128xf32, #tpu.memory_space<vmem>>) target_semaphore(%arg5 : memref<!tpu.dma_semaphore, #tpu.memory_space<semaphore_mem>>)
    } else {
    }
    %true_36 = arith.constant true
    %51 = arith.xori %48, %true_36 : i1
    %52 = arith.extui %51 : i1 to i32
    %c0_i32_37 = arith.constant 0 : i32
    %c0_i32_38 = arith.constant 0 : i32
    %53 = arith.cmpi ne, %52, %c0_i32_38 : i32
    scf.if %53 {
      %c0_i32_111 = arith.constant 0 : i32
      %145 = tpu.memref_slice %arg3[%47, %c0_i32_111] : memref<5000x128xf32, #tpu.memory_space<any>> -> memref<1x128xf32, #tpu.memory_space<any>>
      %c5_i32 = arith.constant 5 : i32
      %c0_i32_112 = arith.constant 0 : i32
      %146 = tpu.memref_slice %arg4[%c0_i32_37, %c5_i32, %c0_i32_112] : memref<1x166x128xf32, #tpu.memory_space<vmem>> -> memref<1x1x128xf32, #tpu.memory_space<vmem>>
      %147 = tpu.memref_squeeze %146 : memref<1x1x128xf32, #tpu.memory_space<vmem>> -> memref<1x128xf32, #tpu.memory_space<vmem>>
      tpu.enqueue_dma source(%145 : memref<1x128xf32, #tpu.memory_space<any>>) target(%147 : memref<1x128xf32, #tpu.memory_space<vmem>>) target_semaphore(%arg5 : memref<!tpu.dma_semaphore, #tpu.memory_space<semaphore_mem>>)
    } else {
    }
    %54 = arith.index_cast %arg0 : i32 to index
    %c6 = arith.constant 6 : index
    %55 = memref.load %arg1[%54, %c6] : memref<2x166xi32, #tpu.memory_space<smem>>
    %c150_i32_39 = arith.constant 150 : i32
    %56 = arith.subi %55, %c150_i32_39 : i32
    %c150_i32_40 = arith.constant 150 : i32
    %57 = arith.cmpi slt, %55, %c150_i32_40 : i32
    %58 = arith.extui %57 : i1 to i32
    %c0_i32_41 = arith.constant 0 : i32
    %c0_i32_42 = arith.constant 0 : i32
    %59 = arith.cmpi ne, %58, %c0_i32_42 : i32
    scf.if %59 {
      %c0_i32_111 = arith.constant 0 : i32
      %145 = tpu.memref_slice %arg2[%55, %c0_i32_111] : memref<150x128xf32, #tpu.memory_space<vmem>> -> memref<1x128xf32, #tpu.memory_space<vmem>>
      %c6_i32 = arith.constant 6 : i32
      %c0_i32_112 = arith.constant 0 : i32
      %146 = tpu.memref_slice %arg4[%c0_i32_41, %c6_i32, %c0_i32_112] : memref<1x166x128xf32, #tpu.memory_space<vmem>> -> memref<1x1x128xf32, #tpu.memory_space<vmem>>
      %147 = tpu.memref_squeeze %146 : memref<1x1x128xf32, #tpu.memory_space<vmem>> -> memref<1x128xf32, #tpu.memory_space<vmem>>
      tpu.enqueue_dma source(%145 : memref<1x128xf32, #tpu.memory_space<vmem>>) target(%147 : memref<1x128xf32, #tpu.memory_space<vmem>>) target_semaphore(%arg5 : memref<!tpu.dma_semaphore, #tpu.memory_space<semaphore_mem>>)
    } else {
    }
    %true_43 = arith.constant true
    %60 = arith.xori %57, %true_43 : i1
    %61 = arith.extui %60 : i1 to i32
    %c0_i32_44 = arith.constant 0 : i32
    %c0_i32_45 = arith.constant 0 : i32
    %62 = arith.cmpi ne, %61, %c0_i32_45 : i32
    scf.if %62 {
      %c0_i32_111 = arith.constant 0 : i32
      %145 = tpu.memref_slice %arg3[%56, %c0_i32_111] : memref<5000x128xf32, #tpu.memory_space<any>> -> memref<1x128xf32, #tpu.memory_space<any>>
      %c6_i32 = arith.constant 6 : i32
      %c0_i32_112 = arith.constant 0 : i32
      %146 = tpu.memref_slice %arg4[%c0_i32_44, %c6_i32, %c0_i32_112] : memref<1x166x128xf32, #tpu.memory_space<vmem>> -> memref<1x1x128xf32, #tpu.memory_space<vmem>>
      %147 = tpu.memref_squeeze %146 : memref<1x1x128xf32, #tpu.memory_space<vmem>> -> memref<1x128xf32, #tpu.memory_space<vmem>>
      tpu.enqueue_dma source(%145 : memref<1x128xf32, #tpu.memory_space<any>>) target(%147 : memref<1x128xf32, #tpu.memory_space<vmem>>) target_semaphore(%arg5 : memref<!tpu.dma_semaphore, #tpu.memory_space<semaphore_mem>>)
    } else {
    }
    %63 = arith.index_cast %arg0 : i32 to index
    %c7 = arith.constant 7 : index
    %64 = memref.load %arg1[%63, %c7] : memref<2x166xi32, #tpu.memory_space<smem>>
    %c150_i32_46 = arith.constant 150 : i32
    %65 = arith.subi %64, %c150_i32_46 : i32
    %c150_i32_47 = arith.constant 150 : i32
    %66 = arith.cmpi slt, %64, %c150_i32_47 : i32
    %67 = arith.extui %66 : i1 to i32
    %c0_i32_48 = arith.constant 0 : i32
    %c0_i32_49 = arith.constant 0 : i32
    %68 = arith.cmpi ne, %67, %c0_i32_49 : i32
    scf.if %68 {
      %c0_i32_111 = arith.constant 0 : i32
      %145 = tpu.memref_slice %arg2[%64, %c0_i32_111] : memref<150x128xf32, #tpu.memory_space<vmem>> -> memref<1x128xf32, #tpu.memory_space<vmem>>
      %c7_i32 = arith.constant 7 : i32
      %c0_i32_112 = arith.constant 0 : i32
      %146 = tpu.memref_slice %arg4[%c0_i32_48, %c7_i32, %c0_i32_112] : memref<1x166x128xf32, #tpu.memory_space<vmem>> -> memref<1x1x128xf32, #tpu.memory_space<vmem>>
      %147 = tpu.memref_squeeze %146 : memref<1x1x128xf32, #tpu.memory_space<vmem>> -> memref<1x128xf32, #tpu.memory_space<vmem>>
      tpu.enqueue_dma source(%145 : memref<1x128xf32, #tpu.memory_space<vmem>>) target(%147 : memref<1x128xf32, #tpu.memory_space<vmem>>) target_semaphore(%arg5 : memref<!tpu.dma_semaphore, #tpu.memory_space<semaphore_mem>>)
    } else {
    }
    %true_50 = arith.constant true
    %69 = arith.xori %66, %true_50 : i1
    %70 = arith.extui %69 : i1 to i32
    %c0_i32_51 = arith.constant 0 : i32
    %c0_i32_52 = arith.constant 0 : i32
    %71 = arith.cmpi ne, %70, %c0_i32_52 : i32
    scf.if %71 {
      %c0_i32_111 = arith.constant 0 : i32
      %145 = tpu.memref_slice %arg3[%65, %c0_i32_111] : memref<5000x128xf32, #tpu.memory_space<any>> -> memref<1x128xf32, #tpu.memory_space<any>>
      %c7_i32 = arith.constant 7 : i32
      %c0_i32_112 = arith.constant 0 : i32
      %146 = tpu.memref_slice %arg4[%c0_i32_51, %c7_i32, %c0_i32_112] : memref<1x166x128xf32, #tpu.memory_space<vmem>> -> memref<1x1x128xf32, #tpu.memory_space<vmem>>
      %147 = tpu.memref_squeeze %146 : memref<1x1x128xf32, #tpu.memory_space<vmem>> -> memref<1x128xf32, #tpu.memory_space<vmem>>
      tpu.enqueue_dma source(%145 : memref<1x128xf32, #tpu.memory_space<any>>) target(%147 : memref<1x128xf32, #tpu.memory_space<vmem>>) target_semaphore(%arg5 : memref<!tpu.dma_semaphore, #tpu.memory_space<semaphore_mem>>)
    } else {
    }
    %72 = arith.index_cast %arg0 : i32 to index
    %c8 = arith.constant 8 : index
    %73 = memref.load %arg1[%72, %c8] : memref<2x166xi32, #tpu.memory_space<smem>>
    %c150_i32_53 = arith.constant 150 : i32
    %74 = arith.subi %73, %c150_i32_53 : i32
    %c150_i32_54 = arith.constant 150 : i32
    %75 = arith.cmpi slt, %73, %c150_i32_54 : i32
    %76 = arith.extui %75 : i1 to i32
    %c0_i32_55 = arith.constant 0 : i32
    %c0_i32_56 = arith.constant 0 : i32
    %77 = arith.cmpi ne, %76, %c0_i32_56 : i32
    scf.if %77 {
      %c0_i32_111 = arith.constant 0 : i32
      %145 = tpu.memref_slice %arg2[%73, %c0_i32_111] : memref<150x128xf32, #tpu.memory_space<vmem>> -> memref<1x128xf32, #tpu.memory_space<vmem>>
      %c8_i32 = arith.constant 8 : i32
      %c0_i32_112 = arith.constant 0 : i32
      %146 = tpu.memref_slice %arg4[%c0_i32_55, %c8_i32, %c0_i32_112] : memref<1x166x128xf32, #tpu.memory_space<vmem>> -> memref<1x1x128xf32, #tpu.memory_space<vmem>>
      %147 = tpu.memref_squeeze %146 : memref<1x1x128xf32, #tpu.memory_space<vmem>> -> memref<1x128xf32, #tpu.memory_space<vmem>>
      tpu.enqueue_dma source(%145 : memref<1x128xf32, #tpu.memory_space<vmem>>) target(%147 : memref<1x128xf32, #tpu.memory_space<vmem>>) target_semaphore(%arg5 : memref<!tpu.dma_semaphore, #tpu.memory_space<semaphore_mem>>)
    } else {
    }
    %true_57 = arith.constant true
    %78 = arith.xori %75, %true_57 : i1
    %79 = arith.extui %78 : i1 to i32
    %c0_i32_58 = arith.constant 0 : i32
    %c0_i32_59 = arith.constant 0 : i32
    %80 = arith.cmpi ne, %79, %c0_i32_59 : i32
    scf.if %80 {
      %c0_i32_111 = arith.constant 0 : i32
      %145 = tpu.memref_slice %arg3[%74, %c0_i32_111] : memref<5000x128xf32, #tpu.memory_space<any>> -> memref<1x128xf32, #tpu.memory_space<any>>
      %c8_i32 = arith.constant 8 : i32
      %c0_i32_112 = arith.constant 0 : i32
      %146 = tpu.memref_slice %arg4[%c0_i32_58, %c8_i32, %c0_i32_112] : memref<1x166x128xf32, #tpu.memory_space<vmem>> -> memref<1x1x128xf32, #tpu.memory_space<vmem>>
      %147 = tpu.memref_squeeze %146 : memref<1x1x128xf32, #tpu.memory_space<vmem>> -> memref<1x128xf32, #tpu.memory_space<vmem>>
      tpu.enqueue_dma source(%145 : memref<1x128xf32, #tpu.memory_space<any>>) target(%147 : memref<1x128xf32, #tpu.memory_space<vmem>>) target_semaphore(%arg5 : memref<!tpu.dma_semaphore, #tpu.memory_space<semaphore_mem>>)
    } else {
    }
    %81 = arith.index_cast %arg0 : i32 to index
    %c9 = arith.constant 9 : index
    %82 = memref.load %arg1[%81, %c9] : memref<2x166xi32, #tpu.memory_space<smem>>
    %c150_i32_60 = arith.constant 150 : i32
    %83 = arith.subi %82, %c150_i32_60 : i32
    %c150_i32_61 = arith.constant 150 : i32
    %84 = arith.cmpi slt, %82, %c150_i32_61 : i32
    %85 = arith.extui %84 : i1 to i32
    %c0_i32_62 = arith.constant 0 : i32
    %c0_i32_63 = arith.constant 0 : i32
    %86 = arith.cmpi ne, %85, %c0_i32_63 : i32
    scf.if %86 {
      %c0_i32_111 = arith.constant 0 : i32
      %145 = tpu.memref_slice %arg2[%82, %c0_i32_111] : memref<150x128xf32, #tpu.memory_space<vmem>> -> memref<1x128xf32, #tpu.memory_space<vmem>>
      %c9_i32 = arith.constant 9 : i32
      %c0_i32_112 = arith.constant 0 : i32
      %146 = tpu.memref_slice %arg4[%c0_i32_62, %c9_i32, %c0_i32_112] : memref<1x166x128xf32, #tpu.memory_space<vmem>> -> memref<1x1x128xf32, #tpu.memory_space<vmem>>
      %147 = tpu.memref_squeeze %146 : memref<1x1x128xf32, #tpu.memory_space<vmem>> -> memref<1x128xf32, #tpu.memory_space<vmem>>
      tpu.enqueue_dma source(%145 : memref<1x128xf32, #tpu.memory_space<vmem>>) target(%147 : memref<1x128xf32, #tpu.memory_space<vmem>>) target_semaphore(%arg5 : memref<!tpu.dma_semaphore, #tpu.memory_space<semaphore_mem>>)
    } else {
    }
    %true_64 = arith.constant true
    %87 = arith.xori %84, %true_64 : i1
    %88 = arith.extui %87 : i1 to i32
    %c0_i32_65 = arith.constant 0 : i32
    %c0_i32_66 = arith.constant 0 : i32
    %89 = arith.cmpi ne, %88, %c0_i32_66 : i32
    scf.if %89 {
      %c0_i32_111 = arith.constant 0 : i32
      %145 = tpu.memref_slice %arg3[%83, %c0_i32_111] : memref<5000x128xf32, #tpu.memory_space<any>> -> memref<1x128xf32, #tpu.memory_space<any>>
      %c9_i32 = arith.constant 9 : i32
      %c0_i32_112 = arith.constant 0 : i32
      %146 = tpu.memref_slice %arg4[%c0_i32_65, %c9_i32, %c0_i32_112] : memref<1x166x128xf32, #tpu.memory_space<vmem>> -> memref<1x1x128xf32, #tpu.memory_space<vmem>>
      %147 = tpu.memref_squeeze %146 : memref<1x1x128xf32, #tpu.memory_space<vmem>> -> memref<1x128xf32, #tpu.memory_space<vmem>>
      tpu.enqueue_dma source(%145 : memref<1x128xf32, #tpu.memory_space<any>>) target(%147 : memref<1x128xf32, #tpu.memory_space<vmem>>) target_semaphore(%arg5 : memref<!tpu.dma_semaphore, #tpu.memory_space<semaphore_mem>>)
    } else {
    }
    %90 = arith.index_cast %arg0 : i32 to index
    %c10 = arith.constant 10 : index
    %91 = memref.load %arg1[%90, %c10] : memref<2x166xi32, #tpu.memory_space<smem>>
    %c150_i32_67 = arith.constant 150 : i32
    %92 = arith.subi %91, %c150_i32_67 : i32
    %c150_i32_68 = arith.constant 150 : i32
    %93 = arith.cmpi slt, %91, %c150_i32_68 : i32
    %94 = arith.extui %93 : i1 to i32
    %c0_i32_69 = arith.constant 0 : i32
    %c0_i32_70 = arith.constant 0 : i32
    %95 = arith.cmpi ne, %94, %c0_i32_70 : i32
    scf.if %95 {
      %c0_i32_111 = arith.constant 0 : i32
      %145 = tpu.memref_slice %arg2[%91, %c0_i32_111] : memref<150x128xf32, #tpu.memory_space<vmem>> -> memref<1x128xf32, #tpu.memory_space<vmem>>
      %c10_i32 = arith.constant 10 : i32
      %c0_i32_112 = arith.constant 0 : i32
      %146 = tpu.memref_slice %arg4[%c0_i32_69, %c10_i32, %c0_i32_112] : memref<1x166x128xf32, #tpu.memory_space<vmem>> -> memref<1x1x128xf32, #tpu.memory_space<vmem>>
      %147 = tpu.memref_squeeze %146 : memref<1x1x128xf32, #tpu.memory_space<vmem>> -> memref<1x128xf32, #tpu.memory_space<vmem>>
      tpu.enqueue_dma source(%145 : memref<1x128xf32, #tpu.memory_space<vmem>>) target(%147 : memref<1x128xf32, #tpu.memory_space<vmem>>) target_semaphore(%arg5 : memref<!tpu.dma_semaphore, #tpu.memory_space<semaphore_mem>>)
    } else {
    }
    %true_71 = arith.constant true
    %96 = arith.xori %93, %true_71 : i1
    %97 = arith.extui %96 : i1 to i32
    %c0_i32_72 = arith.constant 0 : i32
    %c0_i32_73 = arith.constant 0 : i32
    %98 = arith.cmpi ne, %97, %c0_i32_73 : i32
    scf.if %98 {
      %c0_i32_111 = arith.constant 0 : i32
      %145 = tpu.memref_slice %arg3[%92, %c0_i32_111] : memref<5000x128xf32, #tpu.memory_space<any>> -> memref<1x128xf32, #tpu.memory_space<any>>
      %c10_i32 = arith.constant 10 : i32
      %c0_i32_112 = arith.constant 0 : i32
      %146 = tpu.memref_slice %arg4[%c0_i32_72, %c10_i32, %c0_i32_112] : memref<1x166x128xf32, #tpu.memory_space<vmem>> -> memref<1x1x128xf32, #tpu.memory_space<vmem>>
      %147 = tpu.memref_squeeze %146 : memref<1x1x128xf32, #tpu.memory_space<vmem>> -> memref<1x128xf32, #tpu.memory_space<vmem>>
      tpu.enqueue_dma source(%145 : memref<1x128xf32, #tpu.memory_space<any>>) target(%147 : memref<1x128xf32, #tpu.memory_space<vmem>>) target_semaphore(%arg5 : memref<!tpu.dma_semaphore, #tpu.memory_space<semaphore_mem>>)
    } else {
    }
    %99 = arith.index_cast %arg0 : i32 to index
    %c11 = arith.constant 11 : index
    %100 = memref.load %arg1[%99, %c11] : memref<2x166xi32, #tpu.memory_space<smem>>
    %c150_i32_74 = arith.constant 150 : i32
    %101 = arith.subi %100, %c150_i32_74 : i32
    %c150_i32_75 = arith.constant 150 : i32
    %102 = arith.cmpi slt, %100, %c150_i32_75 : i32
    %103 = arith.extui %102 : i1 to i32
    %c0_i32_76 = arith.constant 0 : i32
    %c0_i32_77 = arith.constant 0 : i32
    %104 = arith.cmpi ne, %103, %c0_i32_77 : i32
    scf.if %104 {
      %c0_i32_111 = arith.constant 0 : i32
      %145 = tpu.memref_slice %arg2[%100, %c0_i32_111] : memref<150x128xf32, #tpu.memory_space<vmem>> -> memref<1x128xf32, #tpu.memory_space<vmem>>
      %c11_i32 = arith.constant 11 : i32
      %c0_i32_112 = arith.constant 0 : i32
      %146 = tpu.memref_slice %arg4[%c0_i32_76, %c11_i32, %c0_i32_112] : memref<1x166x128xf32, #tpu.memory_space<vmem>> -> memref<1x1x128xf32, #tpu.memory_space<vmem>>
      %147 = tpu.memref_squeeze %146 : memref<1x1x128xf32, #tpu.memory_space<vmem>> -> memref<1x128xf32, #tpu.memory_space<vmem>>
      tpu.enqueue_dma source(%145 : memref<1x128xf32, #tpu.memory_space<vmem>>) target(%147 : memref<1x128xf32, #tpu.memory_space<vmem>>) target_semaphore(%arg5 : memref<!tpu.dma_semaphore, #tpu.memory_space<semaphore_mem>>)
    } else {
    }
    %true_78 = arith.constant true
    %105 = arith.xori %102, %true_78 : i1
    %106 = arith.extui %105 : i1 to i32
    %c0_i32_79 = arith.constant 0 : i32
    %c0_i32_80 = arith.constant 0 : i32
    %107 = arith.cmpi ne, %106, %c0_i32_80 : i32
    scf.if %107 {
      %c0_i32_111 = arith.constant 0 : i32
      %145 = tpu.memref_slice %arg3[%101, %c0_i32_111] : memref<5000x128xf32, #tpu.memory_space<any>> -> memref<1x128xf32, #tpu.memory_space<any>>
      %c11_i32 = arith.constant 11 : i32
      %c0_i32_112 = arith.constant 0 : i32
      %146 = tpu.memref_slice %arg4[%c0_i32_79, %c11_i32, %c0_i32_112] : memref<1x166x128xf32, #tpu.memory_space<vmem>> -> memref<1x1x128xf32, #tpu.memory_space<vmem>>
      %147 = tpu.memref_squeeze %146 : memref<1x1x128xf32, #tpu.memory_space<vmem>> -> memref<1x128xf32, #tpu.memory_space<vmem>>
      tpu.enqueue_dma source(%145 : memref<1x128xf32, #tpu.memory_space<any>>) target(%147 : memref<1x128xf32, #tpu.memory_space<vmem>>) target_semaphore(%arg5 : memref<!tpu.dma_semaphore, #tpu.memory_space<semaphore_mem>>)
    } else {
    }
    %108 = arith.index_cast %arg0 : i32 to index
    %c12 = arith.constant 12 : index
    %109 = memref.load %arg1[%108, %c12] : memref<2x166xi32, #tpu.memory_space<smem>>
    %c150_i32_81 = arith.constant 150 : i32
    %110 = arith.subi %109, %c150_i32_81 : i32
    %c150_i32_82 = arith.constant 150 : i32
    %111 = arith.cmpi slt, %109, %c150_i32_82 : i32
    %112 = arith.extui %111 : i1 to i32
    %c0_i32_83 = arith.constant 0 : i32
    %c0_i32_84 = arith.constant 0 : i32
    %113 = arith.cmpi ne, %112, %c0_i32_84 : i32
    scf.if %113 {
      %c0_i32_111 = arith.constant 0 : i32
      %145 = tpu.memref_slice %arg2[%109, %c0_i32_111] : memref<150x128xf32, #tpu.memory_space<vmem>> -> memref<1x128xf32, #tpu.memory_space<vmem>>
      %c12_i32 = arith.constant 12 : i32
      %c0_i32_112 = arith.constant 0 : i32
      %146 = tpu.memref_slice %arg4[%c0_i32_83, %c12_i32, %c0_i32_112] : memref<1x166x128xf32, #tpu.memory_space<vmem>> -> memref<1x1x128xf32, #tpu.memory_space<vmem>>
      %147 = tpu.memref_squeeze %146 : memref<1x1x128xf32, #tpu.memory_space<vmem>> -> memref<1x128xf32, #tpu.memory_space<vmem>>
      tpu.enqueue_dma source(%145 : memref<1x128xf32, #tpu.memory_space<vmem>>) target(%147 : memref<1x128xf32, #tpu.memory_space<vmem>>) target_semaphore(%arg5 : memref<!tpu.dma_semaphore, #tpu.memory_space<semaphore_mem>>)
    } else {
    }
    %true_85 = arith.constant true
    %114 = arith.xori %111, %true_85 : i1
    %115 = arith.extui %114 : i1 to i32
    %c0_i32_86 = arith.constant 0 : i32
    %c0_i32_87 = arith.constant 0 : i32
    %116 = arith.cmpi ne, %115, %c0_i32_87 : i32
    scf.if %116 {
      %c0_i32_111 = arith.constant 0 : i32
      %145 = tpu.memref_slice %arg3[%110, %c0_i32_111] : memref<5000x128xf32, #tpu.memory_space<any>> -> memref<1x128xf32, #tpu.memory_space<any>>
      %c12_i32 = arith.constant 12 : i32
      %c0_i32_112 = arith.constant 0 : i32
      %146 = tpu.memref_slice %arg4[%c0_i32_86, %c12_i32, %c0_i32_112] : memref<1x166x128xf32, #tpu.memory_space<vmem>> -> memref<1x1x128xf32, #tpu.memory_space<vmem>>
      %147 = tpu.memref_squeeze %146 : memref<1x1x128xf32, #tpu.memory_space<vmem>> -> memref<1x128xf32, #tpu.memory_space<vmem>>
      tpu.enqueue_dma source(%145 : memref<1x128xf32, #tpu.memory_space<any>>) target(%147 : memref<1x128xf32, #tpu.memory_space<vmem>>) target_semaphore(%arg5 : memref<!tpu.dma_semaphore, #tpu.memory_space<semaphore_mem>>)
    } else {
    }
    %117 = arith.index_cast %arg0 : i32 to index
    %c13 = arith.constant 13 : index
    %118 = memref.load %arg1[%117, %c13] : memref<2x166xi32, #tpu.memory_space<smem>>
    %c150_i32_88 = arith.constant 150 : i32
    %119 = arith.subi %118, %c150_i32_88 : i32
    %c150_i32_89 = arith.constant 150 : i32
    %120 = arith.cmpi slt, %118, %c150_i32_89 : i32
    %121 = arith.extui %120 : i1 to i32
    %c0_i32_90 = arith.constant 0 : i32
    %c0_i32_91 = arith.constant 0 : i32
    %122 = arith.cmpi ne, %121, %c0_i32_91 : i32
    scf.if %122 {
      %c0_i32_111 = arith.constant 0 : i32
      %145 = tpu.memref_slice %arg2[%118, %c0_i32_111] : memref<150x128xf32, #tpu.memory_space<vmem>> -> memref<1x128xf32, #tpu.memory_space<vmem>>
      %c13_i32 = arith.constant 13 : i32
      %c0_i32_112 = arith.constant 0 : i32
      %146 = tpu.memref_slice %arg4[%c0_i32_90, %c13_i32, %c0_i32_112] : memref<1x166x128xf32, #tpu.memory_space<vmem>> -> memref<1x1x128xf32, #tpu.memory_space<vmem>>
      %147 = tpu.memref_squeeze %146 : memref<1x1x128xf32, #tpu.memory_space<vmem>> -> memref<1x128xf32, #tpu.memory_space<vmem>>
      tpu.enqueue_dma source(%145 : memref<1x128xf32, #tpu.memory_space<vmem>>) target(%147 : memref<1x128xf32, #tpu.memory_space<vmem>>) target_semaphore(%arg5 : memref<!tpu.dma_semaphore, #tpu.memory_space<semaphore_mem>>)
    } else {
    }
    %true_92 = arith.constant true
    %123 = arith.xori %120, %true_92 : i1
    %124 = arith.extui %123 : i1 to i32
    %c0_i32_93 = arith.constant 0 : i32
    %c0_i32_94 = arith.constant 0 : i32
    %125 = arith.cmpi ne, %124, %c0_i32_94 : i32
    scf.if %125 {
      %c0_i32_111 = arith.constant 0 : i32
      %145 = tpu.memref_slice %arg3[%119, %c0_i32_111] : memref<5000x128xf32, #tpu.memory_space<any>> -> memref<1x128xf32, #tpu.memory_space<any>>
      %c13_i32 = arith.constant 13 : i32
      %c0_i32_112 = arith.constant 0 : i32
      %146 = tpu.memref_slice %arg4[%c0_i32_93, %c13_i32, %c0_i32_112] : memref<1x166x128xf32, #tpu.memory_space<vmem>> -> memref<1x1x128xf32, #tpu.memory_space<vmem>>
      %147 = tpu.memref_squeeze %146 : memref<1x1x128xf32, #tpu.memory_space<vmem>> -> memref<1x128xf32, #tpu.memory_space<vmem>>
      tpu.enqueue_dma source(%145 : memref<1x128xf32, #tpu.memory_space<any>>) target(%147 : memref<1x128xf32, #tpu.memory_space<vmem>>) target_semaphore(%arg5 : memref<!tpu.dma_semaphore, #tpu.memory_space<semaphore_mem>>)
    } else {
    }
    %126 = arith.index_cast %arg0 : i32 to index
    %c14 = arith.constant 14 : index
    %127 = memref.load %arg1[%126, %c14] : memref<2x166xi32, #tpu.memory_space<smem>>
    %c150_i32_95 = arith.constant 150 : i32
    %128 = arith.subi %127, %c150_i32_95 : i32
    %c150_i32_96 = arith.constant 150 : i32
    %129 = arith.cmpi slt, %127, %c150_i32_96 : i32
    %130 = arith.extui %129 : i1 to i32
    %c0_i32_97 = arith.constant 0 : i32
    %c0_i32_98 = arith.constant 0 : i32
    %131 = arith.cmpi ne, %130, %c0_i32_98 : i32
    scf.if %131 {
      %c0_i32_111 = arith.constant 0 : i32
      %145 = tpu.memref_slice %arg2[%127, %c0_i32_111] : memref<150x128xf32, #tpu.memory_space<vmem>> -> memref<1x128xf32, #tpu.memory_space<vmem>>
      %c14_i32 = arith.constant 14 : i32
      %c0_i32_112 = arith.constant 0 : i32
      %146 = tpu.memref_slice %arg4[%c0_i32_97, %c14_i32, %c0_i32_112] : memref<1x166x128xf32, #tpu.memory_space<vmem>> -> memref<1x1x128xf32, #tpu.memory_space<vmem>>
      %147 = tpu.memref_squeeze %146 : memref<1x1x128xf32, #tpu.memory_space<vmem>> -> memref<1x128xf32, #tpu.memory_space<vmem>>
      tpu.enqueue_dma source(%145 : memref<1x128xf32, #tpu.memory_space<vmem>>) target(%147 : memref<1x128xf32, #tpu.memory_space<vmem>>) target_semaphore(%arg5 : memref<!tpu.dma_semaphore, #tpu.memory_space<semaphore_mem>>)
    } else {
    }
    %true_99 = arith.constant true
    %132 = arith.xori %129, %true_99 : i1
    %133 = arith.extui %132 : i1 to i32
    %c0_i32_100 = arith.constant 0 : i32
    %c0_i32_101 = arith.constant 0 : i32
    %134 = arith.cmpi ne, %133, %c0_i32_101 : i32
    scf.if %134 {
      %c0_i32_111 = arith.constant 0 : i32
      %145 = tpu.memref_slice %arg3[%128, %c0_i32_111] : memref<5000x128xf32, #tpu.memory_space<any>> -> memref<1x128xf32, #tpu.memory_space<any>>
      %c14_i32 = arith.constant 14 : i32
      %c0_i32_112 = arith.constant 0 : i32
      %146 = tpu.memref_slice %arg4[%c0_i32_100, %c14_i32, %c0_i32_112] : memref<1x166x128xf32, #tpu.memory_space<vmem>> -> memref<1x1x128xf32, #tpu.memory_space<vmem>>
      %147 = tpu.memref_squeeze %146 : memref<1x1x128xf32, #tpu.memory_space<vmem>> -> memref<1x128xf32, #tpu.memory_space<vmem>>
      tpu.enqueue_dma source(%145 : memref<1x128xf32, #tpu.memory_space<any>>) target(%147 : memref<1x128xf32, #tpu.memory_space<vmem>>) target_semaphore(%arg5 : memref<!tpu.dma_semaphore, #tpu.memory_space<semaphore_mem>>)
    } else {
    }
    %135 = arith.index_cast %arg0 : i32 to index
    %c15 = arith.constant 15 : index
    %136 = memref.load %arg1[%135, %c15] : memref<2x166xi32, #tpu.memory_space<smem>>
    %c150_i32_102 = arith.constant 150 : i32
    %137 = arith.subi %136, %c150_i32_102 : i32
    %c150_i32_103 = arith.constant 150 : i32
    %138 = arith.cmpi slt, %136, %c150_i32_103 : i32
    %139 = arith.extui %138 : i1 to i32
    %c0_i32_104 = arith.constant 0 : i32
    %c0_i32_105 = arith.constant 0 : i32
    %140 = arith.cmpi ne, %139, %c0_i32_105 : i32
    scf.if %140 {
      %c0_i32_111 = arith.constant 0 : i32
      %145 = tpu.memref_slice %arg2[%136, %c0_i32_111] : memref<150x128xf32, #tpu.memory_space<vmem>> -> memref<1x128xf32, #tpu.memory_space<vmem>>
      %c15_i32 = arith.constant 15 : i32
      %c0_i32_112 = arith.constant 0 : i32
      %146 = tpu.memref_slice %arg4[%c0_i32_104, %c15_i32, %c0_i32_112] : memref<1x166x128xf32, #tpu.memory_space<vmem>> -> memref<1x1x128xf32, #tpu.memory_space<vmem>>
      %147 = tpu.memref_squeeze %146 : memref<1x1x128xf32, #tpu.memory_space<vmem>> -> memref<1x128xf32, #tpu.memory_space<vmem>>
      tpu.enqueue_dma source(%145 : memref<1x128xf32, #tpu.memory_space<vmem>>) target(%147 : memref<1x128xf32, #tpu.memory_space<vmem>>) target_semaphore(%arg5 : memref<!tpu.dma_semaphore, #tpu.memory_space<semaphore_mem>>)
    } else {
    }
    %true_106 = arith.constant true
    %141 = arith.xori %138, %true_106 : i1
    %142 = arith.extui %141 : i1 to i32
    %c0_i32_107 = arith.constant 0 : i32
    %c0_i32_108 = arith.constant 0 : i32
    %143 = arith.cmpi ne, %142, %c0_i32_108 : i32
    scf.if %143 {
      %c0_i32_111 = arith.constant 0 : i32
      %145 = tpu.memref_slice %arg3[%137, %c0_i32_111] : memref<5000x128xf32, #tpu.memory_space<any>> -> memref<1x128xf32, #tpu.memory_space<any>>
      %c15_i32 = arith.constant 15 : i32
      %c0_i32_112 = arith.constant 0 : i32
      %146 = tpu.memref_slice %arg4[%c0_i32_107, %c15_i32, %c0_i32_112] : memref<1x166x128xf32, #tpu.memory_space<vmem>> -> memref<1x1x128xf32, #tpu.memory_space<vmem>>
      %147 = tpu.memref_squeeze %146 : memref<1x1x128xf32, #tpu.memory_space<vmem>> -> memref<1x128xf32, #tpu.memory_space<vmem>>
      tpu.enqueue_dma source(%145 : memref<1x128xf32, #tpu.memory_space<any>>) target(%147 : memref<1x128xf32, #tpu.memory_space<vmem>>) target_semaphore(%arg5 : memref<!tpu.dma_semaphore, #tpu.memory_space<semaphore_mem>>)
    } else {
    }
    %c0_i32_109 = arith.constant 0 : i32
    %c166_i32 = arith.constant 166 : i32
    %144 = arith.addi %c0_i32_109, %c166_i32 : i32
    %c1_i32 = arith.constant 1 : i32
    scf.for %arg6 = %c0_i32_109 to %144 step %c1_i32  : i32 {
      %145 = arith.index_cast %arg0 : i32 to index
      %146 = arith.index_cast %arg6 : i32 to index
      %147 = memref.load %arg1[%145, %146] : memref<2x166xi32, #tpu.memory_space<smem>>
      %c150_i32_111 = arith.constant 150 : i32
      %148 = arith.subi %147, %c150_i32_111 : i32
      %c150_i32_112 = arith.constant 150 : i32
      %149 = arith.cmpi slt, %147, %c150_i32_112 : i32
      %150 = arith.extui %149 : i1 to i32
      %c0_i32_113 = arith.constant 0 : i32
      %c0_i32_114 = arith.constant 0 : i32
      %151 = arith.cmpi ne, %150, %c0_i32_114 : i32
      scf.if %151 {
        %c0_i32_120 = arith.constant 0 : i32
        %159 = tpu.memref_slice %arg2[%147, %c0_i32_120] : memref<150x128xf32, #tpu.memory_space<vmem>> -> memref<1x128xf32, #tpu.memory_space<vmem>>
        %c0_i32_121 = arith.constant 0 : i32
        %160 = tpu.memref_slice %arg4[%c0_i32_113, %arg6, %c0_i32_121] : memref<1x166x128xf32, #tpu.memory_space<vmem>> -> memref<1x1x128xf32, #tpu.memory_space<vmem>>
        %161 = tpu.memref_squeeze %160 : memref<1x1x128xf32, #tpu.memory_space<vmem>> -> memref<1x128xf32, #tpu.memory_space<vmem>>
        tpu.wait_dma2 semaphore(%arg5 : memref<!tpu.dma_semaphore, #tpu.memory_space<semaphore_mem>>) src(%159 : memref<1x128xf32, #tpu.memory_space<vmem>>) dst(%161 : memref<1x128xf32, #tpu.memory_space<vmem>>)
      } else {
      }
      %true_115 = arith.constant true
      %152 = arith.xori %149, %true_115 : i1
      %153 = arith.extui %152 : i1 to i32
      %c0_i32_116 = arith.constant 0 : i32
      %c0_i32_117 = arith.constant 0 : i32
      %154 = arith.cmpi ne, %153, %c0_i32_117 : i32
      scf.if %154 {
        %c0_i32_120 = arith.constant 0 : i32
        %159 = tpu.memref_slice %arg3[%148, %c0_i32_120] : memref<5000x128xf32, #tpu.memory_space<any>> -> memref<1x128xf32, #tpu.memory_space<any>>
        %c0_i32_121 = arith.constant 0 : i32
        %160 = tpu.memref_slice %arg4[%c0_i32_116, %arg6, %c0_i32_121] : memref<1x166x128xf32, #tpu.memory_space<vmem>> -> memref<1x1x128xf32, #tpu.memory_space<vmem>>
        %161 = tpu.memref_squeeze %160 : memref<1x1x128xf32, #tpu.memory_space<vmem>> -> memref<1x128xf32, #tpu.memory_space<vmem>>
        tpu.wait_dma2 semaphore(%arg5 : memref<!tpu.dma_semaphore, #tpu.memory_space<semaphore_mem>>) src(%159 : memref<1x128xf32, #tpu.memory_space<any>>) dst(%161 : memref<1x128xf32, #tpu.memory_space<vmem>>)
      } else {
      }
      %c16_i32 = arith.constant 16 : i32
      %155 = arith.addi %arg6, %c16_i32 : i32
      %c166_i32_118 = arith.constant 166 : i32
      %156 = arith.cmpi slt, %155, %c166_i32_118 : i32
      %157 = arith.extui %156 : i1 to i32
      %c0_i32_119 = arith.constant 0 : i32
      %158 = arith.cmpi ne, %157, %c0_i32_119 : i32
      scf.if %158 {
        %c16_i32_120 = arith.constant 16 : i32
        %159 = arith.addi %arg6, %c16_i32_120 : i32
        %160 = arith.index_cast %arg0 : i32 to index
        %161 = arith.index_cast %159 : i32 to index
        %162 = memref.load %arg1[%160, %161] : memref<2x166xi32, #tpu.memory_space<smem>>
        %c150_i32_121 = arith.constant 150 : i32
        %163 = arith.subi %162, %c150_i32_121 : i32
        %c150_i32_122 = arith.constant 150 : i32
        %164 = arith.cmpi slt, %162, %c150_i32_122 : i32
        %165 = arith.extui %164 : i1 to i32
        %c0_i32_123 = arith.constant 0 : i32
        %c0_i32_124 = arith.constant 0 : i32
        %166 = arith.cmpi ne, %165, %c0_i32_124 : i32
        scf.if %166 {
          %c0_i32_128 = arith.constant 0 : i32
          %170 = tpu.memref_slice %arg2[%162, %c0_i32_128] : memref<150x128xf32, #tpu.memory_space<vmem>> -> memref<1x128xf32, #tpu.memory_space<vmem>>
          %c0_i32_129 = arith.constant 0 : i32
          %171 = tpu.memref_slice %arg4[%c0_i32_123, %159, %c0_i32_129] : memref<1x166x128xf32, #tpu.memory_space<vmem>> -> memref<1x1x128xf32, #tpu.memory_space<vmem>>
          %172 = tpu.memref_squeeze %171 : memref<1x1x128xf32, #tpu.memory_space<vmem>> -> memref<1x128xf32, #tpu.memory_space<vmem>>
          tpu.enqueue_dma source(%170 : memref<1x128xf32, #tpu.memory_space<vmem>>) target(%172 : memref<1x128xf32, #tpu.memory_space<vmem>>) target_semaphore(%arg5 : memref<!tpu.dma_semaphore, #tpu.memory_space<semaphore_mem>>)
        } else {
        }
        %true_125 = arith.constant true
        %167 = arith.xori %164, %true_125 : i1
        %168 = arith.extui %167 : i1 to i32
        %c0_i32_126 = arith.constant 0 : i32
        %c0_i32_127 = arith.constant 0 : i32
        %169 = arith.cmpi ne, %168, %c0_i32_127 : i32
        scf.if %169 {
          %c0_i32_128 = arith.constant 0 : i32
          %170 = tpu.memref_slice %arg3[%163, %c0_i32_128] : memref<5000x128xf32, #tpu.memory_space<any>> -> memref<1x128xf32, #tpu.memory_space<any>>
          %c0_i32_129 = arith.constant 0 : i32
          %171 = tpu.memref_slice %arg4[%c0_i32_126, %159, %c0_i32_129] : memref<1x166x128xf32, #tpu.memory_space<vmem>> -> memref<1x1x128xf32, #tpu.memory_space<vmem>>
          %172 = tpu.memref_squeeze %171 : memref<1x1x128xf32, #tpu.memory_space<vmem>> -> memref<1x128xf32, #tpu.memory_space<vmem>>
          tpu.enqueue_dma source(%170 : memref<1x128xf32, #tpu.memory_space<any>>) target(%172 : memref<1x128xf32, #tpu.memory_space<vmem>>) target_semaphore(%arg5 : memref<!tpu.dma_semaphore, #tpu.memory_space<semaphore_mem>>)
        } else {
        }
      } else {
      }
    }
    %c166_i32_110 = arith.constant 166 : i32
    return
  }
  func.func @transform_0(%arg0: i32, %arg1: memref<2x166xi32, #tpu.memory_space<smem>>) -> (i32, i32) {
    %c0_i32 = arith.constant 0 : i32
    %c0_i32_0 = arith.constant 0 : i32
    %c0_i32_1 = arith.constant 0 : i32
    return %c0_i32, %c0_i32_0 : i32, i32
  }
  func.func @transform_2(%arg0: i32, %arg1: memref<2x166xi32, #tpu.memory_space<smem>>) -> (i32, i32, i32) {
    %c0_i32 = arith.constant 0 : i32
    %c0_i32_0 = arith.constant 0 : i32
    %c0_i32_1 = arith.constant 0 : i32
    return %arg0, %c0_i32, %c0_i32_0 : i32, i32, i32
  }
}

</mosaic_0001>

<llo_original>
// kernel: tpu_custom_call.1
$region0: #{tpu_custom_call.1}
  #allocation0 [shape = 'u32[]', space=smem, size = 0x4, offset = 0x4, fixed_abs, tag = 'smem constant byte address 0x4 - core index']
  #allocation1 [shape = 'u32[144,128]{1,0:T(1,128)}', space=vmem, size = 0x12000, scoped, tag = 'internal scratch']
  #allocation2 [shape = 's32[1]{0}', space=sflag, size = 0x4, scoped, tag = 'scratch operand']
  #allocation3 [shape = 's32[1]{0}', space=sflag, size = 0x4, scoped, tag = 'scoped memory for tpu_custom_call.1']
  #allocation4 [shape = 'u8[2048]{0}', space=smem, size = 0x800, scoped, tag = 'prefetched SMEM operand 0']
  #allocation7 [shape = 's32[]', space=sflag, size = 0x4, offset = 0, fixed_abs, tag = 'sflag constant byte address 0x0 - dummy sync flag']
  #allocation8 [shape = 's32[]', space=sflag, size = 0x4, offset = 0, fixed_abs, tag = 'sflag constant byte address 0x0 - dummy sync flag']
  #allocation9 [shape = 's32[]', space=sflag, size = 0x4, offset = 0, fixed_abs, tag = 'sflag constant byte address 0x0 - dummy sync flag']
  #allocation10 [shape = 'u32[]', space=smem, size = 0x4, offset = 0x44, fixed_abs, tag = 'smem constant byte address 0x44 - assertion arg 0']
  #allocation11 [shape = 'u32[]', space=smem, size = 0x4, offset = 0x48, fixed_abs, tag = 'smem constant byte address 0x48 - assertion arg 1']
  #allocation12 [shape = 's32[]', space=sflag, size = 0x4, offset = 0, fixed_abs, tag = 'sflag constant byte address 0x0 - dummy sync flag']
  #allocation13 [shape = 's32[]', space=sflag, size = 0x4, offset = 0, fixed_abs, tag = 'sflag constant byte address 0x0 - dummy sync flag']
  #allocation14 [shape = 's32[]', space=sflag, size = 0x4, offset = 0, fixed_abs, tag = 'sflag constant byte address 0x0 - dummy sync flag']
  #allocation15 [shape = 's32[]', space=sflag, size = 0x4, offset = 0, fixed_abs, tag = 'sflag constant byte address 0x0 - dummy sync flag']
  #allocation16 [shape = 's32[]', space=sflag, size = 0x4, offset = 0, fixed_abs, tag = 'sflag constant byte address 0x0 - dummy sync flag']
  #allocation17 [shape = 's32[]', space=sflag, size = 0x4, offset = 0, fixed_abs, tag = 'sflag constant byte address 0x0 - dummy sync flag']
  #allocation18 [shape = 's32[]', space=sflag, size = 0x4, offset = 0, fixed_abs, tag = 'sflag constant byte address 0x0 - dummy sync flag']
  #allocation19 [shape = 's32[]', space=sflag, size = 0x4, offset = 0, fixed_abs, tag = 'sflag constant byte address 0x0 - dummy sync flag']
  #allocation20 [shape = 's32[]', space=sflag, size = 0x4, offset = 0, fixed_abs, tag = 'sflag constant byte address 0x0 - dummy sync flag']
  #allocation21 [shape = 's32[]', space=sflag, size = 0x4, offset = 0, fixed_abs, tag = 'sflag constant byte address 0x0 - dummy sync flag']
  #allocation22 [shape = 's32[]', space=sflag, size = 0x4, offset = 0, fixed_abs, tag = 'sflag constant byte address 0x0 - dummy sync flag']
  #allocation23 [shape = 's32[]', space=sflag, size = 0x4, offset = 0, fixed_abs, tag = 'sflag constant byte address 0x0 - dummy sync flag']
  #allocation24 [shape = 's32[]', space=sflag, size = 0x4, offset = 0, fixed_abs, tag = 'sflag constant byte address 0x0 - dummy sync flag']
  #allocation25 [shape = 's32[]', space=sflag, size = 0x4, offset = 0, fixed_abs, tag = 'sflag constant byte address 0x0 - dummy sync flag']
  #allocation26 [shape = 's32[]', space=sflag, size = 0x4, offset = 0, fixed_abs, tag = 'sflag constant byte address 0x0 - dummy sync flag']
  #allocation27 [shape = 's32[]', space=sflag, size = 0x4, offset = 0, fixed_abs, tag = 'sflag constant byte address 0x0 - dummy sync flag']
  #allocation28 [shape = 's32[]', space=sflag, size = 0x4, offset = 0, fixed_abs, tag = 'sflag constant byte address 0x0 - dummy sync flag']
  #allocation29 [shape = 's32[]', space=sflag, size = 0x4, offset = 0, fixed_abs, tag = 'sflag constant byte address 0x0 - dummy sync flag']
  #allocation30 [shape = 's32[]', space=sflag, size = 0x4, offset = 0, fixed_abs, tag = 'sflag constant byte address 0x0 - dummy sync flag']
  #allocation31 [shape = 's32[]', space=sflag, size = 0x4, offset = 0, fixed_abs, tag = 'sflag constant byte address 0x0 - dummy sync flag']
  #allocation32 [shape = 's32[]', space=sflag, size = 0x4, offset = 0, fixed_abs, tag = 'sflag constant byte address 0x0 - dummy sync flag']
  #allocation33 [shape = 's32[]', space=sflag, size = 0x4, offset = 0, fixed_abs, tag = 'sflag constant byte address 0x0 - dummy sync flag']
  #allocation34 [shape = 's32[]', space=sflag, size = 0x4, offset = 0, fixed_abs, tag = 'sflag constant byte address 0x0 - dummy sync flag']
  #allocation35 [shape = 's32[]', space=sflag, size = 0x4, offset = 0, fixed_abs, tag = 'sflag constant byte address 0x0 - dummy sync flag']
  #allocation36 [shape = 's32[]', space=sflag, size = 0x4, offset = 0, fixed_abs, tag = 'sflag constant byte address 0x0 - dummy sync flag']
  #allocation37 [shape = 's32[]', space=sflag, size = 0x4, offset = 0, fixed_abs, tag = 'sflag constant byte address 0x0 - dummy sync flag']
  #allocation38 [shape = 's32[]', space=sflag, size = 0x4, offset = 0, fixed_abs, tag = 'sflag constant byte address 0x0 - dummy sync flag']
  #allocation39 [shape = 's32[]', space=sflag, size = 0x4, offset = 0, fixed_abs, tag = 'sflag constant byte address 0x0 - dummy sync flag']
  #allocation40 [shape = 's32[]', space=sflag, size = 0x4, offset = 0, fixed_abs, tag = 'sflag constant byte address 0x0 - dummy sync flag']
  #allocation41 [shape = 's32[]', space=sflag, size = 0x4, offset = 0, fixed_abs, tag = 'sflag constant byte address 0x0 - dummy sync flag']
  #allocation42 [shape = 's32[]', space=sflag, size = 0x4, offset = 0, fixed_abs, tag = 'sflag constant byte address 0x0 - dummy sync flag']
  #allocation43 [shape = 's32[]', space=sflag, size = 0x4, offset = 0, fixed_abs, tag = 'sflag constant byte address 0x0 - dummy sync flag']
  #allocation44 [shape = 's32[]', space=sflag, size = 0x4, offset = 0, fixed_abs, tag = 'sflag constant byte address 0x0 - dummy sync flag']
  #allocation45 [shape = 's32[]', space=sflag, size = 0x4, offset = 0, fixed_abs, tag = 'sflag constant byte address 0x0 - dummy sync flag']
  #allocation46 [shape = 's32[]', space=sflag, size = 0x4, offset = 0, fixed_abs, tag = 'sflag constant byte address 0x0 - dummy sync flag']
  #allocation47 [shape = 's32[]', space=sflag, size = 0x4, offset = 0, fixed_abs, tag = 'sflag constant byte address 0x0 - dummy sync flag']
  #allocation48 [shape = 's32[]', space=sflag, size = 0x4, offset = 0, fixed_abs, tag = 'sflag constant byte address 0x0 - dummy sync flag']
  #allocation49 [shape = 's32[]', space=sflag, size = 0x4, offset = 0, fixed_abs, tag = 'sflag constant byte address 0x0 - dummy sync flag']
  #allocation50 [shape = 's32[]', space=sflag, size = 0x4, offset = 0, fixed_abs, tag = 'sflag constant byte address 0x0 - dummy sync flag']
  #allocation51 [shape = 's32[]', space=sflag, size = 0x4, offset = 0, fixed_abs, tag = 'sflag constant byte address 0x0 - dummy sync flag']
  #allocation52 [shape = 's32[]', space=sflag, size = 0x4, offset = 0, fixed_abs, tag = 'sflag constant byte address 0x0 - dummy sync flag']
  #allocation53 [shape = 's32[]', space=sflag, size = 0x4, offset = 0, fixed_abs, tag = 'sflag constant byte address 0x0 - dummy sync flag']
  #allocation54 [shape = 's32[]', space=sflag, size = 0x4, offset = 0, fixed_abs, tag = 'sflag constant byte address 0x0 - dummy sync flag']
  #allocation55 [shape = 's32[]', space=sflag, size = 0x4, offset = 0, fixed_abs, tag = 'sflag constant byte address 0x0 - dummy sync flag']
  #allocation56 [shape = 's32[]', space=sflag, size = 0x4, offset = 0, fixed_abs, tag = 'sflag constant byte address 0x0 - dummy sync flag']
  #allocation57 [shape = 's32[]', space=sflag, size = 0x4, offset = 0, fixed_abs, tag = 'sflag constant byte address 0x0 - dummy sync flag']
  #allocation58 [shape = 's32[]', space=sflag, size = 0x4, offset = 0, fixed_abs, tag = 'sflag constant byte address 0x0 - dummy sync flag']
  #allocation59 [shape = 's32[]', space=sflag, size = 0x4, offset = 0, fixed_abs, tag = 'sflag constant byte address 0x0 - dummy sync flag']
  %s0 = inlined_call_operand.hbm [shape: s32[2,166], index: 0, kind: input, shape index: {}]
  %s1 = inlined_call_operand.hbm [shape: f32[150,128], index: 1, kind: input, shape index: {}]
  %s2 = inlined_call_operand.hbm [shape: f32[5000,128], index: 2, kind: input, shape index: {}]
  %s3 = inlined_call_operand.vmem [shape: f32[2,166,128], index: 3, kind: output, shape index: {}]
  %s4 = sld [smem:[#allocation0]]
  $region774: #{tpu_custom_call.1} parent=0
    _
  %s6 = ssub.s32 1, %s4
  %s7 = scalar_select 0, %s6, %s4
  %9 = dma.hbm_to_smem %s0, 64, [#allocation4], [#allocation3]
  %10 = dma.done [#allocation3], 64
  %11 = sfence
  $region1: #{tpu_custom_call.1} parent=0
    #allocation5 [shape = 'u8[77824]{0}', space=vmem, size = 0x13000, scoped, tag = 'input window, operand 1, single buffered']
    #allocation6 [shape = 's32[2]{0}', space=sflag, size = 0x8, scoped, tag = 'scoped memory for tpu_custom_call.1']
    %12 = vsyncpa [#allocation6], 0
    loop: start=0, step=1, limit=4
    $region2: #{tpu_custom_call.1} parent=1 // loop_pre_header
      _
    $region3: #{tpu_custom_call.1} parent=1 // loop_header
      %s14 = sphi 0, %s18
      %p15 = scmp.ge.s32.totalorder %s14, 4
      %s22 = sphi 0, %s22
      %s24 = sphi 0, %s22
      %s25 = sphi 0, %s24
      %s39 = sphi 0, %s25
      %s45 = sphi 0, %s47
      %s48 = sphi 0, %s45
      %s49 = sphi 0, %s48
      %s65 = sphi 0, %s49
    $region4: #{tpu_custom_call.1} parent=1 // loop_header_branch
      %17 = sbr.rel (%p15) target = $region8
    $region5: #{tpu_custom_call.1} parent=1 // loop_body
      %s19 = ssub.s32 %s14, 1
      %s20 = ssub.s32 %s14, 2
      %s21 = sadd.s32 %s14, 1
      %s23 = sadd.s32 %s22, 1
      %p26 = scmp.eq.s32.totalorder %s14, 1
      %p27 = scmp.ne.s32.totalorder %s22, %s24
      %p28 = scmp.eq.s32.totalorder %s14, 0
      %p29 = por %p27, %p28
      %p30 = scmp.ne.s32.totalorder %s22, %s24
      %p31 = scmp.eq.s32.totalorder %s19, 1
      %p32 = por %p30, %p31
      %p33 = scmp.ne.s32.totalorder %s24, %s25
      %p34 = scmp.eq.s32.totalorder %s19, 0
      %p35 = por %p33, %p34
      %p36 = scmp.ne.s32.totalorder %s24, %s25
      %p37 = scmp.eq.s32.totalorder %s20, 1
      %p38 = por %p36, %p37
      %p40 = scmp.ne.s32.totalorder %s25, %s39
      %p41 = scmp.eq.s32.totalorder %s20, 0
      %p42 = por %p40, %p41
      %s43 = ssub.s32 %s14, %s21
      %p44 = scmp.eq.s32.totalorder %s43, 0
      %s46 = sadd.s32 %s45, 1
      %s47 = scalar_select %p44, %s45, %s46
      %p50 = pneg %p44
      %p51 = scmp.eq.s32.totalorder %s14, 1
      %p52 = por %p50, %p51
      %p53 = scmp.ne.s32.totalorder %s45, %s48
      %p54 = scmp.eq.s32.totalorder %s14, 0
      %p55 = por %p53, %p54
      %p56 = scmp.ne.s32.totalorder %s45, %s48
      %p57 = scmp.eq.s32.totalorder %s19, 1
      %p58 = por %p56, %p57
      %p59 = scmp.ne.s32.totalorder %s48, %s49
      %p60 = scmp.eq.s32.totalorder %s19, 0
      %p61 = por %p59, %p60
      %p62 = scmp.ne.s32.totalorder %s48, %s49
      %p63 = scmp.eq.s32.totalorder %s20, 1
      %p64 = por %p62, %p63
      %p66 = scmp.ne.s32.totalorder %s49, %s65
      %p67 = scmp.eq.s32.totalorder %s20, 0
      %p68 = por %p66, %p67
      %p69 = scmp.le.s32.totalorder 1, %s14
      %p70 = scmp.lt.s32.totalorder %s14, 3
      %p71 = pnand %p69, %p70
      %p72 = pneg %p71
      // Predicated region
      $region9: #{tpu_custom_call.1} parent=5 // pred_check
        _
      $region10: #{tpu_custom_call.1} parent=5 // pred_check_branch
        %74 = sbr.rel (%p71) target = $region12
      $region11: #{tpu_custom_call.1} parent=5 // pred_region
        %s75 = ssub.s32 %s14, 1
        // Predicated region
        $region13: #{tpu_custom_call.1} parent=11 // pred_check
          %p76 = pneg %p35
        $region14: #{tpu_custom_call.1} parent=11 // pred_check_branch
          %78 = sbr.rel (%p76) target = $region16
        $region15: #{tpu_custom_call.1} parent=11 // pred_region
          %s80 = ssub.s32 2432, 2432
          %81 = vsyncadd [#allocation6], %s80
          %s82 = sshll.u32 [#allocation5], 4
          %s83 = int_to_ptr.vmem [resolvable:$true] %s82
          %88 = dma.hbm_to_vmem [thread:$0]  %s1, 2432, %s83, [#allocation6], 128, 128, 8
        $region16: #{tpu_custom_call.1} parent=11 // pred_fallthru
          _
      $region12: #{tpu_custom_call.1} parent=5 // pred_fallthru
        _
      %p89 = scmp.lt.s32.totalorder %s14, 2
      // Predicated region
      $region17: #{tpu_custom_call.1} parent=5 // pred_check
        %p90 = pneg %p89
      $region18: #{tpu_custom_call.1} parent=5 // pred_check_branch
        %92 = sbr.rel (%p90) target = $region20
      $region19: #{tpu_custom_call.1} parent=5 // pred_region
        _
      $region20: #{tpu_custom_call.1} parent=5 // pred_fallthru
        _
      %p93 = scmp.le.s32.totalorder 1, %s14
      %p94 = scmp.lt.s32.totalorder %s14, 3
      %p95 = pnand %p93, %p94
      %p96 = pneg %p95
      // Predicated region
      $region21: #{tpu_custom_call.1} parent=5 // pred_check
        _
      $region22: #{tpu_custom_call.1} parent=5 // pred_check_branch
        %98 = sbr.rel (%p95) target = $region24
      $region23: #{tpu_custom_call.1} parent=5 // pred_region
        %s99 = ssub.s32 %s14, 1
        // Predicated region
        $region25: #{tpu_custom_call.1} parent=23 // pred_check
          %p100 = pneg %p35
        $region26: #{tpu_custom_call.1} parent=23 // pred_check_branch
          %102 = sbr.rel (%p100) target = $region28
        $region27: #{tpu_custom_call.1} parent=23 // pred_region
          %103 = dma.done [#allocation6], 2432
        $region28: #{tpu_custom_call.1} parent=23 // pred_fallthru
          _
        %p104 = pneg %p35
        %p105 = pneg %p32
        %p106 = pneg %p61
        %p107 = pneg %p58
        %p108 = scmp.lt.s32.totalorder %s19, 1
        %s109 = scalar_select %p108, %s19, 1
        %s110 = smul.addr %s109, 21
        %s111 = smul.addr %s110, 8
        %s112 = scalar_lea.vmem %s3, %s111
        %p113 = scmp.lt.s32.totalorder %s19, 1
        %s114 = scalar_select %p113, %s19, 1
        %s115 = smul.addr %s114, 21
        %s116 = smul.addr %s115, 8
        %s117 = scalar_lea.vmem %s3, %s116
        %s118 = sshra.s32 %s19, 1
        %s119 = sand.u32 %s19, 1
        %s120 = smul.u32 %s118, 2
        %s121 = smul.u32 %s120, 256
        %s122 = sshra.s32 %s19, 1
        %s123 = sand.u32 %s19, 1
        %s124 = smul.u32 %s123, 128
        %s125 = sadd.s32 %s121, %s124
        %s126 = sld [smem:[#allocation4 + %s125]]
        %s127 = ssub.s32 %s126, 150
        %p128 = scmp.lt.s32.totalorder %s126, 150
        // Predicated region
        $region29: #{tpu_custom_call.1} parent=23 // pred_check
          %p129 = pneg %p128
        $region30: #{tpu_custom_call.1} parent=23 // pred_check_branch
          %131 = sbr.rel (%p129) target = $region32
        $region31: #{tpu_custom_call.1} parent=23 // pred_region
          %s132 = scalar_lea.vmem [#allocation5], %s126
          %p134 = scmp.lt.u32.totalorder 1, 8
          %p135 = pneg %p134
          // Predicated region
          $region33: #{tpu_custom_call.1} parent=31 // pred_check
            _
          $region34: #{tpu_custom_call.1} parent=31 // pred_check_branch
            %137 = sbr.rel (%p134) target = $region36
          $region35: #{tpu_custom_call.1} parent=31 // pred_region
            %s152 = sand.u32 1, 7
            %p153 = scmp.eq.s32.totalorder %s152, 0
            %p154 = pneg %p153
            // Predicated region
            $region48: #{tpu_custom_call.1} parent=35 // pred_check
              _
            $region49: #{tpu_custom_call.1} parent=35 // pred_check_branch
              %156 = sbr.rel (%p153) target = $region51
            $region50: #{tpu_custom_call.1} parent=35 // pred_region
              %s157 = sand.u32 1, 7
              %s158 = ssub.s32 1, %s157
              %s159 = scalar_lea.vmem %s132, %s158 [#allocation5]
              %s160 = ssub.s32 1, %s157
              %s161 = scalar_lea.vmem %s117, %s160
              %s162 = sshllo.u32 0, %s157
              loop: start=0, step=1, limit=1
              $region52: #{tpu_custom_call.1} parent=50 // loop_pre_header
                _
              $region53: #{tpu_custom_call.1} parent=50 // loop_header
                %s164 = sphi 0, %s168
                %p165 = scmp.ge.s32.totalorder %s164, 1
                %s169 = sphi %s159, %s159
                %s170 = sphi %s161, %s161
              $region54: #{tpu_custom_call.1} parent=50 // loop_header_branch
                %167 = sbr.rel (%p165) target = $region58
              $region55: #{tpu_custom_call.1} parent=50 // loop_body
                %v171 = vld [vmem:[%s169] sm:%s162]
                %172 = vst [vmem:[%s170] sm:%s162] %v171
              $region56: #{tpu_custom_call.1} parent=50 // loop_footer
                %s168 = sadd.s32 1, %s164
              $region57: #{tpu_custom_call.1} parent=50 // loop_footer_branch
                %163 = sbr.rel target = $region53
              $region58: #{tpu_custom_call.1} parent=50 // loop_exit
                _
            $region51: #{tpu_custom_call.1} parent=35 // pred_fallthru
              _
          $region36: #{tpu_custom_call.1} parent=31 // pred_fallthru
            _
          // Predicated region
          $region37: #{tpu_custom_call.1} parent=31 // pred_check
            %p138 = pneg %p134
          $region38: #{tpu_custom_call.1} parent=31 // pred_check_branch
            %140 = sbr.rel (%p138) target = $region40
          $region39: #{tpu_custom_call.1} parent=31 // pred_region
            %s141 = sshllo.u32 0, 1
            loop: start=0, step=1, limit=1
            $region41: #{tpu_custom_call.1} parent=39 // loop_pre_header
              _
            $region42: #{tpu_custom_call.1} parent=39 // loop_header
              %s143 = sphi 0, %s147
              %p144 = scmp.ge.s32.totalorder %s143, 1
              %s148 = sphi %s132, %s132
              %s149 = sphi %s117, %s117
            $region43: #{tpu_custom_call.1} parent=39 // loop_header_branch
              %146 = sbr.rel (%p144) target = $region47
            $region44: #{tpu_custom_call.1} parent=39 // loop_body
              %v150 = vld [vmem:[%s148] sm:%s141]
              %151 = vst [vmem:[%s149] sm:%s141] %v150
            $region45: #{tpu_custom_call.1} parent=39 // loop_footer
              %s147 = sadd.s32 1, %s143
            $region46: #{tpu_custom_call.1} parent=39 // loop_footer_branch
              %142 = sbr.rel target = $region42
            $region47: #{tpu_custom_call.1} parent=39 // loop_exit
              _
          $region40: #{tpu_custom_call.1} parent=31 // pred_fallthru
            _
          // Predicated region
          $region59: #{tpu_custom_call.1} parent=31 // pred_check
            _
          $region60: #{tpu_custom_call.1} parent=31 // pred_check_branch
            %175 = sbr.rel (0) target = $region62
          $region61: #{tpu_custom_call.1} parent=31 // pred_region
            %176 = vsyncadd [#allocation2], 16
          $region62: #{tpu_custom_call.1} parent=31 // pred_fallthru
            _
        $region32: #{tpu_custom_call.1} parent=23 // pred_fallthru
          _
        %p177 = pneg %p128
        // Predicated region
        $region63: #{tpu_custom_call.1} parent=23 // pred_check
          _
        $region64: #{tpu_custom_call.1} parent=23 // pred_check_branch
          %179 = sbr.rel (%p128) target = $region66
        $region65: #{tpu_custom_call.1} parent=23 // pred_region
          %s180 = smul.addr %s127, 16
          %s181 = scalar_lea.hbm %s2, %s180
          // Predicated region
          $region67: #{tpu_custom_call.1} parent=65 // pred_check
            _
          $region68: #{tpu_custom_call.1} parent=65 // pred_check_branch
            %183 = sbr.rel target = $region70
          $region69: #{tpu_custom_call.1} parent=65 // pred_region
            %184 = sst [smem:[#allocation10]] [#allocation9]
            %185 = sst [smem:[#allocation11]] [#allocation8]
          $region70: #{tpu_custom_call.1} parent=65 // pred_fallthru
            _
          %187 = shalt.err (0)
          %s189 = sshll.u32 %s117, 4
          %s190 = int_to_ptr.vmem [resolvable:$true] %s189
          %192 = dma.hbm_to_vmem [thread:$0]  %s181, 16, %s190, [#allocation2]
        $region66: #{tpu_custom_call.1} parent=23 // pred_fallthru
          _
        %s193 = sadd.s32 %s124, 1
        %s194 = sadd.s32 %s121, %s193
        %s195 = sld [smem:[#allocation4 + %s194]]
        %s196 = ssub.s32 %s195, 150
        %p197 = scmp.lt.s32.totalorder %s195, 150
        // Predicated region
        $region71: #{tpu_custom_call.1} parent=23 // pred_check
          %p198 = pneg %p197
        $region72: #{tpu_custom_call.1} parent=23 // pred_check_branch
          %200 = sbr.rel (%p198) target = $region74
        $region73: #{tpu_custom_call.1} parent=23 // pred_region
          %s201 = scalar_lea.vmem [#allocation5], %s195
          %s202 = scalar_lea.vmem %s117, 1
          %p204 = scmp.lt.u32.totalorder 1, 8
          %p205 = pneg %p204
          // Predicated region
          $region75: #{tpu_custom_call.1} parent=73 // pred_check
            _
          $region76: #{tpu_custom_call.1} parent=73 // pred_check_branch
            %207 = sbr.rel (%p204) target = $region78
          $region77: #{tpu_custom_call.1} parent=73 // pred_region
            %s222 = sand.u32 1, 7
            %p223 = scmp.eq.s32.totalorder %s222, 0
            %p224 = pneg %p223
            // Predicated region
            $region90: #{tpu_custom_call.1} parent=77 // pred_check
              _
            $region91: #{tpu_custom_call.1} parent=77 // pred_check_branch
              %226 = sbr.rel (%p223) target = $region93
            $region92: #{tpu_custom_call.1} parent=77 // pred_region
              %s227 = sand.u32 1, 7
              %s228 = ssub.s32 1, %s227
              %s229 = scalar_lea.vmem %s201, %s228 [#allocation5]
              %s230 = ssub.s32 1, %s227
              %s231 = scalar_lea.vmem %s202, %s230
              %s232 = sshllo.u32 0, %s227
              loop: start=0, step=1, limit=1
              $region94: #{tpu_custom_call.1} parent=92 // loop_pre_header
                _
              $region95: #{tpu_custom_call.1} parent=92 // loop_header
                %s234 = sphi 0, %s238
                %p235 = scmp.ge.s32.totalorder %s234, 1
                %s239 = sphi %s229, %s229
                %s240 = sphi %s231, %s231
              $region96: #{tpu_custom_call.1} parent=92 // loop_header_branch
                %237 = sbr.rel (%p235) target = $region100
              $region97: #{tpu_custom_call.1} parent=92 // loop_body
                %v241 = vld [vmem:[%s239] sm:%s232]
                %242 = vst [vmem:[%s240] sm:%s232] %v241
              $region98: #{tpu_custom_call.1} parent=92 // loop_footer
                %s238 = sadd.s32 1, %s234
              $region99: #{tpu_custom_call.1} parent=92 // loop_footer_branch
                %233 = sbr.rel target = $region95
              $region100: #{tpu_custom_call.1} parent=92 // loop_exit
                _
            $region93: #{tpu_custom_call.1} parent=77 // pred_fallthru
              _
          $region78: #{tpu_custom_call.1} parent=73 // pred_fallthru
            _
          // Predicated region
          $region79: #{tpu_custom_call.1} parent=73 // pred_check
            %p208 = pneg %p204
          $region80: #{tpu_custom_call.1} parent=73 // pred_check_branch
            %210 = sbr.rel (%p208) target = $region82
          $region81: #{tpu_custom_call.1} parent=73 // pred_region
            %s211 = sshllo.u32 0, 1
            loop: start=0, step=1, limit=1
            $region83: #{tpu_custom_call.1} parent=81 // loop_pre_header
              _
            $region84: #{tpu_custom_call.1} parent=81 // loop_header
              %s213 = sphi 0, %s217
              %p214 = scmp.ge.s32.totalorder %s213, 1
              %s218 = sphi %s201, %s201
              %s219 = sphi %s202, %s202
            $region85: #{tpu_custom_call.1} parent=81 // loop_header_branch
              %216 = sbr.rel (%p214) target = $region89
            $region86: #{tpu_custom_call.1} parent=81 // loop_body
              %v220 = vld [vmem:[%s218] sm:%s211]
              %221 = vst [vmem:[%s219] sm:%s211] %v220
            $region87: #{tpu_custom_call.1} parent=81 // loop_footer
              %s217 = sadd.s32 1, %s213
            $region88: #{tpu_custom_call.1} parent=81 // loop_footer_branch
              %212 = sbr.rel target = $region84
            $region89: #{tpu_custom_call.1} parent=81 // loop_exit
              _
          $region82: #{tpu_custom_call.1} parent=73 // pred_fallthru
            _
          // Predicated region
          $region101: #{tpu_custom_call.1} parent=73 // pred_check
            _
          $region102: #{tpu_custom_call.1} parent=73 // pred_check_branch
            %245 = sbr.rel (0) target = $region104
          $region103: #{tpu_custom_call.1} parent=73 // pred_region
            %246 = vsyncadd [#allocation2], 16
          $region104: #{tpu_custom_call.1} parent=73 // pred_fallthru
            _
        $region74: #{tpu_custom_call.1} parent=23 // pred_fallthru
          _
        %p247 = pneg %p197
        // Predicated region
        $region105: #{tpu_custom_call.1} parent=23 // pred_check
          _
        $region106: #{tpu_custom_call.1} parent=23 // pred_check_branch
          %249 = sbr.rel (%p197) target = $region108
        $region107: #{tpu_custom_call.1} parent=23 // pred_region
          %s250 = smul.addr %s196, 16
          %s251 = scalar_lea.hbm %s2, %s250
          %s252 = scalar_lea.vmem %s117, 1
          // Predicated region
          $region109: #{tpu_custom_call.1} parent=107 // pred_check
            _
          $region110: #{tpu_custom_call.1} parent=107 // pred_check_branch
            %254 = sbr.rel target = $region112
          $region111: #{tpu_custom_call.1} parent=107 // pred_region
            %255 = sst [smem:[#allocation10]] [#allocation14]
            %256 = sst [smem:[#allocation11]] [#allocation13]
          $region112: #{tpu_custom_call.1} parent=107 // pred_fallthru
            _
          %258 = shalt.err (0)
          %s260 = sshll.u32 %s252, 4
          %s261 = int_to_ptr.vmem [resolvable:$true] %s260
          %263 = dma.hbm_to_vmem [thread:$0]  %s251, 16, %s261, [#allocation2]
        $region108: #{tpu_custom_call.1} parent=23 // pred_fallthru
          _
        %s264 = sadd.s32 %s124, 2
        %s265 = sadd.s32 %s121, %s264
        %s266 = sld [smem:[#allocation4 + %s265]]
        %s267 = ssub.s32 %s266, 150
        %p268 = scmp.lt.s32.totalorder %s266, 150
        // Predicated region
        $region113: #{tpu_custom_call.1} parent=23 // pred_check
          %p269 = pneg %p268
        $region114: #{tpu_custom_call.1} parent=23 // pred_check_branch
          %271 = sbr.rel (%p269) target = $region116
        $region115: #{tpu_custom_call.1} parent=23 // pred_region
          %s272 = scalar_lea.vmem [#allocation5], %s266
          %s273 = scalar_lea.vmem %s117, 2
          %p275 = scmp.lt.u32.totalorder 1, 8
          %p276 = pneg %p275
          // Predicated region
          $region117: #{tpu_custom_call.1} parent=115 // pred_check
            _
          $region118: #{tpu_custom_call.1} parent=115 // pred_check_branch
            %278 = sbr.rel (%p275) target = $region120
          $region119: #{tpu_custom_call.1} parent=115 // pred_region
            %s293 = sand.u32 1, 7
            %p294 = scmp.eq.s32.totalorder %s293, 0
            %p295 = pneg %p294
            // Predicated region
            $region132: #{tpu_custom_call.1} parent=119 // pred_check
              _
            $region133: #{tpu_custom_call.1} parent=119 // pred_check_branch
              %297 = sbr.rel (%p294) target = $region135
            $region134: #{tpu_custom_call.1} parent=119 // pred_region
              %s298 = sand.u32 1, 7
              %s299 = ssub.s32 1, %s298
              %s300 = scalar_lea.vmem %s272, %s299 [#allocation5]
              %s301 = ssub.s32 1, %s298
              %s302 = scalar_lea.vmem %s273, %s301
              %s303 = sshllo.u32 0, %s298
              loop: start=0, step=1, limit=1
              $region136: #{tpu_custom_call.1} parent=134 // loop_pre_header
                _
              $region137: #{tpu_custom_call.1} parent=134 // loop_header
                %s305 = sphi 0, %s309
                %p306 = scmp.ge.s32.totalorder %s305, 1
                %s310 = sphi %s300, %s300
                %s311 = sphi %s302, %s302
              $region138: #{tpu_custom_call.1} parent=134 // loop_header_branch
                %308 = sbr.rel (%p306) target = $region142
              $region139: #{tpu_custom_call.1} parent=134 // loop_body
                %v312 = vld [vmem:[%s310] sm:%s303]
                %313 = vst [vmem:[%s311] sm:%s303] %v312
              $region140: #{tpu_custom_call.1} parent=134 // loop_footer
                %s309 = sadd.s32 1, %s305
              $region141: #{tpu_custom_call.1} parent=134 // loop_footer_branch
                %304 = sbr.rel target = $region137
              $region142: #{tpu_custom_call.1} parent=134 // loop_exit
                _
            $region135: #{tpu_custom_call.1} parent=119 // pred_fallthru
              _
          $region120: #{tpu_custom_call.1} parent=115 // pred_fallthru
            _
          // Predicated region
          $region121: #{tpu_custom_call.1} parent=115 // pred_check
            %p279 = pneg %p275
          $region122: #{tpu_custom_call.1} parent=115 // pred_check_branch
            %281 = sbr.rel (%p279) target = $region124
          $region123: #{tpu_custom_call.1} parent=115 // pred_region
            %s282 = sshllo.u32 0, 1
            loop: start=0, step=1, limit=1
            $region125: #{tpu_custom_call.1} parent=123 // loop_pre_header
              _
            $region126: #{tpu_custom_call.1} parent=123 // loop_header
              %s284 = sphi 0, %s288
              %p285 = scmp.ge.s32.totalorder %s284, 1
              %s289 = sphi %s272, %s272
              %s290 = sphi %s273, %s273
            $region127: #{tpu_custom_call.1} parent=123 // loop_header_branch
              %287 = sbr.rel (%p285) target = $region131
            $region128: #{tpu_custom_call.1} parent=123 // loop_body
              %v291 = vld [vmem:[%s289] sm:%s282]
              %292 = vst [vmem:[%s290] sm:%s282] %v291
            $region129: #{tpu_custom_call.1} parent=123 // loop_footer
              %s288 = sadd.s32 1, %s284
            $region130: #{tpu_custom_call.1} parent=123 // loop_footer_branch
              %283 = sbr.rel target = $region126
            $region131: #{tpu_custom_call.1} parent=123 // loop_exit
              _
          $region124: #{tpu_custom_call.1} parent=115 // pred_fallthru
            _
          // Predicated region
          $region143: #{tpu_custom_call.1} parent=115 // pred_check
            _
          $region144: #{tpu_custom_call.1} parent=115 // pred_check_branch
            %316 = sbr.rel (0) target = $region146
          $region145: #{tpu_custom_call.1} parent=115 // pred_region
            %317 = vsyncadd [#allocation2], 16
          $region146: #{tpu_custom_call.1} parent=115 // pred_fallthru
            _
        $region116: #{tpu_custom_call.1} parent=23 // pred_fallthru
          _
        %p318 = pneg %p268
        // Predicated region
        $region147: #{tpu_custom_call.1} parent=23 // pred_check
          _
        $region148: #{tpu_custom_call.1} parent=23 // pred_check_branch
          %320 = sbr.rel (%p268) target = $region150
        $region149: #{tpu_custom_call.1} parent=23 // pred_region
          %s321 = smul.addr %s267, 16
          %s322 = scalar_lea.hbm %s2, %s321
          %s323 = scalar_lea.vmem %s117, 2
          // Predicated region
          $region151: #{tpu_custom_call.1} parent=149 // pred_check
            _
          $region152: #{tpu_custom_call.1} parent=149 // pred_check_branch
            %325 = sbr.rel target = $region154
          $region153: #{tpu_custom_call.1} parent=149 // pred_region
            %326 = sst [smem:[#allocation10]] [#allocation17]
            %327 = sst [smem:[#allocation11]] [#allocation16]
          $region154: #{tpu_custom_call.1} parent=149 // pred_fallthru
            _
          %329 = shalt.err (0)
          %s331 = sshll.u32 %s323, 4
          %s332 = int_to_ptr.vmem [resolvable:$true] %s331
          %334 = dma.hbm_to_vmem [thread:$0]  %s322, 16, %s332, [#allocation2]
        $region150: #{tpu_custom_call.1} parent=23 // pred_fallthru
          _
        %s335 = sadd.s32 %s124, 3
        %s336 = sadd.s32 %s121, %s335
        %s337 = sld [smem:[#allocation4 + %s336]]
        %s338 = ssub.s32 %s337, 150
        %p339 = scmp.lt.s32.totalorder %s337, 150
        // Predicated region
        $region155: #{tpu_custom_call.1} parent=23 // pred_check
          %p340 = pneg %p339
        $region156: #{tpu_custom_call.1} parent=23 // pred_check_branch
          %342 = sbr.rel (%p340) target = $region158
        $region157: #{tpu_custom_call.1} parent=23 // pred_region
          %s343 = scalar_lea.vmem [#allocation5], %s337
          %s344 = scalar_lea.vmem %s117, 3
          %p346 = scmp.lt.u32.totalorder 1, 8
          %p347 = pneg %p346
          // Predicated region
          $region159: #{tpu_custom_call.1} parent=157 // pred_check
            _
          $region160: #{tpu_custom_call.1} parent=157 // pred_check_branch
            %349 = sbr.rel (%p346) target = $region162
          $region161: #{tpu_custom_call.1} parent=157 // pred_region
            %s364 = sand.u32 1, 7
            %p365 = scmp.eq.s32.totalorder %s364, 0
            %p366 = pneg %p365
            // Predicated region
            $region174: #{tpu_custom_call.1} parent=161 // pred_check
              _
            $region175: #{tpu_custom_call.1} parent=161 // pred_check_branch
              %368 = sbr.rel (%p365) target = $region177
            $region176: #{tpu_custom_call.1} parent=161 // pred_region
              %s369 = sand.u32 1, 7
              %s370 = ssub.s32 1, %s369
              %s371 = scalar_lea.vmem %s343, %s370 [#allocation5]
              %s372 = ssub.s32 1, %s369
              %s373 = scalar_lea.vmem %s344, %s372
              %s374 = sshllo.u32 0, %s369
              loop: start=0, step=1, limit=1
              $region178: #{tpu_custom_call.1} parent=176 // loop_pre_header
                _
              $region179: #{tpu_custom_call.1} parent=176 // loop_header
                %s376 = sphi 0, %s380
                %p377 = scmp.ge.s32.totalorder %s376, 1
                %s381 = sphi %s371, %s371
                %s382 = sphi %s373, %s373
              $region180: #{tpu_custom_call.1} parent=176 // loop_header_branch
                %379 = sbr.rel (%p377) target = $region184
              $region181: #{tpu_custom_call.1} parent=176 // loop_body
                %v383 = vld [vmem:[%s381] sm:%s374]
                %384 = vst [vmem:[%s382] sm:%s374] %v383
              $region182: #{tpu_custom_call.1} parent=176 // loop_footer
                %s380 = sadd.s32 1, %s376
              $region183: #{tpu_custom_call.1} parent=176 // loop_footer_branch
                %375 = sbr.rel target = $region179
              $region184: #{tpu_custom_call.1} parent=176 // loop_exit
                _
            $region177: #{tpu_custom_call.1} parent=161 // pred_fallthru
              _
          $region162: #{tpu_custom_call.1} parent=157 // pred_fallthru
            _
          // Predicated region
          $region163: #{tpu_custom_call.1} parent=157 // pred_check
            %p350 = pneg %p346
          $region164: #{tpu_custom_call.1} parent=157 // pred_check_branch
            %352 = sbr.rel (%p350) target = $region166
          $region165: #{tpu_custom_call.1} parent=157 // pred_region
            %s353 = sshllo.u32 0, 1
            loop: start=0, step=1, limit=1
            $region167: #{tpu_custom_call.1} parent=165 // loop_pre_header
              _
            $region168: #{tpu_custom_call.1} parent=165 // loop_header
              %s355 = sphi 0, %s359
              %p356 = scmp.ge.s32.totalorder %s355, 1
              %s360 = sphi %s343, %s343
              %s361 = sphi %s344, %s344
            $region169: #{tpu_custom_call.1} parent=165 // loop_header_branch
              %358 = sbr.rel (%p356) target = $region173
            $region170: #{tpu_custom_call.1} parent=165 // loop_body
              %v362 = vld [vmem:[%s360] sm:%s353]
              %363 = vst [vmem:[%s361] sm:%s353] %v362
            $region171: #{tpu_custom_call.1} parent=165 // loop_footer
              %s359 = sadd.s32 1, %s355
            $region172: #{tpu_custom_call.1} parent=165 // loop_footer_branch
              %354 = sbr.rel target = $region168
            $region173: #{tpu_custom_call.1} parent=165 // loop_exit
              _
          $region166: #{tpu_custom_call.1} parent=157 // pred_fallthru
            _
          // Predicated region
          $region185: #{tpu_custom_call.1} parent=157 // pred_check
            _
          $region186: #{tpu_custom_call.1} parent=157 // pred_check_branch
            %387 = sbr.rel (0) target = $region188
          $region187: #{tpu_custom_call.1} parent=157 // pred_region
            %388 = vsyncadd [#allocation2], 16
          $region188: #{tpu_custom_call.1} parent=157 // pred_fallthru
            _
        $region158: #{tpu_custom_call.1} parent=23 // pred_fallthru
          _
        %p389 = pneg %p339
        // Predicated region
        $region189: #{tpu_custom_call.1} parent=23 // pred_check
          _
        $region190: #{tpu_custom_call.1} parent=23 // pred_check_branch
          %391 = sbr.rel (%p339) target = $region192
        $region191: #{tpu_custom_call.1} parent=23 // pred_region
          %s392 = smul.addr %s338, 16
          %s393 = scalar_lea.hbm %s2, %s392
          %s394 = scalar_lea.vmem %s117, 3
          // Predicated region
          $region193: #{tpu_custom_call.1} parent=191 // pred_check
            _
          $region194: #{tpu_custom_call.1} parent=191 // pred_check_branch
            %396 = sbr.rel target = $region196
          $region195: #{tpu_custom_call.1} parent=191 // pred_region
            %397 = sst [smem:[#allocation10]] [#allocation20]
            %398 = sst [smem:[#allocation11]] [#allocation19]
          $region196: #{tpu_custom_call.1} parent=191 // pred_fallthru
            _
          %400 = shalt.err (0)
          %s402 = sshll.u32 %s394, 4
          %s403 = int_to_ptr.vmem [resolvable:$true] %s402
          %405 = dma.hbm_to_vmem [thread:$0]  %s393, 16, %s403, [#allocation2]
        $region192: #{tpu_custom_call.1} parent=23 // pred_fallthru
          _
        %s406 = sadd.s32 %s124, 4
        %s407 = sadd.s32 %s121, %s406
        %s408 = sld [smem:[#allocation4 + %s407]]
        %s409 = ssub.s32 %s408, 150
        %p410 = scmp.lt.s32.totalorder %s408, 150
        // Predicated region
        $region197: #{tpu_custom_call.1} parent=23 // pred_check
          %p411 = pneg %p410
        $region198: #{tpu_custom_call.1} parent=23 // pred_check_branch
          %413 = sbr.rel (%p411) target = $region200
        $region199: #{tpu_custom_call.1} parent=23 // pred_region
          %s414 = scalar_lea.vmem [#allocation5], %s408
          %s415 = scalar_lea.vmem %s117, 4
          %p417 = scmp.lt.u32.totalorder 1, 8
          %p418 = pneg %p417
          // Predicated region
          $region201: #{tpu_custom_call.1} parent=199 // pred_check
            _
          $region202: #{tpu_custom_call.1} parent=199 // pred_check_branch
            %420 = sbr.rel (%p417) target = $region204
          $region203: #{tpu_custom_call.1} parent=199 // pred_region
            %s435 = sand.u32 1, 7
            %p436 = scmp.eq.s32.totalorder %s435, 0
            %p437 = pneg %p436
            // Predicated region
            $region216: #{tpu_custom_call.1} parent=203 // pred_check
              _
            $region217: #{tpu_custom_call.1} parent=203 // pred_check_branch
              %439 = sbr.rel (%p436) target = $region219
            $region218: #{tpu_custom_call.1} parent=203 // pred_region
              %s440 = sand.u32 1, 7
              %s441 = ssub.s32 1, %s440
              %s442 = scalar_lea.vmem %s414, %s441 [#allocation5]
              %s443 = ssub.s32 1, %s440
              %s444 = scalar_lea.vmem %s415, %s443
              %s445 = sshllo.u32 0, %s440
              loop: start=0, step=1, limit=1
              $region220: #{tpu_custom_call.1} parent=218 // loop_pre_header
                _
              $region221: #{tpu_custom_call.1} parent=218 // loop_header
                %s447 = sphi 0, %s451
                %p448 = scmp.ge.s32.totalorder %s447, 1
                %s452 = sphi %s442, %s442
                %s453 = sphi %s444, %s444
              $region222: #{tpu_custom_call.1} parent=218 // loop_header_branch
                %450 = sbr.rel (%p448) target = $region226
              $region223: #{tpu_custom_call.1} parent=218 // loop_body
                %v454 = vld [vmem:[%s452] sm:%s445]
                %455 = vst [vmem:[%s453] sm:%s445] %v454
              $region224: #{tpu_custom_call.1} parent=218 // loop_footer
                %s451 = sadd.s32 1, %s447
              $region225: #{tpu_custom_call.1} parent=218 // loop_footer_branch
                %446 = sbr.rel target = $region221
              $region226: #{tpu_custom_call.1} parent=218 // loop_exit
                _
            $region219: #{tpu_custom_call.1} parent=203 // pred_fallthru
              _
          $region204: #{tpu_custom_call.1} parent=199 // pred_fallthru
            _
          // Predicated region
          $region205: #{tpu_custom_call.1} parent=199 // pred_check
            %p421 = pneg %p417
          $region206: #{tpu_custom_call.1} parent=199 // pred_check_branch
            %423 = sbr.rel (%p421) target = $region208
          $region207: #{tpu_custom_call.1} parent=199 // pred_region
            %s424 = sshllo.u32 0, 1
            loop: start=0, step=1, limit=1
            $region209: #{tpu_custom_call.1} parent=207 // loop_pre_header
              _
            $region210: #{tpu_custom_call.1} parent=207 // loop_header
              %s426 = sphi 0, %s430
              %p427 = scmp.ge.s32.totalorder %s426, 1
              %s431 = sphi %s414, %s414
              %s432 = sphi %s415, %s415
            $region211: #{tpu_custom_call.1} parent=207 // loop_header_branch
              %429 = sbr.rel (%p427) target = $region215
            $region212: #{tpu_custom_call.1} parent=207 // loop_body
              %v433 = vld [vmem:[%s431] sm:%s424]
              %434 = vst [vmem:[%s432] sm:%s424] %v433
            $region213: #{tpu_custom_call.1} parent=207 // loop_footer
              %s430 = sadd.s32 1, %s426
            $region214: #{tpu_custom_call.1} parent=207 // loop_footer_branch
              %425 = sbr.rel target = $region210
            $region215: #{tpu_custom_call.1} parent=207 // loop_exit
              _
          $region208: #{tpu_custom_call.1} parent=199 // pred_fallthru
            _
          // Predicated region
          $region227: #{tpu_custom_call.1} parent=199 // pred_check
            _
          $region228: #{tpu_custom_call.1} parent=199 // pred_check_branch
            %458 = sbr.rel (0) target = $region230
          $region229: #{tpu_custom_call.1} parent=199 // pred_region
            %459 = vsyncadd [#allocation2], 16
          $region230: #{tpu_custom_call.1} parent=199 // pred_fallthru
            _
        $region200: #{tpu_custom_call.1} parent=23 // pred_fallthru
          _
        %p460 = pneg %p410
        // Predicated region
        $region231: #{tpu_custom_call.1} parent=23 // pred_check
          _
        $region232: #{tpu_custom_call.1} parent=23 // pred_check_branch
          %462 = sbr.rel (%p410) target = $region234
        $region233: #{tpu_custom_call.1} parent=23 // pred_region
          %s463 = smul.addr %s409, 16
          %s464 = scalar_lea.hbm %s2, %s463
          %s465 = scalar_lea.vmem %s117, 4
          // Predicated region
          $region235: #{tpu_custom_call.1} parent=233 // pred_check
            _
          $region236: #{tpu_custom_call.1} parent=233 // pred_check_branch
            %467 = sbr.rel target = $region238
          $region237: #{tpu_custom_call.1} parent=233 // pred_region
            %468 = sst [smem:[#allocation10]] [#allocation23]
            %469 = sst [smem:[#allocation11]] [#allocation22]
          $region238: #{tpu_custom_call.1} parent=233 // pred_fallthru
            _
          %471 = shalt.err (0)
          %s473 = sshll.u32 %s465, 4
          %s474 = int_to_ptr.vmem [resolvable:$true] %s473
          %476 = dma.hbm_to_vmem [thread:$0]  %s464, 16, %s474, [#allocation2]
        $region234: #{tpu_custom_call.1} parent=23 // pred_fallthru
          _
        %s477 = sadd.s32 %s124, 5
        %s478 = sadd.s32 %s121, %s477
        %s479 = sld [smem:[#allocation4 + %s478]]
        %s480 = ssub.s32 %s479, 150
        %p481 = scmp.lt.s32.totalorder %s479, 150
        // Predicated region
        $region239: #{tpu_custom_call.1} parent=23 // pred_check
          %p482 = pneg %p481
        $region240: #{tpu_custom_call.1} parent=23 // pred_check_branch
          %484 = sbr.rel (%p482) target = $region242
        $region241: #{tpu_custom_call.1} parent=23 // pred_region
          %s485 = scalar_lea.vmem [#allocation5], %s479
          %s486 = scalar_lea.vmem %s117, 5
          %p488 = scmp.lt.u32.totalorder 1, 8
          %p489 = pneg %p488
          // Predicated region
          $region243: #{tpu_custom_call.1} parent=241 // pred_check
            _
          $region244: #{tpu_custom_call.1} parent=241 // pred_check_branch
            %491 = sbr.rel (%p488) target = $region246
          $region245: #{tpu_custom_call.1} parent=241 // pred_region
            %s506 = sand.u32 1, 7
            %p507 = scmp.eq.s32.totalorder %s506, 0
            %p508 = pneg %p507
            // Predicated region
            $region258: #{tpu_custom_call.1} parent=245 // pred_check
              _
            $region259: #{tpu_custom_call.1} parent=245 // pred_check_branch
              %510 = sbr.rel (%p507) target = $region261
            $region260: #{tpu_custom_call.1} parent=245 // pred_region
              %s511 = sand.u32 1, 7
              %s512 = ssub.s32 1, %s511
              %s513 = scalar_lea.vmem %s485, %s512 [#allocation5]
              %s514 = ssub.s32 1, %s511
              %s515 = scalar_lea.vmem %s486, %s514
              %s516 = sshllo.u32 0, %s511
              loop: start=0, step=1, limit=1
              $region262: #{tpu_custom_call.1} parent=260 // loop_pre_header
                _
              $region263: #{tpu_custom_call.1} parent=260 // loop_header
                %s518 = sphi 0, %s522
                %p519 = scmp.ge.s32.totalorder %s518, 1
                %s523 = sphi %s513, %s513
                %s524 = sphi %s515, %s515
              $region264: #{tpu_custom_call.1} parent=260 // loop_header_branch
                %521 = sbr.rel (%p519) target = $region268
              $region265: #{tpu_custom_call.1} parent=260 // loop_body
                %v525 = vld [vmem:[%s523] sm:%s516]
                %526 = vst [vmem:[%s524] sm:%s516] %v525
              $region266: #{tpu_custom_call.1} parent=260 // loop_footer
                %s522 = sadd.s32 1, %s518
              $region267: #{tpu_custom_call.1} parent=260 // loop_footer_branch
                %517 = sbr.rel target = $region263
              $region268: #{tpu_custom_call.1} parent=260 // loop_exit
                _
            $region261: #{tpu_custom_call.1} parent=245 // pred_fallthru
              _
          $region246: #{tpu_custom_call.1} parent=241 // pred_fallthru
            _
          // Predicated region
          $region247: #{tpu_custom_call.1} parent=241 // pred_check
            %p492 = pneg %p488
          $region248: #{tpu_custom_call.1} parent=241 // pred_check_branch
            %494 = sbr.rel (%p492) target = $region250
          $region249: #{tpu_custom_call.1} parent=241 // pred_region
            %s495 = sshllo.u32 0, 1
            loop: start=0, step=1, limit=1
            $region251: #{tpu_custom_call.1} parent=249 // loop_pre_header
              _
            $region252: #{tpu_custom_call.1} parent=249 // loop_header
              %s497 = sphi 0, %s501
              %p498 = scmp.ge.s32.totalorder %s497, 1
              %s502 = sphi %s485, %s485
              %s503 = sphi %s486, %s486
            $region253: #{tpu_custom_call.1} parent=249 // loop_header_branch
              %500 = sbr.rel (%p498) target = $region257
            $region254: #{tpu_custom_call.1} parent=249 // loop_body
              %v504 = vld [vmem:[%s502] sm:%s495]
              %505 = vst [vmem:[%s503] sm:%s495] %v504
            $region255: #{tpu_custom_call.1} parent=249 // loop_footer
              %s501 = sadd.s32 1, %s497
            $region256: #{tpu_custom_call.1} parent=249 // loop_footer_branch
              %496 = sbr.rel target = $region252
            $region257: #{tpu_custom_call.1} parent=249 // loop_exit
              _
          $region250: #{tpu_custom_call.1} parent=241 // pred_fallthru
            _
          // Predicated region
          $region269: #{tpu_custom_call.1} parent=241 // pred_check
            _
          $region270: #{tpu_custom_call.1} parent=241 // pred_check_branch
            %529 = sbr.rel (0) target = $region272
          $region271: #{tpu_custom_call.1} parent=241 // pred_region
            %530 = vsyncadd [#allocation2], 16
          $region272: #{tpu_custom_call.1} parent=241 // pred_fallthru
            _
        $region242: #{tpu_custom_call.1} parent=23 // pred_fallthru
          _
        %p531 = pneg %p481
        // Predicated region
        $region273: #{tpu_custom_call.1} parent=23 // pred_check
          _
        $region274: #{tpu_custom_call.1} parent=23 // pred_check_branch
          %533 = sbr.rel (%p481) target = $region276
        $region275: #{tpu_custom_call.1} parent=23 // pred_region
          %s534 = smul.addr %s480, 16
          %s535 = scalar_lea.hbm %s2, %s534
          %s536 = scalar_lea.vmem %s117, 5
          // Predicated region
          $region277: #{tpu_custom_call.1} parent=275 // pred_check
            _
          $region278: #{tpu_custom_call.1} parent=275 // pred_check_branch
            %538 = sbr.rel target = $region280
          $region279: #{tpu_custom_call.1} parent=275 // pred_region
            %539 = sst [smem:[#allocation10]] [#allocation26]
            %540 = sst [smem:[#allocation11]] [#allocation25]
          $region280: #{tpu_custom_call.1} parent=275 // pred_fallthru
            _
          %542 = shalt.err (0)
          %s544 = sshll.u32 %s536, 4
          %s545 = int_to_ptr.vmem [resolvable:$true] %s544
          %547 = dma.hbm_to_vmem [thread:$0]  %s535, 16, %s545, [#allocation2]
        $region276: #{tpu_custom_call.1} parent=23 // pred_fallthru
          _
        %s548 = sadd.s32 %s124, 6
        %s549 = sadd.s32 %s121, %s548
        %s550 = sld [smem:[#allocation4 + %s549]]
        %s551 = ssub.s32 %s550, 150
        %p552 = scmp.lt.s32.totalorder %s550, 150
        // Predicated region
        $region281: #{tpu_custom_call.1} parent=23 // pred_check
          %p553 = pneg %p552
        $region282: #{tpu_custom_call.1} parent=23 // pred_check_branch
          %555 = sbr.rel (%p553) target = $region284
        $region283: #{tpu_custom_call.1} parent=23 // pred_region
          %s556 = scalar_lea.vmem [#allocation5], %s550
          %s557 = scalar_lea.vmem %s117, 6
          %p559 = scmp.lt.u32.totalorder 1, 8
          %p560 = pneg %p559
          // Predicated region
          $region285: #{tpu_custom_call.1} parent=283 // pred_check
            _
          $region286: #{tpu_custom_call.1} parent=283 // pred_check_branch
            %562 = sbr.rel (%p559) target = $region288
          $region287: #{tpu_custom_call.1} parent=283 // pred_region
            %s577 = sand.u32 1, 7
            %p578 = scmp.eq.s32.totalorder %s577, 0
            %p579 = pneg %p578
            // Predicated region
            $region300: #{tpu_custom_call.1} parent=287 // pred_check
              _
            $region301: #{tpu_custom_call.1} parent=287 // pred_check_branch
              %581 = sbr.rel (%p578) target = $region303
            $region302: #{tpu_custom_call.1} parent=287 // pred_region
              %s582 = sand.u32 1, 7
              %s583 = ssub.s32 1, %s582
              %s584 = scalar_lea.vmem %s556, %s583 [#allocation5]
              %s585 = ssub.s32 1, %s582
              %s586 = scalar_lea.vmem %s557, %s585
              %s587 = sshllo.u32 0, %s582
              loop: start=0, step=1, limit=1
              $region304: #{tpu_custom_call.1} parent=302 // loop_pre_header
                _
              $region305: #{tpu_custom_call.1} parent=302 // loop_header
                %s589 = sphi 0, %s593
                %p590 = scmp.ge.s32.totalorder %s589, 1
                %s594 = sphi %s584, %s584
                %s595 = sphi %s586, %s586
              $region306: #{tpu_custom_call.1} parent=302 // loop_header_branch
                %592 = sbr.rel (%p590) target = $region310
              $region307: #{tpu_custom_call.1} parent=302 // loop_body
                %v596 = vld [vmem:[%s594] sm:%s587]
                %597 = vst [vmem:[%s595] sm:%s587] %v596
              $region308: #{tpu_custom_call.1} parent=302 // loop_footer
                %s593 = sadd.s32 1, %s589
              $region309: #{tpu_custom_call.1} parent=302 // loop_footer_branch
                %588 = sbr.rel target = $region305
              $region310: #{tpu_custom_call.1} parent=302 // loop_exit
                _
            $region303: #{tpu_custom_call.1} parent=287 // pred_fallthru
              _
          $region288: #{tpu_custom_call.1} parent=283 // pred_fallthru
            _
          // Predicated region
          $region289: #{tpu_custom_call.1} parent=283 // pred_check
            %p563 = pneg %p559
          $region290: #{tpu_custom_call.1} parent=283 // pred_check_branch
            %565 = sbr.rel (%p563) target = $region292
          $region291: #{tpu_custom_call.1} parent=283 // pred_region
            %s566 = sshllo.u32 0, 1
            loop: start=0, step=1, limit=1
            $region293: #{tpu_custom_call.1} parent=291 // loop_pre_header
              _
            $region294: #{tpu_custom_call.1} parent=291 // loop_header
              %s568 = sphi 0, %s572
              %p569 = scmp.ge.s32.totalorder %s568, 1
              %s573 = sphi %s556, %s556
              %s574 = sphi %s557, %s557
            $region295: #{tpu_custom_call.1} parent=291 // loop_header_branch
              %571 = sbr.rel (%p569) target = $region299
            $region296: #{tpu_custom_call.1} parent=291 // loop_body
              %v575 = vld [vmem:[%s573] sm:%s566]
              %576 = vst [vmem:[%s574] sm:%s566] %v575
            $region297: #{tpu_custom_call.1} parent=291 // loop_footer
              %s572 = sadd.s32 1, %s568
            $region298: #{tpu_custom_call.1} parent=291 // loop_footer_branch
              %567 = sbr.rel target = $region294
            $region299: #{tpu_custom_call.1} parent=291 // loop_exit
              _
          $region292: #{tpu_custom_call.1} parent=283 // pred_fallthru
            _
          // Predicated region
          $region311: #{tpu_custom_call.1} parent=283 // pred_check
            _
          $region312: #{tpu_custom_call.1} parent=283 // pred_check_branch
            %600 = sbr.rel (0) target = $region314
          $region313: #{tpu_custom_call.1} parent=283 // pred_region
            %601 = vsyncadd [#allocation2], 16
          $region314: #{tpu_custom_call.1} parent=283 // pred_fallthru
            _
        $region284: #{tpu_custom_call.1} parent=23 // pred_fallthru
          _
        %p602 = pneg %p552
        // Predicated region
        $region315: #{tpu_custom_call.1} parent=23 // pred_check
          _
        $region316: #{tpu_custom_call.1} parent=23 // pred_check_branch
          %604 = sbr.rel (%p552) target = $region318
        $region317: #{tpu_custom_call.1} parent=23 // pred_region
          %s605 = smul.addr %s551, 16
          %s606 = scalar_lea.hbm %s2, %s605
          %s607 = scalar_lea.vmem %s117, 6
          // Predicated region
          $region319: #{tpu_custom_call.1} parent=317 // pred_check
            _
          $region320: #{tpu_custom_call.1} parent=317 // pred_check_branch
            %609 = sbr.rel target = $region322
          $region321: #{tpu_custom_call.1} parent=317 // pred_region
            %610 = sst [smem:[#allocation10]] [#allocation29]
            %611 = sst [smem:[#allocation11]] [#allocation28]
          $region322: #{tpu_custom_call.1} parent=317 // pred_fallthru
            _
          %613 = shalt.err (0)
          %s615 = sshll.u32 %s607, 4
          %s616 = int_to_ptr.vmem [resolvable:$true] %s615
          %618 = dma.hbm_to_vmem [thread:$0]  %s606, 16, %s616, [#allocation2]
        $region318: #{tpu_custom_call.1} parent=23 // pred_fallthru
          _
        %s619 = sadd.s32 %s124, 7
        %s620 = sadd.s32 %s121, %s619
        %s621 = sld [smem:[#allocation4 + %s620]]
        %s622 = ssub.s32 %s621, 150
        %p623 = scmp.lt.s32.totalorder %s621, 150
        // Predicated region
        $region323: #{tpu_custom_call.1} parent=23 // pred_check
          %p624 = pneg %p623
        $region324: #{tpu_custom_call.1} parent=23 // pred_check_branch
          %626 = sbr.rel (%p624) target = $region326
        $region325: #{tpu_custom_call.1} parent=23 // pred_region
          %s627 = scalar_lea.vmem [#allocation5], %s621
          %s628 = scalar_lea.vmem %s117, 7
          %p630 = scmp.lt.u32.totalorder 1, 8
          %p631 = pneg %p630
          // Predicated region
          $region327: #{tpu_custom_call.1} parent=325 // pred_check
            _
          $region328: #{tpu_custom_call.1} parent=325 // pred_check_branch
            %633 = sbr.rel (%p630) target = $region330
          $region329: #{tpu_custom_call.1} parent=325 // pred_region
            %s648 = sand.u32 1, 7
            %p649 = scmp.eq.s32.totalorder %s648, 0
            %p650 = pneg %p649
            // Predicated region
            $region342: #{tpu_custom_call.1} parent=329 // pred_check
              _
            $region343: #{tpu_custom_call.1} parent=329 // pred_check_branch
              %652 = sbr.rel (%p649) target = $region345
            $region344: #{tpu_custom_call.1} parent=329 // pred_region
              %s653 = sand.u32 1, 7
              %s654 = ssub.s32 1, %s653
              %s655 = scalar_lea.vmem %s627, %s654 [#allocation5]
              %s656 = ssub.s32 1, %s653
              %s657 = scalar_lea.vmem %s628, %s656
              %s658 = sshllo.u32 0, %s653
              loop: start=0, step=1, limit=1
              $region346: #{tpu_custom_call.1} parent=344 // loop_pre_header
                _
              $region347: #{tpu_custom_call.1} parent=344 // loop_header
                %s660 = sphi 0, %s664
                %p661 = scmp.ge.s32.totalorder %s660, 1
                %s665 = sphi %s655, %s655
                %s666 = sphi %s657, %s657
              $region348: #{tpu_custom_call.1} parent=344 // loop_header_branch
                %663 = sbr.rel (%p661) target = $region352
              $region349: #{tpu_custom_call.1} parent=344 // loop_body
                %v667 = vld [vmem:[%s665] sm:%s658]
                %668 = vst [vmem:[%s666] sm:%s658] %v667
              $region350: #{tpu_custom_call.1} parent=344 // loop_footer
                %s664 = sadd.s32 1, %s660
              $region351: #{tpu_custom_call.1} parent=344 // loop_footer_branch
                %659 = sbr.rel target = $region347
              $region352: #{tpu_custom_call.1} parent=344 // loop_exit
                _
            $region345: #{tpu_custom_call.1} parent=329 // pred_fallthru
              _
          $region330: #{tpu_custom_call.1} parent=325 // pred_fallthru
            _
          // Predicated region
          $region331: #{tpu_custom_call.1} parent=325 // pred_check
            %p634 = pneg %p630
          $region332: #{tpu_custom_call.1} parent=325 // pred_check_branch
            %636 = sbr.rel (%p634) target = $region334
          $region333: #{tpu_custom_call.1} parent=325 // pred_region
            %s637 = sshllo.u32 0, 1
            loop: start=0, step=1, limit=1
            $region335: #{tpu_custom_call.1} parent=333 // loop_pre_header
              _
            $region336: #{tpu_custom_call.1} parent=333 // loop_header
              %s639 = sphi 0, %s643
              %p640 = scmp.ge.s32.totalorder %s639, 1
              %s644 = sphi %s627, %s627
              %s645 = sphi %s628, %s628
            $region337: #{tpu_custom_call.1} parent=333 // loop_header_branch
              %642 = sbr.rel (%p640) target = $region341
            $region338: #{tpu_custom_call.1} parent=333 // loop_body
              %v646 = vld [vmem:[%s644] sm:%s637]
              %647 = vst [vmem:[%s645] sm:%s637] %v646
            $region339: #{tpu_custom_call.1} parent=333 // loop_footer
              %s643 = sadd.s32 1, %s639
            $region340: #{tpu_custom_call.1} parent=333 // loop_footer_branch
              %638 = sbr.rel target = $region336
            $region341: #{tpu_custom_call.1} parent=333 // loop_exit
              _
          $region334: #{tpu_custom_call.1} parent=325 // pred_fallthru
            _
          // Predicated region
          $region353: #{tpu_custom_call.1} parent=325 // pred_check
            _
          $region354: #{tpu_custom_call.1} parent=325 // pred_check_branch
            %671 = sbr.rel (0) target = $region356
          $region355: #{tpu_custom_call.1} parent=325 // pred_region
            %672 = vsyncadd [#allocation2], 16
          $region356: #{tpu_custom_call.1} parent=325 // pred_fallthru
            _
        $region326: #{tpu_custom_call.1} parent=23 // pred_fallthru
          _
        %p673 = pneg %p623
        // Predicated region
        $region357: #{tpu_custom_call.1} parent=23 // pred_check
          _
        $region358: #{tpu_custom_call.1} parent=23 // pred_check_branch
          %675 = sbr.rel (%p623) target = $region360
        $region359: #{tpu_custom_call.1} parent=23 // pred_region
          %s676 = smul.addr %s622, 16
          %s677 = scalar_lea.hbm %s2, %s676
          %s678 = scalar_lea.vmem %s117, 7
          // Predicated region
          $region361: #{tpu_custom_call.1} parent=359 // pred_check
            _
          $region362: #{tpu_custom_call.1} parent=359 // pred_check_branch
            %680 = sbr.rel target = $region364
          $region363: #{tpu_custom_call.1} parent=359 // pred_region
            %681 = sst [smem:[#allocation10]] [#allocation32]
            %682 = sst [smem:[#allocation11]] [#allocation31]
          $region364: #{tpu_custom_call.1} parent=359 // pred_fallthru
            _
          %684 = shalt.err (0)
          %s686 = sshll.u32 %s678, 4
          %s687 = int_to_ptr.vmem [resolvable:$true] %s686
          %689 = dma.hbm_to_vmem [thread:$0]  %s677, 16, %s687, [#allocation2]
        $region360: #{tpu_custom_call.1} parent=23 // pred_fallthru
          _
        %s690 = sadd.s32 %s124, 8
        %s691 = sadd.s32 %s121, %s690
        %s692 = sld [smem:[#allocation4 + %s691]]
        %s693 = ssub.s32 %s692, 150
        %p694 = scmp.lt.s32.totalorder %s692, 150
        // Predicated region
        $region365: #{tpu_custom_call.1} parent=23 // pred_check
          %p695 = pneg %p694
        $region366: #{tpu_custom_call.1} parent=23 // pred_check_branch
          %697 = sbr.rel (%p695) target = $region368
        $region367: #{tpu_custom_call.1} parent=23 // pred_region
          %s698 = scalar_lea.vmem [#allocation5], %s692
          %s699 = scalar_lea.vmem %s117, 8
          %p701 = scmp.lt.u32.totalorder 1, 8
          %p702 = pneg %p701
          // Predicated region
          $region369: #{tpu_custom_call.1} parent=367 // pred_check
            _
          $region370: #{tpu_custom_call.1} parent=367 // pred_check_branch
            %704 = sbr.rel (%p701) target = $region372
          $region371: #{tpu_custom_call.1} parent=367 // pred_region
            %s719 = sand.u32 1, 7
            %p720 = scmp.eq.s32.totalorder %s719, 0
            %p721 = pneg %p720
            // Predicated region
            $region384: #{tpu_custom_call.1} parent=371 // pred_check
              _
            $region385: #{tpu_custom_call.1} parent=371 // pred_check_branch
              %723 = sbr.rel (%p720) target = $region387
            $region386: #{tpu_custom_call.1} parent=371 // pred_region
              %s724 = sand.u32 1, 7
              %s725 = ssub.s32 1, %s724
              %s726 = scalar_lea.vmem %s698, %s725 [#allocation5]
              %s727 = ssub.s32 1, %s724
              %s728 = scalar_lea.vmem %s699, %s727
              %s729 = sshllo.u32 0, %s724
              loop: start=0, step=1, limit=1
              $region388: #{tpu_custom_call.1} parent=386 // loop_pre_header
                _
              $region389: #{tpu_custom_call.1} parent=386 // loop_header
                %s731 = sphi 0, %s735
                %p732 = scmp.ge.s32.totalorder %s731, 1
                %s736 = sphi %s726, %s726
                %s737 = sphi %s728, %s728
              $region390: #{tpu_custom_call.1} parent=386 // loop_header_branch
                %734 = sbr.rel (%p732) target = $region394
              $region391: #{tpu_custom_call.1} parent=386 // loop_body
                %v738 = vld [vmem:[%s736] sm:%s729]
                %739 = vst [vmem:[%s737] sm:%s729] %v738
              $region392: #{tpu_custom_call.1} parent=386 // loop_footer
                %s735 = sadd.s32 1, %s731
              $region393: #{tpu_custom_call.1} parent=386 // loop_footer_branch
                %730 = sbr.rel target = $region389
              $region394: #{tpu_custom_call.1} parent=386 // loop_exit
                _
            $region387: #{tpu_custom_call.1} parent=371 // pred_fallthru
              _
          $region372: #{tpu_custom_call.1} parent=367 // pred_fallthru
            _
          // Predicated region
          $region373: #{tpu_custom_call.1} parent=367 // pred_check
            %p705 = pneg %p701
          $region374: #{tpu_custom_call.1} parent=367 // pred_check_branch
            %707 = sbr.rel (%p705) target = $region376
          $region375: #{tpu_custom_call.1} parent=367 // pred_region
            %s708 = sshllo.u32 0, 1
            loop: start=0, step=1, limit=1
            $region377: #{tpu_custom_call.1} parent=375 // loop_pre_header
              _
            $region378: #{tpu_custom_call.1} parent=375 // loop_header
              %s710 = sphi 0, %s714
              %p711 = scmp.ge.s32.totalorder %s710, 1
              %s715 = sphi %s698, %s698
              %s716 = sphi %s699, %s699
            $region379: #{tpu_custom_call.1} parent=375 // loop_header_branch
              %713 = sbr.rel (%p711) target = $region383
            $region380: #{tpu_custom_call.1} parent=375 // loop_body
              %v717 = vld [vmem:[%s715] sm:%s708]
              %718 = vst [vmem:[%s716] sm:%s708] %v717
            $region381: #{tpu_custom_call.1} parent=375 // loop_footer
              %s714 = sadd.s32 1, %s710
            $region382: #{tpu_custom_call.1} parent=375 // loop_footer_branch
              %709 = sbr.rel target = $region378
            $region383: #{tpu_custom_call.1} parent=375 // loop_exit
              _
          $region376: #{tpu_custom_call.1} parent=367 // pred_fallthru
            _
          // Predicated region
          $region395: #{tpu_custom_call.1} parent=367 // pred_check
            _
          $region396: #{tpu_custom_call.1} parent=367 // pred_check_branch
            %742 = sbr.rel (0) target = $region398
          $region397: #{tpu_custom_call.1} parent=367 // pred_region
            %743 = vsyncadd [#allocation2], 16
          $region398: #{tpu_custom_call.1} parent=367 // pred_fallthru
            _
        $region368: #{tpu_custom_call.1} parent=23 // pred_fallthru
          _
        %p744 = pneg %p694
        // Predicated region
        $region399: #{tpu_custom_call.1} parent=23 // pred_check
          _
        $region400: #{tpu_custom_call.1} parent=23 // pred_check_branch
          %746 = sbr.rel (%p694) target = $region402
        $region401: #{tpu_custom_call.1} parent=23 // pred_region
          %s747 = smul.addr %s693, 16
          %s748 = scalar_lea.hbm %s2, %s747
          %s749 = scalar_lea.vmem %s117, 8
          // Predicated region
          $region403: #{tpu_custom_call.1} parent=401 // pred_check
            _
          $region404: #{tpu_custom_call.1} parent=401 // pred_check_branch
            %751 = sbr.rel target = $region406
          $region405: #{tpu_custom_call.1} parent=401 // pred_region
            %752 = sst [smem:[#allocation10]] [#allocation35]
            %753 = sst [smem:[#allocation11]] [#allocation34]
          $region406: #{tpu_custom_call.1} parent=401 // pred_fallthru
            _
          %755 = shalt.err (0)
          %s757 = sshll.u32 %s749, 4
          %s758 = int_to_ptr.vmem [resolvable:$true] %s757
          %760 = dma.hbm_to_vmem [thread:$0]  %s748, 16, %s758, [#allocation2]
        $region402: #{tpu_custom_call.1} parent=23 // pred_fallthru
          _
        %s761 = sadd.s32 %s124, 9
        %s762 = sadd.s32 %s121, %s761
        %s763 = sld [smem:[#allocation4 + %s762]]
        %s764 = ssub.s32 %s763, 150
        %p765 = scmp.lt.s32.totalorder %s763, 150
        // Predicated region
        $region407: #{tpu_custom_call.1} parent=23 // pred_check
          %p766 = pneg %p765
        $region408: #{tpu_custom_call.1} parent=23 // pred_check_branch
          %768 = sbr.rel (%p766) target = $region410
        $region409: #{tpu_custom_call.1} parent=23 // pred_region
          %s769 = scalar_lea.vmem [#allocation5], %s763
          %s770 = scalar_lea.vmem %s117, 9
          %p772 = scmp.lt.u32.totalorder 1, 8
          %p773 = pneg %p772
          // Predicated region
          $region411: #{tpu_custom_call.1} parent=409 // pred_check
            _
          $region412: #{tpu_custom_call.1} parent=409 // pred_check_branch
            %775 = sbr.rel (%p772) target = $region414
          $region413: #{tpu_custom_call.1} parent=409 // pred_region
            %s790 = sand.u32 1, 7
            %p791 = scmp.eq.s32.totalorder %s790, 0
            %p792 = pneg %p791
            // Predicated region
            $region426: #{tpu_custom_call.1} parent=413 // pred_check
              _
            $region427: #{tpu_custom_call.1} parent=413 // pred_check_branch
              %794 = sbr.rel (%p791) target = $region429
            $region428: #{tpu_custom_call.1} parent=413 // pred_region
              %s795 = sand.u32 1, 7
              %s796 = ssub.s32 1, %s795
              %s797 = scalar_lea.vmem %s769, %s796 [#allocation5]
              %s798 = ssub.s32 1, %s795
              %s799 = scalar_lea.vmem %s770, %s798
              %s800 = sshllo.u32 0, %s795
              loop: start=0, step=1, limit=1
              $region430: #{tpu_custom_call.1} parent=428 // loop_pre_header
                _
              $region431: #{tpu_custom_call.1} parent=428 // loop_header
                %s802 = sphi 0, %s806
                %p803 = scmp.ge.s32.totalorder %s802, 1
                %s807 = sphi %s797, %s797
                %s808 = sphi %s799, %s799
              $region432: #{tpu_custom_call.1} parent=428 // loop_header_branch
                %805 = sbr.rel (%p803) target = $region436
              $region433: #{tpu_custom_call.1} parent=428 // loop_body
                %v809 = vld [vmem:[%s807] sm:%s800]
                %810 = vst [vmem:[%s808] sm:%s800] %v809
              $region434: #{tpu_custom_call.1} parent=428 // loop_footer
                %s806 = sadd.s32 1, %s802
              $region435: #{tpu_custom_call.1} parent=428 // loop_footer_branch
                %801 = sbr.rel target = $region431
              $region436: #{tpu_custom_call.1} parent=428 // loop_exit
                _
            $region429: #{tpu_custom_call.1} parent=413 // pred_fallthru
              _
          $region414: #{tpu_custom_call.1} parent=409 // pred_fallthru
            _
          // Predicated region
          $region415: #{tpu_custom_call.1} parent=409 // pred_check
            %p776 = pneg %p772
          $region416: #{tpu_custom_call.1} parent=409 // pred_check_branch
            %778 = sbr.rel (%p776) target = $region418
          $region417: #{tpu_custom_call.1} parent=409 // pred_region
            %s779 = sshllo.u32 0, 1
            loop: start=0, step=1, limit=1
            $region419: #{tpu_custom_call.1} parent=417 // loop_pre_header
              _
            $region420: #{tpu_custom_call.1} parent=417 // loop_header
              %s781 = sphi 0, %s785
              %p782 = scmp.ge.s32.totalorder %s781, 1
              %s786 = sphi %s769, %s769
              %s787 = sphi %s770, %s770
            $region421: #{tpu_custom_call.1} parent=417 // loop_header_branch
              %784 = sbr.rel (%p782) target = $region425
            $region422: #{tpu_custom_call.1} parent=417 // loop_body
              %v788 = vld [vmem:[%s786] sm:%s779]
              %789 = vst [vmem:[%s787] sm:%s779] %v788
            $region423: #{tpu_custom_call.1} parent=417 // loop_footer
              %s785 = sadd.s32 1, %s781
            $region424: #{tpu_custom_call.1} parent=417 // loop_footer_branch
              %780 = sbr.rel target = $region420
            $region425: #{tpu_custom_call.1} parent=417 // loop_exit
              _
          $region418: #{tpu_custom_call.1} parent=409 // pred_fallthru
            _
          // Predicated region
          $region437: #{tpu_custom_call.1} parent=409 // pred_check
            _
          $region438: #{tpu_custom_call.1} parent=409 // pred_check_branch
            %813 = sbr.rel (0) target = $region440
          $region439: #{tpu_custom_call.1} parent=409 // pred_region
            %814 = vsyncadd [#allocation2], 16
          $region440: #{tpu_custom_call.1} parent=409 // pred_fallthru
            _
        $region410: #{tpu_custom_call.1} parent=23 // pred_fallthru
          _
        %p815 = pneg %p765
        // Predicated region
        $region441: #{tpu_custom_call.1} parent=23 // pred_check
          _
        $region442: #{tpu_custom_call.1} parent=23 // pred_check_branch
          %817 = sbr.rel (%p765) target = $region444
        $region443: #{tpu_custom_call.1} parent=23 // pred_region
          %s818 = smul.addr %s764, 16
          %s819 = scalar_lea.hbm %s2, %s818
          %s820 = scalar_lea.vmem %s117, 9
          // Predicated region
          $region445: #{tpu_custom_call.1} parent=443 // pred_check
            _
          $region446: #{tpu_custom_call.1} parent=443 // pred_check_branch
            %822 = sbr.rel target = $region448
          $region447: #{tpu_custom_call.1} parent=443 // pred_region
            %823 = sst [smem:[#allocation10]] [#allocation38]
            %824 = sst [smem:[#allocation11]] [#allocation37]
          $region448: #{tpu_custom_call.1} parent=443 // pred_fallthru
            _
          %826 = shalt.err (0)
          %s828 = sshll.u32 %s820, 4
          %s829 = int_to_ptr.vmem [resolvable:$true] %s828
          %831 = dma.hbm_to_vmem [thread:$0]  %s819, 16, %s829, [#allocation2]
        $region444: #{tpu_custom_call.1} parent=23 // pred_fallthru
          _
        %s832 = sadd.s32 %s124, 10
        %s833 = sadd.s32 %s121, %s832
        %s834 = sld [smem:[#allocation4 + %s833]]
        %s835 = ssub.s32 %s834, 150
        %p836 = scmp.lt.s32.totalorder %s834, 150
        // Predicated region
        $region449: #{tpu_custom_call.1} parent=23 // pred_check
          %p837 = pneg %p836
        $region450: #{tpu_custom_call.1} parent=23 // pred_check_branch
          %839 = sbr.rel (%p837) target = $region452
        $region451: #{tpu_custom_call.1} parent=23 // pred_region
          %s840 = scalar_lea.vmem [#allocation5], %s834
          %s841 = scalar_lea.vmem %s117, 10
          %p843 = scmp.lt.u32.totalorder 1, 8
          %p844 = pneg %p843
          // Predicated region
          $region453: #{tpu_custom_call.1} parent=451 // pred_check
            _
          $region454: #{tpu_custom_call.1} parent=451 // pred_check_branch
            %846 = sbr.rel (%p843) target = $region456
          $region455: #{tpu_custom_call.1} parent=451 // pred_region
            %s861 = sand.u32 1, 7
            %p862 = scmp.eq.s32.totalorder %s861, 0
            %p863 = pneg %p862
            // Predicated region
            $region468: #{tpu_custom_call.1} parent=455 // pred_check
              _
            $region469: #{tpu_custom_call.1} parent=455 // pred_check_branch
              %865 = sbr.rel (%p862) target = $region471
            $region470: #{tpu_custom_call.1} parent=455 // pred_region
              %s866 = sand.u32 1, 7
              %s867 = ssub.s32 1, %s866
              %s868 = scalar_lea.vmem %s840, %s867 [#allocation5]
              %s869 = ssub.s32 1, %s866
              %s870 = scalar_lea.vmem %s841, %s869
              %s871 = sshllo.u32 0, %s866
              loop: start=0, step=1, limit=1
              $region472: #{tpu_custom_call.1} parent=470 // loop_pre_header
                _
              $region473: #{tpu_custom_call.1} parent=470 // loop_header
                %s873 = sphi 0, %s877
                %p874 = scmp.ge.s32.totalorder %s873, 1
                %s878 = sphi %s868, %s868
                %s879 = sphi %s870, %s870
              $region474: #{tpu_custom_call.1} parent=470 // loop_header_branch
                %876 = sbr.rel (%p874) target = $region478
              $region475: #{tpu_custom_call.1} parent=470 // loop_body
                %v880 = vld [vmem:[%s878] sm:%s871]
                %881 = vst [vmem:[%s879] sm:%s871] %v880
              $region476: #{tpu_custom_call.1} parent=470 // loop_footer
                %s877 = sadd.s32 1, %s873
              $region477: #{tpu_custom_call.1} parent=470 // loop_footer_branch
                %872 = sbr.rel target = $region473
              $region478: #{tpu_custom_call.1} parent=470 // loop_exit
                _
            $region471: #{tpu_custom_call.1} parent=455 // pred_fallthru
              _
          $region456: #{tpu_custom_call.1} parent=451 // pred_fallthru
            _
          // Predicated region
          $region457: #{tpu_custom_call.1} parent=451 // pred_check
            %p847 = pneg %p843
          $region458: #{tpu_custom_call.1} parent=451 // pred_check_branch
            %849 = sbr.rel (%p847) target = $region460
          $region459: #{tpu_custom_call.1} parent=451 // pred_region
            %s850 = sshllo.u32 0, 1
            loop: start=0, step=1, limit=1
            $region461: #{tpu_custom_call.1} parent=459 // loop_pre_header
              _
            $region462: #{tpu_custom_call.1} parent=459 // loop_header
              %s852 = sphi 0, %s856
              %p853 = scmp.ge.s32.totalorder %s852, 1
              %s857 = sphi %s840, %s840
              %s858 = sphi %s841, %s841
            $region463: #{tpu_custom_call.1} parent=459 // loop_header_branch
              %855 = sbr.rel (%p853) target = $region467
            $region464: #{tpu_custom_call.1} parent=459 // loop_body
              %v859 = vld [vmem:[%s857] sm:%s850]
              %860 = vst [vmem:[%s858] sm:%s850] %v859
            $region465: #{tpu_custom_call.1} parent=459 // loop_footer
              %s856 = sadd.s32 1, %s852
            $region466: #{tpu_custom_call.1} parent=459 // loop_footer_branch
              %851 = sbr.rel target = $region462
            $region467: #{tpu_custom_call.1} parent=459 // loop_exit
              _
          $region460: #{tpu_custom_call.1} parent=451 // pred_fallthru
            _
          // Predicated region
          $region479: #{tpu_custom_call.1} parent=451 // pred_check
            _
          $region480: #{tpu_custom_call.1} parent=451 // pred_check_branch
            %884 = sbr.rel (0) target = $region482
          $region481: #{tpu_custom_call.1} parent=451 // pred_region
            %885 = vsyncadd [#allocation2], 16
          $region482: #{tpu_custom_call.1} parent=451 // pred_fallthru
            _
        $region452: #{tpu_custom_call.1} parent=23 // pred_fallthru
          _
        %p886 = pneg %p836
        // Predicated region
        $region483: #{tpu_custom_call.1} parent=23 // pred_check
          _
        $region484: #{tpu_custom_call.1} parent=23 // pred_check_branch
          %888 = sbr.rel (%p836) target = $region486
        $region485: #{tpu_custom_call.1} parent=23 // pred_region
          %s889 = smul.addr %s835, 16
          %s890 = scalar_lea.hbm %s2, %s889
          %s891 = scalar_lea.vmem %s117, 10
          // Predicated region
          $region487: #{tpu_custom_call.1} parent=485 // pred_check
            _
          $region488: #{tpu_custom_call.1} parent=485 // pred_check_branch
            %893 = sbr.rel target = $region490
          $region489: #{tpu_custom_call.1} parent=485 // pred_region
            %894 = sst [smem:[#allocation10]] [#allocation41]
            %895 = sst [smem:[#allocation11]] [#allocation40]
          $region490: #{tpu_custom_call.1} parent=485 // pred_fallthru
            _
          %897 = shalt.err (0)
          %s899 = sshll.u32 %s891, 4
          %s900 = int_to_ptr.vmem [resolvable:$true] %s899
          %902 = dma.hbm_to_vmem [thread:$0]  %s890, 16, %s900, [#allocation2]
        $region486: #{tpu_custom_call.1} parent=23 // pred_fallthru
          _
        %s903 = sadd.s32 %s124, 11
        %s904 = sadd.s32 %s121, %s903
        %s905 = sld [smem:[#allocation4 + %s904]]
        %s906 = ssub.s32 %s905, 150
        %p907 = scmp.lt.s32.totalorder %s905, 150
        // Predicated region
        $region491: #{tpu_custom_call.1} parent=23 // pred_check
          %p908 = pneg %p907
        $region492: #{tpu_custom_call.1} parent=23 // pred_check_branch
          %910 = sbr.rel (%p908) target = $region494
        $region493: #{tpu_custom_call.1} parent=23 // pred_region
          %s911 = scalar_lea.vmem [#allocation5], %s905
          %s912 = scalar_lea.vmem %s117, 11
          %p914 = scmp.lt.u32.totalorder 1, 8
          %p915 = pneg %p914
          // Predicated region
          $region495: #{tpu_custom_call.1} parent=493 // pred_check
            _
          $region496: #{tpu_custom_call.1} parent=493 // pred_check_branch
            %917 = sbr.rel (%p914) target = $region498
          $region497: #{tpu_custom_call.1} parent=493 // pred_region
            %s932 = sand.u32 1, 7
            %p933 = scmp.eq.s32.totalorder %s932, 0
            %p934 = pneg %p933
            // Predicated region
            $region510: #{tpu_custom_call.1} parent=497 // pred_check
              _
            $region511: #{tpu_custom_call.1} parent=497 // pred_check_branch
              %936 = sbr.rel (%p933) target = $region513
            $region512: #{tpu_custom_call.1} parent=497 // pred_region
              %s937 = sand.u32 1, 7
              %s938 = ssub.s32 1, %s937
              %s939 = scalar_lea.vmem %s911, %s938 [#allocation5]
              %s940 = ssub.s32 1, %s937
              %s941 = scalar_lea.vmem %s912, %s940
              %s942 = sshllo.u32 0, %s937
              loop: start=0, step=1, limit=1
              $region514: #{tpu_custom_call.1} parent=512 // loop_pre_header
                _
              $region515: #{tpu_custom_call.1} parent=512 // loop_header
                %s944 = sphi 0, %s948
                %p945 = scmp.ge.s32.totalorder %s944, 1
                %s949 = sphi %s939, %s939
                %s950 = sphi %s941, %s941
              $region516: #{tpu_custom_call.1} parent=512 // loop_header_branch
                %947 = sbr.rel (%p945) target = $region520
              $region517: #{tpu_custom_call.1} parent=512 // loop_body
                %v951 = vld [vmem:[%s949] sm:%s942]
                %952 = vst [vmem:[%s950] sm:%s942] %v951
              $region518: #{tpu_custom_call.1} parent=512 // loop_footer
                %s948 = sadd.s32 1, %s944
              $region519: #{tpu_custom_call.1} parent=512 // loop_footer_branch
                %943 = sbr.rel target = $region515
              $region520: #{tpu_custom_call.1} parent=512 // loop_exit
                _
            $region513: #{tpu_custom_call.1} parent=497 // pred_fallthru
              _
          $region498: #{tpu_custom_call.1} parent=493 // pred_fallthru
            _
          // Predicated region
          $region499: #{tpu_custom_call.1} parent=493 // pred_check
            %p918 = pneg %p914
          $region500: #{tpu_custom_call.1} parent=493 // pred_check_branch
            %920 = sbr.rel (%p918) target = $region502
          $region501: #{tpu_custom_call.1} parent=493 // pred_region
            %s921 = sshllo.u32 0, 1
            loop: start=0, step=1, limit=1
            $region503: #{tpu_custom_call.1} parent=501 // loop_pre_header
              _
            $region504: #{tpu_custom_call.1} parent=501 // loop_header
              %s923 = sphi 0, %s927
              %p924 = scmp.ge.s32.totalorder %s923, 1
              %s928 = sphi %s911, %s911
              %s929 = sphi %s912, %s912
            $region505: #{tpu_custom_call.1} parent=501 // loop_header_branch
              %926 = sbr.rel (%p924) target = $region509
            $region506: #{tpu_custom_call.1} parent=501 // loop_body
              %v930 = vld [vmem:[%s928] sm:%s921]
              %931 = vst [vmem:[%s929] sm:%s921] %v930
            $region507: #{tpu_custom_call.1} parent=501 // loop_footer
              %s927 = sadd.s32 1, %s923
            $region508: #{tpu_custom_call.1} parent=501 // loop_footer_branch
              %922 = sbr.rel target = $region504
            $region509: #{tpu_custom_call.1} parent=501 // loop_exit
              _
          $region502: #{tpu_custom_call.1} parent=493 // pred_fallthru
            _
          // Predicated region
          $region521: #{tpu_custom_call.1} parent=493 // pred_check
            _
          $region522: #{tpu_custom_call.1} parent=493 // pred_check_branch
            %955 = sbr.rel (0) target = $region524
          $region523: #{tpu_custom_call.1} parent=493 // pred_region
            %956 = vsyncadd [#allocation2], 16
          $region524: #{tpu_custom_call.1} parent=493 // pred_fallthru
            _
        $region494: #{tpu_custom_call.1} parent=23 // pred_fallthru
          _
        %p957 = pneg %p907
        // Predicated region
        $region525: #{tpu_custom_call.1} parent=23 // pred_check
          _
        $region526: #{tpu_custom_call.1} parent=23 // pred_check_branch
          %959 = sbr.rel (%p907) target = $region528
        $region527: #{tpu_custom_call.1} parent=23 // pred_region
          %s960 = smul.addr %s906, 16
          %s961 = scalar_lea.hbm %s2, %s960
          %s962 = scalar_lea.vmem %s117, 11
          // Predicated region
          $region529: #{tpu_custom_call.1} parent=527 // pred_check
            _
          $region530: #{tpu_custom_call.1} parent=527 // pred_check_branch
            %964 = sbr.rel target = $region532
          $region531: #{tpu_custom_call.1} parent=527 // pred_region
            %965 = sst [smem:[#allocation10]] [#allocation44]
            %966 = sst [smem:[#allocation11]] [#allocation43]
          $region532: #{tpu_custom_call.1} parent=527 // pred_fallthru
            _
          %968 = shalt.err (0)
          %s970 = sshll.u32 %s962, 4
          %s971 = int_to_ptr.vmem [resolvable:$true] %s970
          %973 = dma.hbm_to_vmem [thread:$0]  %s961, 16, %s971, [#allocation2]
        $region528: #{tpu_custom_call.1} parent=23 // pred_fallthru
          _
        %s974 = sadd.s32 %s124, 12
        %s975 = sadd.s32 %s121, %s974
        %s976 = sld [smem:[#allocation4 + %s975]]
        %s977 = ssub.s32 %s976, 150
        %p978 = scmp.lt.s32.totalorder %s976, 150
        // Predicated region
        $region533: #{tpu_custom_call.1} parent=23 // pred_check
          %p979 = pneg %p978
        $region534: #{tpu_custom_call.1} parent=23 // pred_check_branch
          %981 = sbr.rel (%p979) target = $region536
        $region535: #{tpu_custom_call.1} parent=23 // pred_region
          %s982 = scalar_lea.vmem [#allocation5], %s976
          %s983 = scalar_lea.vmem %s117, 12
          %p985 = scmp.lt.u32.totalorder 1, 8
          %p986 = pneg %p985
          // Predicated region
          $region537: #{tpu_custom_call.1} parent=535 // pred_check
            _
          $region538: #{tpu_custom_call.1} parent=535 // pred_check_branch
            %988 = sbr.rel (%p985) target = $region540
          $region539: #{tpu_custom_call.1} parent=535 // pred_region
            %s1003 = sand.u32 1, 7
            %p1004 = scmp.eq.s32.totalorder %s1003, 0
            %p1005 = pneg %p1004
            // Predicated region
            $region552: #{tpu_custom_call.1} parent=539 // pred_check
              _
            $region553: #{tpu_custom_call.1} parent=539 // pred_check_branch
              %1007 = sbr.rel (%p1004) target = $region555
            $region554: #{tpu_custom_call.1} parent=539 // pred_region
              %s1008 = sand.u32 1, 7
              %s1009 = ssub.s32 1, %s1008
              %s1010 = scalar_lea.vmem %s982, %s1009 [#allocation5]
              %s1011 = ssub.s32 1, %s1008
              %s1012 = scalar_lea.vmem %s983, %s1011
              %s1013 = sshllo.u32 0, %s1008
              loop: start=0, step=1, limit=1
              $region556: #{tpu_custom_call.1} parent=554 // loop_pre_header
                _
              $region557: #{tpu_custom_call.1} parent=554 // loop_header
                %s1015 = sphi 0, %s1019
                %p1016 = scmp.ge.s32.totalorder %s1015, 1
                %s1020 = sphi %s1010, %s1010
                %s1021 = sphi %s1012, %s1012
              $region558: #{tpu_custom_call.1} parent=554 // loop_header_branch
                %1018 = sbr.rel (%p1016) target = $region562
              $region559: #{tpu_custom_call.1} parent=554 // loop_body
                %v1022 = vld [vmem:[%s1020] sm:%s1013]
                %1023 = vst [vmem:[%s1021] sm:%s1013] %v1022
              $region560: #{tpu_custom_call.1} parent=554 // loop_footer
                %s1019 = sadd.s32 1, %s1015
              $region561: #{tpu_custom_call.1} parent=554 // loop_footer_branch
                %1014 = sbr.rel target = $region557
              $region562: #{tpu_custom_call.1} parent=554 // loop_exit
                _
            $region555: #{tpu_custom_call.1} parent=539 // pred_fallthru
              _
          $region540: #{tpu_custom_call.1} parent=535 // pred_fallthru
            _
          // Predicated region
          $region541: #{tpu_custom_call.1} parent=535 // pred_check
            %p989 = pneg %p985
          $region542: #{tpu_custom_call.1} parent=535 // pred_check_branch
            %991 = sbr.rel (%p989) target = $region544
          $region543: #{tpu_custom_call.1} parent=535 // pred_region
            %s992 = sshllo.u32 0, 1
            loop: start=0, step=1, limit=1
            $region545: #{tpu_custom_call.1} parent=543 // loop_pre_header
              _
            $region546: #{tpu_custom_call.1} parent=543 // loop_header
              %s994 = sphi 0, %s998
              %p995 = scmp.ge.s32.totalorder %s994, 1
              %s999 = sphi %s982, %s982
              %s1000 = sphi %s983, %s983
            $region547: #{tpu_custom_call.1} parent=543 // loop_header_branch
              %997 = sbr.rel (%p995) target = $region551
            $region548: #{tpu_custom_call.1} parent=543 // loop_body
              %v1001 = vld [vmem:[%s999] sm:%s992]
              %1002 = vst [vmem:[%s1000] sm:%s992] %v1001
            $region549: #{tpu_custom_call.1} parent=543 // loop_footer
              %s998 = sadd.s32 1, %s994
            $region550: #{tpu_custom_call.1} parent=543 // loop_footer_branch
              %993 = sbr.rel target = $region546
            $region551: #{tpu_custom_call.1} parent=543 // loop_exit
              _
          $region544: #{tpu_custom_call.1} parent=535 // pred_fallthru
            _
          // Predicated region
          $region563: #{tpu_custom_call.1} parent=535 // pred_check
            _
          $region564: #{tpu_custom_call.1} parent=535 // pred_check_branch
            %1026 = sbr.rel (0) target = $region566
          $region565: #{tpu_custom_call.1} parent=535 // pred_region
            %1027 = vsyncadd [#allocation2], 16
          $region566: #{tpu_custom_call.1} parent=535 // pred_fallthru
            _
        $region536: #{tpu_custom_call.1} parent=23 // pred_fallthru
          _
        %p1028 = pneg %p978
        // Predicated region
        $region567: #{tpu_custom_call.1} parent=23 // pred_check
          _
        $region568: #{tpu_custom_call.1} parent=23 // pred_check_branch
          %1030 = sbr.rel (%p978) target = $region570
        $region569: #{tpu_custom_call.1} parent=23 // pred_region
          %s1031 = smul.addr %s977, 16
          %s1032 = scalar_lea.hbm %s2, %s1031
          %s1033 = scalar_lea.vmem %s117, 12
          // Predicated region
          $region571: #{tpu_custom_call.1} parent=569 // pred_check
            _
          $region572: #{tpu_custom_call.1} parent=569 // pred_check_branch
            %1035 = sbr.rel target = $region574
          $region573: #{tpu_custom_call.1} parent=569 // pred_region
            %1036 = sst [smem:[#allocation10]] [#allocation47]
            %1037 = sst [smem:[#allocation11]] [#allocation46]
          $region574: #{tpu_custom_call.1} parent=569 // pred_fallthru
            _
          %1039 = shalt.err (0)
          %s1041 = sshll.u32 %s1033, 4
          %s1042 = int_to_ptr.vmem [resolvable:$true] %s1041
          %1044 = dma.hbm_to_vmem [thread:$0]  %s1032, 16, %s1042, [#allocation2]
        $region570: #{tpu_custom_call.1} parent=23 // pred_fallthru
          _
        %s1045 = sadd.s32 %s124, 13
        %s1046 = sadd.s32 %s121, %s1045
        %s1047 = sld [smem:[#allocation4 + %s1046]]
        %s1048 = ssub.s32 %s1047, 150
        %p1049 = scmp.lt.s32.totalorder %s1047, 150
        // Predicated region
        $region575: #{tpu_custom_call.1} parent=23 // pred_check
          %p1050 = pneg %p1049
        $region576: #{tpu_custom_call.1} parent=23 // pred_check_branch
          %1052 = sbr.rel (%p1050) target = $region578
        $region577: #{tpu_custom_call.1} parent=23 // pred_region
          %s1053 = scalar_lea.vmem [#allocation5], %s1047
          %s1054 = scalar_lea.vmem %s117, 13
          %p1056 = scmp.lt.u32.totalorder 1, 8
          %p1057 = pneg %p1056
          // Predicated region
          $region579: #{tpu_custom_call.1} parent=577 // pred_check
            _
          $region580: #{tpu_custom_call.1} parent=577 // pred_check_branch
            %1059 = sbr.rel (%p1056) target = $region582
          $region581: #{tpu_custom_call.1} parent=577 // pred_region
            %s1074 = sand.u32 1, 7
            %p1075 = scmp.eq.s32.totalorder %s1074, 0
            %p1076 = pneg %p1075
            // Predicated region
            $region594: #{tpu_custom_call.1} parent=581 // pred_check
              _
            $region595: #{tpu_custom_call.1} parent=581 // pred_check_branch
              %1078 = sbr.rel (%p1075) target = $region597
            $region596: #{tpu_custom_call.1} parent=581 // pred_region
              %s1079 = sand.u32 1, 7
              %s1080 = ssub.s32 1, %s1079
              %s1081 = scalar_lea.vmem %s1053, %s1080 [#allocation5]
              %s1082 = ssub.s32 1, %s1079
              %s1083 = scalar_lea.vmem %s1054, %s1082
              %s1084 = sshllo.u32 0, %s1079
              loop: start=0, step=1, limit=1
              $region598: #{tpu_custom_call.1} parent=596 // loop_pre_header
                _
              $region599: #{tpu_custom_call.1} parent=596 // loop_header
                %s1086 = sphi 0, %s1090
                %p1087 = scmp.ge.s32.totalorder %s1086, 1
                %s1091 = sphi %s1081, %s1081
                %s1092 = sphi %s1083, %s1083
              $region600: #{tpu_custom_call.1} parent=596 // loop_header_branch
                %1089 = sbr.rel (%p1087) target = $region604
              $region601: #{tpu_custom_call.1} parent=596 // loop_body
                %v1093 = vld [vmem:[%s1091] sm:%s1084]
                %1094 = vst [vmem:[%s1092] sm:%s1084] %v1093
              $region602: #{tpu_custom_call.1} parent=596 // loop_footer
                %s1090 = sadd.s32 1, %s1086
              $region603: #{tpu_custom_call.1} parent=596 // loop_footer_branch
                %1085 = sbr.rel target = $region599
              $region604: #{tpu_custom_call.1} parent=596 // loop_exit
                _
            $region597: #{tpu_custom_call.1} parent=581 // pred_fallthru
              _
          $region582: #{tpu_custom_call.1} parent=577 // pred_fallthru
            _
          // Predicated region
          $region583: #{tpu_custom_call.1} parent=577 // pred_check
            %p1060 = pneg %p1056
          $region584: #{tpu_custom_call.1} parent=577 // pred_check_branch
            %1062 = sbr.rel (%p1060) target = $region586
          $region585: #{tpu_custom_call.1} parent=577 // pred_region
            %s1063 = sshllo.u32 0, 1
            loop: start=0, step=1, limit=1
            $region587: #{tpu_custom_call.1} parent=585 // loop_pre_header
              _
            $region588: #{tpu_custom_call.1} parent=585 // loop_header
              %s1065 = sphi 0, %s1069
              %p1066 = scmp.ge.s32.totalorder %s1065, 1
              %s1070 = sphi %s1053, %s1053
              %s1071 = sphi %s1054, %s1054
            $region589: #{tpu_custom_call.1} parent=585 // loop_header_branch
              %1068 = sbr.rel (%p1066) target = $region593
            $region590: #{tpu_custom_call.1} parent=585 // loop_body
              %v1072 = vld [vmem:[%s1070] sm:%s1063]
              %1073 = vst [vmem:[%s1071] sm:%s1063] %v1072
            $region591: #{tpu_custom_call.1} parent=585 // loop_footer
              %s1069 = sadd.s32 1, %s1065
            $region592: #{tpu_custom_call.1} parent=585 // loop_footer_branch
              %1064 = sbr.rel target = $region588
            $region593: #{tpu_custom_call.1} parent=585 // loop_exit
              _
          $region586: #{tpu_custom_call.1} parent=577 // pred_fallthru
            _
          // Predicated region
          $region605: #{tpu_custom_call.1} parent=577 // pred_check
            _
          $region606: #{tpu_custom_call.1} parent=577 // pred_check_branch
            %1097 = sbr.rel (0) target = $region608
          $region607: #{tpu_custom_call.1} parent=577 // pred_region
            %1098 = vsyncadd [#allocation2], 16
          $region608: #{tpu_custom_call.1} parent=577 // pred_fallthru
            _
        $region578: #{tpu_custom_call.1} parent=23 // pred_fallthru
          _
        %p1099 = pneg %p1049
        // Predicated region
        $region609: #{tpu_custom_call.1} parent=23 // pred_check
          _
        $region610: #{tpu_custom_call.1} parent=23 // pred_check_branch
          %1101 = sbr.rel (%p1049) target = $region612
        $region611: #{tpu_custom_call.1} parent=23 // pred_region
          %s1102 = smul.addr %s1048, 16
          %s1103 = scalar_lea.hbm %s2, %s1102
          %s1104 = scalar_lea.vmem %s117, 13
          // Predicated region
          $region613: #{tpu_custom_call.1} parent=611 // pred_check
            _
          $region614: #{tpu_custom_call.1} parent=611 // pred_check_branch
            %1106 = sbr.rel target = $region616
          $region615: #{tpu_custom_call.1} parent=611 // pred_region
            %1107 = sst [smem:[#allocation10]] [#allocation50]
            %1108 = sst [smem:[#allocation11]] [#allocation49]
          $region616: #{tpu_custom_call.1} parent=611 // pred_fallthru
            _
          %1110 = shalt.err (0)
          %s1112 = sshll.u32 %s1104, 4
          %s1113 = int_to_ptr.vmem [resolvable:$true] %s1112
          %1115 = dma.hbm_to_vmem [thread:$0]  %s1103, 16, %s1113, [#allocation2]
        $region612: #{tpu_custom_call.1} parent=23 // pred_fallthru
          _
        %s1116 = sadd.s32 %s124, 14
        %s1117 = sadd.s32 %s121, %s1116
        %s1118 = sld [smem:[#allocation4 + %s1117]]
        %s1119 = ssub.s32 %s1118, 150
        %p1120 = scmp.lt.s32.totalorder %s1118, 150
        // Predicated region
        $region617: #{tpu_custom_call.1} parent=23 // pred_check
          %p1121 = pneg %p1120
        $region618: #{tpu_custom_call.1} parent=23 // pred_check_branch
          %1123 = sbr.rel (%p1121) target = $region620
        $region619: #{tpu_custom_call.1} parent=23 // pred_region
          %s1124 = scalar_lea.vmem [#allocation5], %s1118
          %s1125 = scalar_lea.vmem %s117, 14
          %p1127 = scmp.lt.u32.totalorder 1, 8
          %p1128 = pneg %p1127
          // Predicated region
          $region621: #{tpu_custom_call.1} parent=619 // pred_check
            _
          $region622: #{tpu_custom_call.1} parent=619 // pred_check_branch
            %1130 = sbr.rel (%p1127) target = $region624
          $region623: #{tpu_custom_call.1} parent=619 // pred_region
            %s1145 = sand.u32 1, 7
            %p1146 = scmp.eq.s32.totalorder %s1145, 0
            %p1147 = pneg %p1146
            // Predicated region
            $region636: #{tpu_custom_call.1} parent=623 // pred_check
              _
            $region637: #{tpu_custom_call.1} parent=623 // pred_check_branch
              %1149 = sbr.rel (%p1146) target = $region639
            $region638: #{tpu_custom_call.1} parent=623 // pred_region
              %s1150 = sand.u32 1, 7
              %s1151 = ssub.s32 1, %s1150
              %s1152 = scalar_lea.vmem %s1124, %s1151 [#allocation5]
              %s1153 = ssub.s32 1, %s1150
              %s1154 = scalar_lea.vmem %s1125, %s1153
              %s1155 = sshllo.u32 0, %s1150
              loop: start=0, step=1, limit=1
              $region640: #{tpu_custom_call.1} parent=638 // loop_pre_header
                _
              $region641: #{tpu_custom_call.1} parent=638 // loop_header
                %s1157 = sphi 0, %s1161
                %p1158 = scmp.ge.s32.totalorder %s1157, 1
                %s1162 = sphi %s1152, %s1152
                %s1163 = sphi %s1154, %s1154
              $region642: #{tpu_custom_call.1} parent=638 // loop_header_branch
                %1160 = sbr.rel (%p1158) target = $region646
              $region643: #{tpu_custom_call.1} parent=638 // loop_body
                %v1164 = vld [vmem:[%s1162] sm:%s1155]
                %1165 = vst [vmem:[%s1163] sm:%s1155] %v1164
              $region644: #{tpu_custom_call.1} parent=638 // loop_footer
                %s1161 = sadd.s32 1, %s1157
              $region645: #{tpu_custom_call.1} parent=638 // loop_footer_branch
                %1156 = sbr.rel target = $region641
              $region646: #{tpu_custom_call.1} parent=638 // loop_exit
                _
            $region639: #{tpu_custom_call.1} parent=623 // pred_fallthru
              _
          $region624: #{tpu_custom_call.1} parent=619 // pred_fallthru
            _
          // Predicated region
          $region625: #{tpu_custom_call.1} parent=619 // pred_check
            %p1131 = pneg %p1127
          $region626: #{tpu_custom_call.1} parent=619 // pred_check_branch
            %1133 = sbr.rel (%p1131) target = $region628
          $region627: #{tpu_custom_call.1} parent=619 // pred_region
            %s1134 = sshllo.u32 0, 1
            loop: start=0, step=1, limit=1
            $region629: #{tpu_custom_call.1} parent=627 // loop_pre_header
              _
            $region630: #{tpu_custom_call.1} parent=627 // loop_header
              %s1136 = sphi 0, %s1140
              %p1137 = scmp.ge.s32.totalorder %s1136, 1
              %s1141 = sphi %s1124, %s1124
              %s1142 = sphi %s1125, %s1125
            $region631: #{tpu_custom_call.1} parent=627 // loop_header_branch
              %1139 = sbr.rel (%p1137) target = $region635
            $region632: #{tpu_custom_call.1} parent=627 // loop_body
              %v1143 = vld [vmem:[%s1141] sm:%s1134]
              %1144 = vst [vmem:[%s1142] sm:%s1134] %v1143
            $region633: #{tpu_custom_call.1} parent=627 // loop_footer
              %s1140 = sadd.s32 1, %s1136
            $region634: #{tpu_custom_call.1} parent=627 // loop_footer_branch
              %1135 = sbr.rel target = $region630
            $region635: #{tpu_custom_call.1} parent=627 // loop_exit
              _
          $region628: #{tpu_custom_call.1} parent=619 // pred_fallthru
            _
          // Predicated region
          $region647: #{tpu_custom_call.1} parent=619 // pred_check
            _
          $region648: #{tpu_custom_call.1} parent=619 // pred_check_branch
            %1168 = sbr.rel (0) target = $region650
          $region649: #{tpu_custom_call.1} parent=619 // pred_region
            %1169 = vsyncadd [#allocation2], 16
          $region650: #{tpu_custom_call.1} parent=619 // pred_fallthru
            _
        $region620: #{tpu_custom_call.1} parent=23 // pred_fallthru
          _
        %p1170 = pneg %p1120
        // Predicated region
        $region651: #{tpu_custom_call.1} parent=23 // pred_check
          _
        $region652: #{tpu_custom_call.1} parent=23 // pred_check_branch
          %1172 = sbr.rel (%p1120) target = $region654
        $region653: #{tpu_custom_call.1} parent=23 // pred_region
          %s1173 = smul.addr %s1119, 16
          %s1174 = scalar_lea.hbm %s2, %s1173
          %s1175 = scalar_lea.vmem %s117, 14
          // Predicated region
          $region655: #{tpu_custom_call.1} parent=653 // pred_check
            _
          $region656: #{tpu_custom_call.1} parent=653 // pred_check_branch
            %1177 = sbr.rel target = $region658
          $region657: #{tpu_custom_call.1} parent=653 // pred_region
            %1178 = sst [smem:[#allocation10]] [#allocation53]
            %1179 = sst [smem:[#allocation11]] [#allocation52]
          $region658: #{tpu_custom_call.1} parent=653 // pred_fallthru
            _
          %1181 = shalt.err (0)
          %s1183 = sshll.u32 %s1175, 4
          %s1184 = int_to_ptr.vmem [resolvable:$true] %s1183
          %1186 = dma.hbm_to_vmem [thread:$0]  %s1174, 16, %s1184, [#allocation2]
        $region654: #{tpu_custom_call.1} parent=23 // pred_fallthru
          _
        %s1187 = sadd.s32 %s124, 15
        %s1188 = sadd.s32 %s121, %s1187
        %s1189 = sld [smem:[#allocation4 + %s1188]]
        %s1190 = ssub.s32 %s1189, 150
        %p1191 = scmp.lt.s32.totalorder %s1189, 150
        // Predicated region
        $region659: #{tpu_custom_call.1} parent=23 // pred_check
          %p1192 = pneg %p1191
        $region660: #{tpu_custom_call.1} parent=23 // pred_check_branch
          %1194 = sbr.rel (%p1192) target = $region662
        $region661: #{tpu_custom_call.1} parent=23 // pred_region
          %s1195 = scalar_lea.vmem [#allocation5], %s1189
          %s1196 = scalar_lea.vmem %s117, 15
          %p1198 = scmp.lt.u32.totalorder 1, 8
          %p1199 = pneg %p1198
          // Predicated region
          $region663: #{tpu_custom_call.1} parent=661 // pred_check
            _
          $region664: #{tpu_custom_call.1} parent=661 // pred_check_branch
            %1201 = sbr.rel (%p1198) target = $region666
          $region665: #{tpu_custom_call.1} parent=661 // pred_region
            %s1216 = sand.u32 1, 7
            %p1217 = scmp.eq.s32.totalorder %s1216, 0
            %p1218 = pneg %p1217
            // Predicated region
            $region678: #{tpu_custom_call.1} parent=665 // pred_check
              _
            $region679: #{tpu_custom_call.1} parent=665 // pred_check_branch
              %1220 = sbr.rel (%p1217) target = $region681
            $region680: #{tpu_custom_call.1} parent=665 // pred_region
              %s1221 = sand.u32 1, 7
              %s1222 = ssub.s32 1, %s1221
              %s1223 = scalar_lea.vmem %s1195, %s1222 [#allocation5]
              %s1224 = ssub.s32 1, %s1221
              %s1225 = scalar_lea.vmem %s1196, %s1224
              %s1226 = sshllo.u32 0, %s1221
              loop: start=0, step=1, limit=1
              $region682: #{tpu_custom_call.1} parent=680 // loop_pre_header
                _
              $region683: #{tpu_custom_call.1} parent=680 // loop_header
                %s1228 = sphi 0, %s1232
                %p1229 = scmp.ge.s32.totalorder %s1228, 1
                %s1233 = sphi %s1223, %s1223
                %s1234 = sphi %s1225, %s1225
              $region684: #{tpu_custom_call.1} parent=680 // loop_header_branch
                %1231 = sbr.rel (%p1229) target = $region688
              $region685: #{tpu_custom_call.1} parent=680 // loop_body
                %v1235 = vld [vmem:[%s1233] sm:%s1226]
                %1236 = vst [vmem:[%s1234] sm:%s1226] %v1235
              $region686: #{tpu_custom_call.1} parent=680 // loop_footer
                %s1232 = sadd.s32 1, %s1228
              $region687: #{tpu_custom_call.1} parent=680 // loop_footer_branch
                %1227 = sbr.rel target = $region683
              $region688: #{tpu_custom_call.1} parent=680 // loop_exit
                _
            $region681: #{tpu_custom_call.1} parent=665 // pred_fallthru
              _
          $region666: #{tpu_custom_call.1} parent=661 // pred_fallthru
            _
          // Predicated region
          $region667: #{tpu_custom_call.1} parent=661 // pred_check
            %p1202 = pneg %p1198
          $region668: #{tpu_custom_call.1} parent=661 // pred_check_branch
            %1204 = sbr.rel (%p1202) target = $region670
          $region669: #{tpu_custom_call.1} parent=661 // pred_region
            %s1205 = sshllo.u32 0, 1
            loop: start=0, step=1, limit=1
            $region671: #{tpu_custom_call.1} parent=669 // loop_pre_header
              _
            $region672: #{tpu_custom_call.1} parent=669 // loop_header
              %s1207 = sphi 0, %s1211
              %p1208 = scmp.ge.s32.totalorder %s1207, 1
              %s1212 = sphi %s1195, %s1195
              %s1213 = sphi %s1196, %s1196
            $region673: #{tpu_custom_call.1} parent=669 // loop_header_branch
              %1210 = sbr.rel (%p1208) target = $region677
            $region674: #{tpu_custom_call.1} parent=669 // loop_body
              %v1214 = vld [vmem:[%s1212] sm:%s1205]
              %1215 = vst [vmem:[%s1213] sm:%s1205] %v1214
            $region675: #{tpu_custom_call.1} parent=669 // loop_footer
              %s1211 = sadd.s32 1, %s1207
            $region676: #{tpu_custom_call.1} parent=669 // loop_footer_branch
              %1206 = sbr.rel target = $region672
            $region677: #{tpu_custom_call.1} parent=669 // loop_exit
              _
          $region670: #{tpu_custom_call.1} parent=661 // pred_fallthru
            _
          // Predicated region
          $region689: #{tpu_custom_call.1} parent=661 // pred_check
            _
          $region690: #{tpu_custom_call.1} parent=661 // pred_check_branch
            %1239 = sbr.rel (0) target = $region692
          $region691: #{tpu_custom_call.1} parent=661 // pred_region
            %1240 = vsyncadd [#allocation2], 16
          $region692: #{tpu_custom_call.1} parent=661 // pred_fallthru
            _
        $region662: #{tpu_custom_call.1} parent=23 // pred_fallthru
          _
        %p1241 = pneg %p1191
        // Predicated region
        $region693: #{tpu_custom_call.1} parent=23 // pred_check
          _
        $region694: #{tpu_custom_call.1} parent=23 // pred_check_branch
          %1243 = sbr.rel (%p1191) target = $region696
        $region695: #{tpu_custom_call.1} parent=23 // pred_region
          %s1244 = smul.addr %s1190, 16
          %s1245 = scalar_lea.hbm %s2, %s1244
          %s1246 = scalar_lea.vmem %s117, 15
          // Predicated region
          $region697: #{tpu_custom_call.1} parent=695 // pred_check
            _
          $region698: #{tpu_custom_call.1} parent=695 // pred_check_branch
            %1248 = sbr.rel target = $region700
          $region699: #{tpu_custom_call.1} parent=695 // pred_region
            %1249 = sst [smem:[#allocation10]] [#allocation56]
            %1250 = sst [smem:[#allocation11]] [#allocation55]
          $region700: #{tpu_custom_call.1} parent=695 // pred_fallthru
            _
          %1252 = shalt.err (0)
          %s1254 = sshll.u32 %s1246, 4
          %s1255 = int_to_ptr.vmem [resolvable:$true] %s1254
          %1257 = dma.hbm_to_vmem [thread:$0]  %s1245, 16, %s1255, [#allocation2]
        $region696: #{tpu_custom_call.1} parent=23 // pred_fallthru
          _
        loop: start=0, step=1, limit=166
        $region701: #{tpu_custom_call.1} parent=23 // loop_pre_header
          _
        $region702: #{tpu_custom_call.1} parent=23 // loop_header
          %s1259 = sphi 0, %s1263
          %p1260 = scmp.ge.s32.totalorder %s1259, 166
        $region703: #{tpu_custom_call.1} parent=23 // loop_header_branch
          %1262 = sbr.rel (%p1260) target = $region707
        $region704: #{tpu_custom_call.1} parent=23 // loop_body
          %s1264 = sshra.s32 %s1259, 7
          %s1265 = sand.u32 %s1259, 127
          %s1266 = sadd.s32 %s1264, %s120
          %s1267 = smul.u32 %s1266, 256
          %s1268 = sshra.s32 %s1259, 7
          %s1269 = sand.u32 %s1259, 127
          %s1270 = sadd.s32 %s124, %s1269
          %s1271 = sadd.s32 %s1267, %s1270
          %s1272 = sld [smem:[#allocation4 + %s1271]]
          %p1273 = scmp.lt.s32.totalorder %s1272, 150
          // Predicated region
          $region708: #{tpu_custom_call.1} parent=704 // pred_check
            %p1274 = pneg %p1273
          $region709: #{tpu_custom_call.1} parent=704 // pred_check_branch
            %1276 = sbr.rel (%p1274) target = $region711
          $region710: #{tpu_custom_call.1} parent=704 // pred_region
            %s1277 = smul.u32 1, 1
            %s1278 = sshll.u32 %s1277, 4
            %1279 = dma.done [#allocation2], %s1278
          $region711: #{tpu_custom_call.1} parent=704 // pred_fallthru
            _
          %p1280 = pneg %p1273
          // Predicated region
          $region712: #{tpu_custom_call.1} parent=704 // pred_check
            _
          $region713: #{tpu_custom_call.1} parent=704 // pred_check_branch
            %1282 = sbr.rel (%p1273) target = $region715
          $region714: #{tpu_custom_call.1} parent=704 // pred_region
            %s1283 = smul.u32 1, 1
            %s1284 = sshll.u32 %s1283, 4
            %1285 = dma.done [#allocation2], %s1284
          $region715: #{tpu_custom_call.1} parent=704 // pred_fallthru
            _
          %s1286 = sadd.s32 %s1259, 16
          %p1287 = scmp.lt.s32.totalorder %s1286, 166
          // Predicated region
          $region716: #{tpu_custom_call.1} parent=704 // pred_check
            %p1288 = pneg %p1287
          $region717: #{tpu_custom_call.1} parent=704 // pred_check_branch
            %1290 = sbr.rel (%p1288) target = $region719
          $region718: #{tpu_custom_call.1} parent=704 // pred_region
            %s1291 = sshra.s32 %s1286, 7
            %s1292 = sand.u32 %s1286, 127
            %s1293 = sadd.s32 %s1291, %s120
            %s1294 = smul.u32 %s1293, 256
            %s1295 = sshra.s32 %s1286, 7
            %s1296 = sand.u32 %s1286, 127
            %s1297 = sadd.s32 %s124, %s1296
            %s1298 = sadd.s32 %s1294, %s1297
            %s1299 = sld [smem:[#allocation4 + %s1298]]
            %s1300 = ssub.s32 %s1299, 150
            %p1301 = scmp.lt.s32.totalorder %s1299, 150
            // Predicated region
            $region720: #{tpu_custom_call.1} parent=718 // pred_check
              %p1302 = pneg %p1301
            $region721: #{tpu_custom_call.1} parent=718 // pred_check_branch
              %1304 = sbr.rel (%p1302) target = $region723
            $region722: #{tpu_custom_call.1} parent=718 // pred_region
              %s1305 = scalar_lea.vmem [#allocation5], %s1299
              %s1306 = scalar_lea.vmem %s117, %s1286
              %p1308 = scmp.lt.u32.totalorder 1, 8
              %p1309 = pneg %p1308
              // Predicated region
              $region724: #{tpu_custom_call.1} parent=722 // pred_check
                _
              $region725: #{tpu_custom_call.1} parent=722 // pred_check_branch
                %1311 = sbr.rel (%p1308) target = $region727
              $region726: #{tpu_custom_call.1} parent=722 // pred_region
                %s1326 = sand.u32 1, 7
                %p1327 = scmp.eq.s32.totalorder %s1326, 0
                %p1328 = pneg %p1327
                // Predicated region
                $region739: #{tpu_custom_call.1} parent=726 // pred_check
                  _
                $region740: #{tpu_custom_call.1} parent=726 // pred_check_branch
                  %1330 = sbr.rel (%p1327) target = $region742
                $region741: #{tpu_custom_call.1} parent=726 // pred_region
                  %s1331 = sand.u32 1, 7
                  %s1332 = ssub.s32 1, %s1331
                  %s1333 = scalar_lea.vmem %s1305, %s1332 [#allocation5]
                  %s1334 = ssub.s32 1, %s1331
                  %s1335 = scalar_lea.vmem %s1306, %s1334
                  %s1336 = sshllo.u32 0, %s1331
                  loop: start=0, step=1, limit=1
                  $region743: #{tpu_custom_call.1} parent=741 // loop_pre_header
                    _
                  $region744: #{tpu_custom_call.1} parent=741 // loop_header
                    %s1338 = sphi 0, %s1342
                    %p1339 = scmp.ge.s32.totalorder %s1338, 1
                    %s1343 = sphi %s1333, %s1333
                    %s1344 = sphi %s1335, %s1335
                  $region745: #{tpu_custom_call.1} parent=741 // loop_header_branch
                    %1341 = sbr.rel (%p1339) target = $region749
                  $region746: #{tpu_custom_call.1} parent=741 // loop_body
                    %v1345 = vld [vmem:[%s1343] sm:%s1336]
                    %1346 = vst [vmem:[%s1344] sm:%s1336] %v1345
                  $region747: #{tpu_custom_call.1} parent=741 // loop_footer
                    %s1342 = sadd.s32 1, %s1338
                  $region748: #{tpu_custom_call.1} parent=741 // loop_footer_branch
                    %1337 = sbr.rel target = $region744
                  $region749: #{tpu_custom_call.1} parent=741 // loop_exit
                    _
                $region742: #{tpu_custom_call.1} parent=726 // pred_fallthru
                  _
              $region727: #{tpu_custom_call.1} parent=722 // pred_fallthru
                _
              // Predicated region
              $region728: #{tpu_custom_call.1} parent=722 // pred_check
                %p1312 = pneg %p1308
              $region729: #{tpu_custom_call.1} parent=722 // pred_check_branch
                %1314 = sbr.rel (%p1312) target = $region731
              $region730: #{tpu_custom_call.1} parent=722 // pred_region
                %s1315 = sshllo.u32 0, 1
                loop: start=0, step=1, limit=1
                $region732: #{tpu_custom_call.1} parent=730 // loop_pre_header
                  _
                $region733: #{tpu_custom_call.1} parent=730 // loop_header
                  %s1317 = sphi 0, %s1321
                  %p1318 = scmp.ge.s32.totalorder %s1317, 1
                  %s1322 = sphi %s1305, %s1305
                  %s1323 = sphi %s1306, %s1306
                $region734: #{tpu_custom_call.1} parent=730 // loop_header_branch
                  %1320 = sbr.rel (%p1318) target = $region738
                $region735: #{tpu_custom_call.1} parent=730 // loop_body
                  %v1324 = vld [vmem:[%s1322] sm:%s1315]
                  %1325 = vst [vmem:[%s1323] sm:%s1315] %v1324
                $region736: #{tpu_custom_call.1} parent=730 // loop_footer
                  %s1321 = sadd.s32 1, %s1317
                $region737: #{tpu_custom_call.1} parent=730 // loop_footer_branch
                  %1316 = sbr.rel target = $region733
                $region738: #{tpu_custom_call.1} parent=730 // loop_exit
                  _
              $region731: #{tpu_custom_call.1} parent=722 // pred_fallthru
                _
              // Predicated region
              $region750: #{tpu_custom_call.1} parent=722 // pred_check
                _
              $region751: #{tpu_custom_call.1} parent=722 // pred_check_branch
                %1349 = sbr.rel (0) target = $region753
              $region752: #{tpu_custom_call.1} parent=722 // pred_region
                %1350 = vsyncadd [#allocation2], 16
              $region753: #{tpu_custom_call.1} parent=722 // pred_fallthru
                _
            $region723: #{tpu_custom_call.1} parent=718 // pred_fallthru
              _
            %p1351 = pneg %p1301
            // Predicated region
            $region754: #{tpu_custom_call.1} parent=718 // pred_check
              _
            $region755: #{tpu_custom_call.1} parent=718 // pred_check_branch
              %1353 = sbr.rel (%p1301) target = $region757
            $region756: #{tpu_custom_call.1} parent=718 // pred_region
              %s1354 = smul.addr %s1300, 16
              %s1355 = scalar_lea.hbm %s2, %s1354
              %s1356 = scalar_lea.vmem %s117, %s1286
              // Predicated region
              $region758: #{tpu_custom_call.1} parent=756 // pred_check
                _
              $region759: #{tpu_custom_call.1} parent=756 // pred_check_branch
                %1358 = sbr.rel target = $region761
              $region760: #{tpu_custom_call.1} parent=756 // pred_region
                %1359 = sst [smem:[#allocation10]] [#allocation59]
                %1360 = sst [smem:[#allocation11]] [#allocation58]
              $region761: #{tpu_custom_call.1} parent=756 // pred_fallthru
                _
              %1362 = shalt.err (0)
              %s1364 = sshll.u32 %s1356, 4
              %s1365 = int_to_ptr.vmem [resolvable:$true] %s1364
              %1367 = dma.hbm_to_vmem [thread:$0]  %s1355, 16, %s1365, [#allocation2]
            $region757: #{tpu_custom_call.1} parent=718 // pred_fallthru
              _
          $region719: #{tpu_custom_call.1} parent=704 // pred_fallthru
            _
        $region705: #{tpu_custom_call.1} parent=23 // loop_footer
          %s1263 = sadd.s32 1, %s1259
        $region706: #{tpu_custom_call.1} parent=23 // loop_footer_branch
          %1258 = sbr.rel target = $region702
        $region707: #{tpu_custom_call.1} parent=23 // loop_exit
          _
        %p1368 = scmp.lt.s32.totalorder %s19, 1
        %s1369 = scalar_select %p1368, %s19, 1
        %s1370 = smul.addr %s1369, 21
        %s1371 = smul.addr %s1370, 8
        %s1372 = scalar_lea.vmem %s3, %s1371
        // Predicated region
        $region762: #{tpu_custom_call.1} parent=23 // pred_check
          %p1373 = pneg %p58
        $region763: #{tpu_custom_call.1} parent=23 // pred_check_branch
          %1375 = sbr.rel (%p1373) target = $region765
        $region764: #{tpu_custom_call.1} parent=23 // pred_region
          _
        $region765: #{tpu_custom_call.1} parent=23 // pred_fallthru
          _
      $region24: #{tpu_custom_call.1} parent=5 // pred_fallthru
        _
      %p1376 = scmp.le.s32.totalorder 2, %s14
      // Predicated region
      $region766: #{tpu_custom_call.1} parent=5 // pred_check
        %p1377 = pneg %p1376
      $region767: #{tpu_custom_call.1} parent=5 // pred_check_branch
        %1379 = sbr.rel (%p1377) target = $region769
      $region768: #{tpu_custom_call.1} parent=5 // pred_region
        %s1380 = ssub.s32 %s14, 2
        // Predicated region
        $region770: #{tpu_custom_call.1} parent=768 // pred_check
          %p1381 = pneg %p64
        $region771: #{tpu_custom_call.1} parent=768 // pred_check_branch
          %1383 = sbr.rel (%p1381) target = $region773
        $region772: #{tpu_custom_call.1} parent=768 // pred_region
          %p1384 = scmp.lt.s32.totalorder %s20, 1
          %s1385 = scalar_select %p1384, %s20, 1
          %s1386 = smul.addr %s1385, 21
          %s1387 = smul.addr %s1386, 8
          %s1388 = scalar_lea.vmem %s3, %s1387
        $region773: #{tpu_custom_call.1} parent=768 // pred_fallthru
          _
      $region769: #{tpu_custom_call.1} parent=5 // pred_fallthru
        _
    $region6: #{tpu_custom_call.1} parent=1 // loop_footer
      %s18 = sadd.s32 1, %s14
    $region7: #{tpu_custom_call.1} parent=1 // loop_footer_branch
      %13 = sbr.rel target = $region3
    $region8: #{tpu_custom_call.1} parent=1 // loop_exit
      _
    %1389 = vsyncpa [#allocation6], 1
    %s1390 = scalar_lea.sflag [#allocation6], 1
    %1391 = vsyncpa %s1390, 1
  %1392 = vsyncmov [#allocation2]
  %s1393 = vpop.sfrf %1392
  %p1394 = scmp.eq.s32.totalorder %s1393, 0
  %p1395 = pneg %p1394
  %1397 = shalt.err (%p1395)

</llo_original>
